<compile_context>
chip_gen: v6e
topology: v6e:2x2x1
jax: 0.10.0
libtpu: 0.0.40
codegen_flags: <defaults>
</compile_context>

<pallas_src>
import functools

import jax
import jax.numpy as jnp
from jax.experimental import pallas as pl
from jax.experimental.pallas import tpu as pltpu

D_IN = 512
D_HID = 768
D_OUT = 768
NEG_SLOPE = 0.01  # nn.LeakyReLU default


def _round_up(n, m):
    return ((n + m - 1) // m) * m


def _pick_tile(b):
    """Pick a batch tile: big enough to fill the MXU, small enough for VMEM."""
    b8 = _round_up(b, 8)
    if b8 >= 512:
        return 512   # multiple of 256: keeps v6e/v7x dual 256x256 arrays full
    if b8 >= 256:
        return 256
    if b8 >= 128:
        return 128   # v5e MXU is 128-wide
    return b8        # tiny batches: single tile


def _leaky_relu(x):
    return jnp.where(x >= 0, x, NEG_SLOPE * x)


def text_decoder_kernel(x_ref, w1_ref, b1_ref, w2_ref, b2_ref, o_ref):
    # fc1 (bf16 MXU, f32 accumulate) + bias + leaky_relu in f32
    h = jnp.dot(x_ref[...], w1_ref[...], preferred_element_type=jnp.float32)
    h = _leaky_relu(h + b1_ref[...])
    # fc2: cast h back to the weight dtype (bf16) for the second MXU pass
    h = jnp.dot(h.astype(w2_ref.dtype), w2_ref[...],
                preferred_element_type=jnp.float32)
    h = _leaky_relu(h + b2_ref[...])
    o_ref[...] = h.astype(o_ref.dtype)


def _build_call(tb, b_pad, out_dtype, cost, single_buffer_weights):
    if single_buffer_weights:
        def wspec(shape):
            return pl.BlockSpec(shape, lambda i: (0, 0),
                                pipeline_mode=pl.Buffered(1))
    else:
        def wspec(shape):
            return pl.BlockSpec(shape, lambda i: (0, 0))

    return pl.pallas_call(
        text_decoder_kernel,
        out_shape=jax.ShapeDtypeStruct((b_pad, D_OUT), out_dtype),
        grid=(b_pad // tb,),
        in_specs=[
            pl.BlockSpec((tb, D_IN), lambda i: (i, 0)),   # x tile (pipelined)
            wspec((D_IN, D_HID)),                         # W1 (resident)
            wspec((1, D_HID)),                            # b1
            wspec((D_HID, D_OUT)),                        # W2 (resident)
            wspec((1, D_OUT)),                            # b2
        ],
        out_specs=pl.BlockSpec((tb, D_OUT), lambda i: (i, 0)),
        compiler_params=pltpu.CompilerParams(
            dimension_semantics=("parallel",)),
        cost_estimate=cost,
    )


def text_decoder(x, w1, b1, w2, b2, *, tb=None, compute_dtype=jnp.bfloat16):
    """x: (B, 512) -> (B, 768). Weights stored (in, out); biases (D,) or (1, D)."""
    B = x.shape[0]
    out_dtype = x.dtype

    if tb is None:
        tb = _pick_tile(B)
    b_pad = _round_up(B, tb)
    if b_pad != B:
        x = jnp.pad(x, ((0, b_pad - B), (0, 0)))

    # bf16 operands for the MXU; biases stay f32 (added to the f32 accumulator).
    x = x.astype(compute_dtype)
    w1 = w1.astype(compute_dtype)
    w2 = w2.astype(compute_dtype)
    b1 = b1.reshape(1, D_HID).astype(jnp.float32)
    b2 = b2.reshape(1, D_OUT).astype(jnp.float32)

    itemsize = jnp.dtype(compute_dtype).itemsize
    cost = pl.CostEstimate(
        flops=2 * b_pad * (D_IN * D_HID + D_HID * D_OUT),
        transcendentals=0,
        bytes_accessed=(b_pad * D_IN * itemsize
                        + (D_IN * D_HID + D_HID * D_OUT) * itemsize
                        + (D_HID + D_OUT) * 4
                        + b_pad * D_OUT * jnp.dtype(out_dtype).itemsize),
    )

    args = (x, w1, b1, w2, b2)
    try:
        # Single-buffer the grid-constant weights/biases (saves ~2 MiB VMEM).
        out = _build_call(tb, b_pad, out_dtype, cost, True)(*args)
    except Exception:
        # Older JAX without pipeline_mode / Buffered(1): default double-buffering.
        out = _build_call(tb, b_pad, out_dtype, cost, False)(*args)
    return out[:B]


def init_params(key):
    """Deterministic init mimicking nn.Linear's U(-1/sqrt(in), 1/sqrt(in))."""
    k1, k2, k3, k4 = jax.random.split(key, 4)
    bound1 = 1.0 / jnp.sqrt(float(D_IN))
    bound2 = 1.0 / jnp.sqrt(float(D_HID))
    # Stored as (in, out) so the kernel does x @ W (== PyTorch x @ W.T).
    w1 = jax.random.uniform(k1, (D_IN, D_HID), jnp.float32, -bound1, bound1)
    b1 = jax.random.uniform(k2, (D_HID,), jnp.float32, -bound1, bound1)
    w2 = jax.random.uniform(k3, (D_HID, D_OUT), jnp.float32, -bound2, bound2)
    b2 = jax.random.uniform(k4, (D_OUT,), jnp.float32, -bound2, bound2)
    return w1, b1, w2, b2


def reference(x, w1, b1, w2, b2):
    h = jnp.dot(x, w1) + b1
    h = jnp.where(h >= 0, h, NEG_SLOPE * h)
    h = jnp.dot(h, w2) + b2
    return jnp.where(h >= 0, h, NEG_SLOPE * h)


if __name__ == "__main__":
    key = jax.random.PRNGKey(0)
    kx, kp, kx2 = jax.random.split(key, 3)
    w1, b1, w2, b2 = init_params(kp)

    # Small, sublane-aligned batch.
    B = 8
    x = jax.random.normal(kx, (B, D_IN), jnp.float32)
    out = jax.block_until_ready(text_decoder(x, w1, b1, w2, b2))
    ref = reference(x, w1, b1, w2, b2)
    assert out.shape == (B, D_OUT)
    # bf16 matmul inputs with f32 accumulation: loosen tolerance vs f32 ref.
    assert jnp.allclose(out, ref, atol=2e-2, rtol=2e-2), "mismatch vs reference"

    # Non-tile-aligned batch exercises the padding path.
    B2 = 12
    x2 = jax.random.normal(kx2, (B2, D_IN), jnp.float32)
    out2 = jax.block_until_ready(text_decoder(x2, w1, b1, w2, b2))
    ref2 = reference(x2, w1, b1, w2, b2)
    assert out2.shape == (B2, D_OUT)
    assert jnp.allclose(out2, ref2, atol=2e-2, rtol=2e-2), "mismatch (padded batch)"

    print("KERNEL_OK")
</pallas_src>

<mosaic_0001>
module attributes {stable_mosaic.version = 11 : i64} {
  func.func @text_decoder_kernel(%arg0: i32, %arg1: memref<8x512xbf16, #tpu.memory_space<vmem>>, %arg2: memref<512x768xbf16, #tpu.memory_space<vmem>>, %arg3: memref<1x768xf32, #tpu.memory_space<vmem>>, %arg4: memref<768x768xbf16, #tpu.memory_space<vmem>>, %arg5: memref<1x768xf32, #tpu.memory_space<vmem>>, %arg6: memref<8x768xf32, #tpu.memory_space<vmem>>) attributes {dimension_semantics = [#tpu.dimension_semantics<parallel>], iteration_bounds = array<i64: 1>, scalar_prefetch = 0 : i64, scratch_operands = 0 : i64, tpu.core_type = #tpu.core_type<tc>, window_params = [{transform_indices = @transform_0, window_bounds = array<i64: 8, 512>}, {pipeline_mode = #tpu.pipeline_mode<synchronous>, transform_indices = @transform_1, window_bounds = array<i64: 512, 768>}, {pipeline_mode = #tpu.pipeline_mode<synchronous>, transform_indices = @transform_2, window_bounds = array<i64: 1, 768>}, {pipeline_mode = #tpu.pipeline_mode<synchronous>, transform_indices = @transform_3, window_bounds = array<i64: 768, 768>}, {pipeline_mode = #tpu.pipeline_mode<synchronous>, transform_indices = @transform_4, window_bounds = array<i64: 1, 768>}, {transform_indices = @transform_5, window_bounds = array<i64: 8, 768>}]} {
    %c0 = arith.constant 0 : index
    %c0_0 = arith.constant 0 : index
    %0 = vector.load %arg1[%c0, %c0_0] : memref<8x512xbf16, #tpu.memory_space<vmem>>, vector<8x512xbf16>
    %c0_1 = arith.constant 0 : index
    %c0_2 = arith.constant 0 : index
    %1 = vector.load %arg2[%c0_1, %c0_2] : memref<512x768xbf16, #tpu.memory_space<vmem>>, vector<512x768xbf16>
    %cst = arith.constant dense<0.000000e+00> : vector<8x768xf32>
    %2 = tpu.matmul %0, %1, %cst {dimension_numbers = #tpu.dot_dimension_numbers<[1], [0], [0], [1], [0, 0, 1, 1], [], []>} : vector<8x512xbf16>, vector<512x768xbf16>, vector<8x768xf32> -> vector<8x768xf32>
    %c0_3 = arith.constant 0 : index
    %c0_4 = arith.constant 0 : index
    %3 = vector.load %arg3[%c0_3, %c0_4] : memref<1x768xf32, #tpu.memory_space<vmem>>, vector<1x768xf32>
    %4 = vector.broadcast %3 : vector<1x768xf32> to vector<8x768xf32>
    %5 = arith.addf %2, %4 : vector<8x768xf32>
    %cst_5 = arith.constant 0.000000e+00 : f32
    %6 = vector.broadcast %cst_5 : f32 to vector<8x768xf32>
    %7 = arith.cmpf oge, %5, %6 : vector<8x768xf32>
    %cst_6 = arith.constant 0.00999999977 : f32
    %8 = vector.broadcast %cst_6 : f32 to vector<8x768xf32>
    %9 = arith.mulf %8, %5 : vector<8x768xf32>
    %10 = arith.select %7, %5, %9 : vector<8x768xi1>, vector<8x768xf32>
    %11 = arith.truncf %10 : vector<8x768xf32> to vector<8x768xbf16>
    %c0_7 = arith.constant 0 : index
    %c0_8 = arith.constant 0 : index
    %12 = vector.load %arg4[%c0_7, %c0_8] : memref<768x768xbf16, #tpu.memory_space<vmem>>, vector<768x768xbf16>
    %cst_9 = arith.constant dense<0.000000e+00> : vector<8x768xf32>
    %13 = tpu.matmul %11, %12, %cst_9 {dimension_numbers = #tpu.dot_dimension_numbers<[1], [0], [0], [1], [0, 0, 1, 1], [], []>} : vector<8x768xbf16>, vector<768x768xbf16>, vector<8x768xf32> -> vector<8x768xf32>
    %c0_10 = arith.constant 0 : index
    %c0_11 = arith.constant 0 : index
    %14 = vector.load %arg5[%c0_10, %c0_11] : memref<1x768xf32, #tpu.memory_space<vmem>>, vector<1x768xf32>
    %15 = vector.broadcast %14 : vector<1x768xf32> to vector<8x768xf32>
    %16 = arith.addf %13, %15 : vector<8x768xf32>
    %cst_12 = arith.constant 0.000000e+00 : f32
    %17 = vector.broadcast %cst_12 : f32 to vector<8x768xf32>
    %18 = arith.cmpf oge, %16, %17 : vector<8x768xf32>
    %cst_13 = arith.constant 0.00999999977 : f32
    %19 = vector.broadcast %cst_13 : f32 to vector<8x768xf32>
    %20 = arith.mulf %19, %16 : vector<8x768xf32>
    %21 = arith.select %18, %16, %20 : vector<8x768xi1>, vector<8x768xf32>
    %c0_14 = arith.constant 0 : index
    %c0_15 = arith.constant 0 : index
    %22 = vector.load %arg6[%c0_14, %c0_15] : memref<8x768xf32, #tpu.memory_space<vmem>>, vector<8x768xf32>
    tpu.vector_store %arg6[%c0_14, %c0_15], %21 {strides = array<i32>} : memref<8x768xf32, #tpu.memory_space<vmem>>, vector<8x768xf32>,
    return
  }
  func.func @transform_0(%arg0: i32) -> (i32, i32) {
    %c0_i32 = arith.constant 0 : i32
    %c0_i32_0 = arith.constant 0 : i32
    return %arg0, %c0_i32 : i32, i32
  }
  func.func @transform_1(%arg0: i32) -> (i32, i32) {
    %c0_i32 = arith.constant 0 : i32
    %c0_i32_0 = arith.constant 0 : i32
    %c0_i32_1 = arith.constant 0 : i32
    return %c0_i32, %c0_i32_0 : i32, i32
  }
  func.func @transform_2(%arg0: i32) -> (i32, i32) {
    %c0_i32 = arith.constant 0 : i32
    %c0_i32_0 = arith.constant 0 : i32
    %c0_i32_1 = arith.constant 0 : i32
    return %c0_i32, %c0_i32_0 : i32, i32
  }
  func.func @transform_3(%arg0: i32) -> (i32, i32) {
    %c0_i32 = arith.constant 0 : i32
    %c0_i32_0 = arith.constant 0 : i32
    %c0_i32_1 = arith.constant 0 : i32
    return %c0_i32, %c0_i32_0 : i32, i32
  }
  func.func @transform_4(%arg0: i32) -> (i32, i32) {
    %c0_i32 = arith.constant 0 : i32
    %c0_i32_0 = arith.constant 0 : i32
    %c0_i32_1 = arith.constant 0 : i32
    return %c0_i32, %c0_i32_0 : i32, i32
  }
  func.func @transform_5(%arg0: i32) -> (i32, i32) {
    %c0_i32 = arith.constant 0 : i32
    %c0_i32_0 = arith.constant 0 : i32
    return %arg0, %c0_i32 : i32, i32
  }
}

module attributes {stable_mosaic.version = 11 : i64} {
  func.func @text_decoder_kernel(%arg0: i32, %arg1: memref<8x512xbf16, #tpu.memory_space<vmem>>, %arg2: memref<512x768xbf16, #tpu.memory_space<vmem>>, %arg3: memref<1x768xf32, #tpu.memory_space<vmem>>, %arg4: memref<768x768xbf16, #tpu.memory_space<vmem>>, %arg5: memref<1x768xf32, #tpu.memory_space<vmem>>, %arg6: memref<8x768xf32, #tpu.memory_space<vmem>>) attributes {dimension_semantics = [#tpu.dimension_semantics<parallel>], iteration_bounds = array<i64: 1>, scalar_prefetch = 0 : i64, scratch_operands = 0 : i64, tpu.core_type = #tpu.core_type<tc>, window_params = [{transform_indices = @transform_0, window_bounds = array<i64: 8, 512>}, {pipeline_mode = #tpu.pipeline_mode<synchronous>, transform_indices = @transform_1, window_bounds = array<i64: 512, 768>}, {pipeline_mode = #tpu.pipeline_mode<synchronous>, transform_indices = @transform_2, window_bounds = array<i64: 1, 768>}, {pipeline_mode = #tpu.pipeline_mode<synchronous>, transform_indices = @transform_3, window_bounds = array<i64: 768, 768>}, {pipeline_mode = #tpu.pipeline_mode<synchronous>, transform_indices = @transform_4, window_bounds = array<i64: 1, 768>}, {transform_indices = @transform_5, window_bounds = array<i64: 8, 768>}]} {
    %c0 = arith.constant 0 : index
    %c0_0 = arith.constant 0 : index
    %0 = vector.load %arg1[%c0, %c0_0] : memref<8x512xbf16, #tpu.memory_space<vmem>>, vector<8x512xbf16>
    %c0_1 = arith.constant 0 : index
    %c0_2 = arith.constant 0 : index
    %1 = vector.load %arg2[%c0_1, %c0_2] : memref<512x768xbf16, #tpu.memory_space<vmem>>, vector<512x768xbf16>
    %cst = arith.constant dense<0.000000e+00> : vector<8x768xf32>
    %2 = tpu.matmul %0, %1, %cst {dimension_numbers = #tpu.dot_dimension_numbers<[1], [0], [0], [1], [0, 0, 1, 1], [], []>} : vector<8x512xbf16>, vector<512x768xbf16>, vector<8x768xf32> -> vector<8x768xf32>
    %c0_3 = arith.constant 0 : index
    %c0_4 = arith.constant 0 : index
    %3 = vector.load %arg3[%c0_3, %c0_4] : memref<1x768xf32, #tpu.memory_space<vmem>>, vector<1x768xf32>
    %4 = vector.broadcast %3 : vector<1x768xf32> to vector<8x768xf32>
    %5 = arith.addf %2, %4 : vector<8x768xf32>
    %cst_5 = arith.constant 0.000000e+00 : f32
    %6 = vector.broadcast %cst_5 : f32 to vector<8x768xf32>
    %7 = arith.cmpf oge, %5, %6 : vector<8x768xf32>
    %cst_6 = arith.constant 0.00999999977 : f32
    %8 = vector.broadcast %cst_6 : f32 to vector<8x768xf32>
    %9 = arith.mulf %8, %5 : vector<8x768xf32>
    %10 = arith.select %7, %5, %9 : vector<8x768xi1>, vector<8x768xf32>
    %11 = arith.truncf %10 : vector<8x768xf32> to vector<8x768xbf16>
    %c0_7 = arith.constant 0 : index
    %c0_8 = arith.constant 0 : index
    %12 = vector.load %arg4[%c0_7, %c0_8] : memref<768x768xbf16, #tpu.memory_space<vmem>>, vector<768x768xbf16>
    %cst_9 = arith.constant dense<0.000000e+00> : vector<8x768xf32>
    %13 = tpu.matmul %11, %12, %cst_9 {dimension_numbers = #tpu.dot_dimension_numbers<[1], [0], [0], [1], [0, 0, 1, 1], [], []>} : vector<8x768xbf16>, vector<768x768xbf16>, vector<8x768xf32> -> vector<8x768xf32>
    %c0_10 = arith.constant 0 : index
    %c0_11 = arith.constant 0 : index
    %14 = vector.load %arg5[%c0_10, %c0_11] : memref<1x768xf32, #tpu.memory_space<vmem>>, vector<1x768xf32>
    %15 = vector.broadcast %14 : vector<1x768xf32> to vector<8x768xf32>
    %16 = arith.addf %13, %15 : vector<8x768xf32>
    %cst_12 = arith.constant 0.000000e+00 : f32
    %17 = vector.broadcast %cst_12 : f32 to vector<8x768xf32>
    %18 = arith.cmpf oge, %16, %17 : vector<8x768xf32>
    %cst_13 = arith.constant 0.00999999977 : f32
    %19 = vector.broadcast %cst_13 : f32 to vector<8x768xf32>
    %20 = arith.mulf %19, %16 : vector<8x768xf32>
    %21 = arith.select %18, %16, %20 : vector<8x768xi1>, vector<8x768xf32>
    %c0_14 = arith.constant 0 : index
    %c0_15 = arith.constant 0 : index
    %22 = vector.load %arg6[%c0_14, %c0_15] : memref<8x768xf32, #tpu.memory_space<vmem>>, vector<8x768xf32>
    tpu.vector_store %arg6[%c0_14, %c0_15], %21 {strides = array<i32>} : memref<8x768xf32, #tpu.memory_space<vmem>>, vector<8x768xf32>,
    return
  }
  func.func @transform_0(%arg0: i32) -> (i32, i32) {
    %c0_i32 = arith.constant 0 : i32
    %c0_i32_0 = arith.constant 0 : i32
    return %arg0, %c0_i32 : i32, i32
  }
  func.func @transform_1(%arg0: i32) -> (i32, i32) {
    %c0_i32 = arith.constant 0 : i32
    %c0_i32_0 = arith.constant 0 : i32
    %c0_i32_1 = arith.constant 0 : i32
    return %c0_i32, %c0_i32_0 : i32, i32
  }
  func.func @transform_2(%arg0: i32) -> (i32, i32) {
    %c0_i32 = arith.constant 0 : i32
    %c0_i32_0 = arith.constant 0 : i32
    %c0_i32_1 = arith.constant 0 : i32
    return %c0_i32, %c0_i32_0 : i32, i32
  }
  func.func @transform_3(%arg0: i32) -> (i32, i32) {
    %c0_i32 = arith.constant 0 : i32
    %c0_i32_0 = arith.constant 0 : i32
    %c0_i32_1 = arith.constant 0 : i32
    return %c0_i32, %c0_i32_0 : i32, i32
  }
  func.func @transform_4(%arg0: i32) -> (i32, i32) {
    %c0_i32 = arith.constant 0 : i32
    %c0_i32_0 = arith.constant 0 : i32
    %c0_i32_1 = arith.constant 0 : i32
    return %c0_i32, %c0_i32_0 : i32, i32
  }
  func.func @transform_5(%arg0: i32) -> (i32, i32) {
    %c0_i32 = arith.constant 0 : i32
    %c0_i32_0 = arith.constant 0 : i32
    return %arg0, %c0_i32 : i32, i32
  }
}

</mosaic_0001>

<llo_original>
// kernel: tpu_custom_call.1
$region0: #{tpu_custom_call.1}
  #allocation0 [shape = 'u32[]', space=smem, size = 0x4, offset = 0x4, fixed_abs, tag = 'smem constant byte address 0x4 - core index']
  #allocation1 [shape = 'u32[144,128]{1,0:T(1,128)}', space=vmem, size = 0x12000, scoped, tag = 'internal scratch']
  %s0 = inlined_call_operand.hbm [shape: bf16[8,512], index: 0, kind: input, shape index: {}]
  %s1 = inlined_call_operand.hbm [shape: bf16[512,768], index: 1, kind: input, shape index: {}]
  %s2 = inlined_call_operand.hbm [shape: f32[1,768], index: 2, kind: input, shape index: {}]
  %s3 = inlined_call_operand.hbm [shape: bf16[768,768], index: 3, kind: input, shape index: {}]
  %s4 = inlined_call_operand.hbm [shape: f32[1,768], index: 4, kind: input, shape index: {}]
  %s5 = inlined_call_operand.hbm [shape: f32[8,768], index: 5, kind: output, shape index: {}]
  %s6 = sld [smem:[#allocation0]]
  $region50: #{tpu_custom_call.1} parent=0
    _
  %s8 = ssub.s32 1, %s6
  %s9 = scalar_select 0, %s8, %s6
  $region1: #{tpu_custom_call.1} parent=0
    #allocation2 [shape = 'u8[8192]{0}', space=vmem, size = 0x2000, scoped, tag = 'input window, operand 0, single buffered']
    #allocation3 [shape = 's32[1]{0}', space=sflag, size = 0x4, scoped, tag = 'scoped memory for tpu_custom_call.1']
    #allocation4 [shape = 's32[1]{0}', space=sflag, size = 0x4, scoped, tag = 'scoped memory for tpu_custom_call.1']
    #allocation5 [shape = 'u8[786432]{0}', space=vmem, size = 0xc0000, scoped, tag = 'input window, operand 1, single buffered']
    #allocation6 [shape = 's32[1]{0}', space=sflag, size = 0x4, scoped, tag = 'scoped memory for tpu_custom_call.1']
    #allocation7 [shape = 'u8[3072]{0}', space=vmem, size = 0xc00, scoped, tag = 'input window, operand 2, single buffered']
    #allocation8 [shape = 'u8[1179648]{0}', space=vmem, size = 0x120000, scoped, tag = 'input window, operand 3, single buffered']
    #allocation9 [shape = 's32[1]{0}', space=sflag, size = 0x4, scoped, tag = 'scoped memory for tpu_custom_call.1']
    #allocation10 [shape = 'u8[3072]{0}', space=vmem, size = 0xc00, scoped, tag = 'input window, operand 4, single buffered']
    #allocation11 [shape = 'u8[24576]{0}', space=vmem, size = 0x6000, scoped, tag = 'output window, operand 0, single buffered']
    %10 = vsyncpa [#allocation3], 0
    %11 = vsyncpa [#allocation6], 0
    %12 = vsyncpa [#allocation9], 0
    %13 = vsyncpa [#allocation4], 0
    // Predicated region
    $region2: #{tpu_custom_call.1} parent=1 // pred_check
      _
    $region3: #{tpu_custom_call.1} parent=1 // pred_check_branch
      %15 = sbr.rel (0) target = $region5
    $region4: #{tpu_custom_call.1} parent=1 // pred_region
      %s17 = ssub.s32 256, 256
      %18 = vsyncadd [#allocation3], %s17
      %s20 = sshll.u32 [#allocation2], 4
      %s21 = int_to_ptr.vmem [resolvable:$true] %s20
      %23 = dma.hbm_to_vmem [thread:$0]  %s0, 256, %s21, [#allocation3]
    $region5: #{tpu_custom_call.1} parent=1 // pred_fallthru
      _
    // Predicated region
    $region6: #{tpu_custom_call.1} parent=1 // pred_check
      _
    $region7: #{tpu_custom_call.1} parent=1 // pred_check_branch
      %25 = sbr.rel (0) target = $region9
    $region8: #{tpu_custom_call.1} parent=1 // pred_region
      %s27 = ssub.s32 24576, 24576
      %28 = vsyncadd [#allocation6], %s27
      %s29 = sshll.u32 [#allocation5], 4
      %s30 = int_to_ptr.vmem [resolvable:$true] %s29
      %35 = dma.hbm_to_vmem [thread:$0]  %s1, 24576, %s30, [#allocation6], 384, 384, 24
    $region9: #{tpu_custom_call.1} parent=1 // pred_fallthru
      _
    // Predicated region
    $region10: #{tpu_custom_call.1} parent=1 // pred_check
      _
    $region11: #{tpu_custom_call.1} parent=1 // pred_check_branch
      %37 = sbr.rel (0) target = $region13
    $region12: #{tpu_custom_call.1} parent=1 // pred_region
      %s39 = ssub.s32 96, 96
      %40 = vsyncadd [#allocation6], %s39
      %s42 = sshll.u32 [#allocation7], 4
      %s43 = int_to_ptr.vmem [resolvable:$true] %s42
      %45 = dma.hbm_to_vmem [thread:$0]  %s2, 96, %s43, [#allocation6]
    $region13: #{tpu_custom_call.1} parent=1 // pred_fallthru
      _
    // Predicated region
    $region14: #{tpu_custom_call.1} parent=1 // pred_check
      _
    $region15: #{tpu_custom_call.1} parent=1 // pred_check_branch
      %47 = sbr.rel (0) target = $region17
    $region16: #{tpu_custom_call.1} parent=1 // pred_region
      %s49 = ssub.s32 36864, 36864
      %50 = vsyncadd [#allocation9], %s49
      %s51 = sshll.u32 [#allocation8], 4
      %s52 = int_to_ptr.vmem [resolvable:$true] %s51
      %57 = dma.hbm_to_vmem [thread:$0]  %s3, 36864, %s52, [#allocation9], 384, 384, 24
    $region17: #{tpu_custom_call.1} parent=1 // pred_fallthru
      _
    // Predicated region
    $region18: #{tpu_custom_call.1} parent=1 // pred_check
      _
    $region19: #{tpu_custom_call.1} parent=1 // pred_check_branch
      %59 = sbr.rel (0) target = $region21
    $region20: #{tpu_custom_call.1} parent=1 // pred_region
      %s61 = ssub.s32 96, 96
      %62 = vsyncadd [#allocation9], %s61
      %s64 = sshll.u32 [#allocation10], 4
      %s65 = int_to_ptr.vmem [resolvable:$true] %s64
      %67 = dma.hbm_to_vmem [thread:$0]  %s4, 96, %s65, [#allocation9]
    $region21: #{tpu_custom_call.1} parent=1 // pred_fallthru
      _
    // Predicated region
    $region22: #{tpu_custom_call.1} parent=1 // pred_check
      _
    $region23: #{tpu_custom_call.1} parent=1 // pred_check_branch
      %69 = sbr.rel (0) target = $region25
    $region24: #{tpu_custom_call.1} parent=1 // pred_region
      %70 = dma.done [#allocation3], 256
    $region25: #{tpu_custom_call.1} parent=1 // pred_fallthru
      _
    // Predicated region
    $region26: #{tpu_custom_call.1} parent=1 // pred_check
      _
    $region27: #{tpu_custom_call.1} parent=1 // pred_check_branch
      %72 = sbr.rel (0) target = $region29
    $region28: #{tpu_custom_call.1} parent=1 // pred_region
      %73 = dma.done [#allocation6], 24576
    $region29: #{tpu_custom_call.1} parent=1 // pred_fallthru
      _
    // Predicated region
    $region30: #{tpu_custom_call.1} parent=1 // pred_check
      _
    $region31: #{tpu_custom_call.1} parent=1 // pred_check_branch
      %75 = sbr.rel (0) target = $region33
    $region32: #{tpu_custom_call.1} parent=1 // pred_region
      %76 = dma.done [#allocation6], 96
    $region33: #{tpu_custom_call.1} parent=1 // pred_fallthru
      _
    // Predicated region
    $region34: #{tpu_custom_call.1} parent=1 // pred_check
      _
    $region35: #{tpu_custom_call.1} parent=1 // pred_check_branch
      %78 = sbr.rel (0) target = $region37
    $region36: #{tpu_custom_call.1} parent=1 // pred_region
      %79 = dma.done [#allocation9], 36864
    $region37: #{tpu_custom_call.1} parent=1 // pred_fallthru
      _
    // Predicated region
    $region38: #{tpu_custom_call.1} parent=1 // pred_check
      _
    $region39: #{tpu_custom_call.1} parent=1 // pred_check_branch
      %81 = sbr.rel (0) target = $region41
    $region40: #{tpu_custom_call.1} parent=1 // pred_region
      %82 = dma.done [#allocation9], 96
    $region41: #{tpu_custom_call.1} parent=1 // pred_fallthru
      _
    %v83 = vld [vmem:[#allocation2] sm:$0xff]
    %v84 = vld [vmem:[#allocation2 + $0x8] sm:$0xff]
    %v85 = vld [vmem:[#allocation5] sm:$0xff]
    %v86 = vld [vmem:[#allocation5 + $0x8] sm:$0xff]
    %v87 = vld [vmem:[#allocation5 + $0x10] sm:$0xff]
    %v88 = vld [vmem:[#allocation5 + $0x18] sm:$0xff]
    %v89 = vld [vmem:[#allocation5 + $0x20] sm:$0xff]
    %v90 = vld [vmem:[#allocation5 + $0x28] sm:$0xff]
    %v91 = vld [vmem:[#allocation5 + $0x30] sm:$0xff]
    %v92 = vld [vmem:[#allocation5 + $0x38] sm:$0xff]
    %v93 = vld [vmem:[#allocation5 + $0x40] sm:$0xff]
    %v94 = vld [vmem:[#allocation5 + $0x48] sm:$0xff]
    %v95 = vld [vmem:[#allocation5 + $0x50] sm:$0xff]
    %v96 = vld [vmem:[#allocation5 + $0x58] sm:$0xff]
    %v97 = vld [vmem:[#allocation5 + $0x60] sm:$0xff]
    %v98 = vld [vmem:[#allocation5 + $0x68] sm:$0xff]
    %v99 = vld [vmem:[#allocation5 + $0x70] sm:$0xff]
    %v100 = vld [vmem:[#allocation5 + $0x78] sm:$0xff]
    %v101 = vld [vmem:[#allocation5 + $0x80] sm:$0xff]
    %v102 = vld [vmem:[#allocation5 + $0x88] sm:$0xff]
    %v103 = vld [vmem:[#allocation5 + $0x90] sm:$0xff]
    %v104 = vld [vmem:[#allocation5 + $0x98] sm:$0xff]
    %v105 = vld [vmem:[#allocation5 + $0xa0] sm:$0xff]
    %v106 = vld [vmem:[#allocation5 + $0xa8] sm:$0xff]
    %v107 = vld [vmem:[#allocation5 + $0xb0] sm:$0xff]
    %v108 = vld [vmem:[#allocation5 + $0xb8] sm:$0xff]
    %v109 = vld [vmem:[#allocation5 + $0xc0] sm:$0xff]
    %v110 = vld [vmem:[#allocation5 + $0xc8] sm:$0xff]
    %v111 = vld [vmem:[#allocation5 + $0xd0] sm:$0xff]
    %v112 = vld [vmem:[#allocation5 + $0xd8] sm:$0xff]
    %v113 = vld [vmem:[#allocation5 + $0xe0] sm:$0xff]
    %v114 = vld [vmem:[#allocation5 + $0xe8] sm:$0xff]
    %v115 = vld [vmem:[#allocation5 + $0xf0] sm:$0xff]
    %v116 = vld [vmem:[#allocation5 + $0xf8] sm:$0xff]
    %v117 = vld [vmem:[#allocation5 + $0x100] sm:$0xff]
    %v118 = vld [vmem:[#allocation5 + $0x108] sm:$0xff]
    %v119 = vld [vmem:[#allocation5 + $0x110] sm:$0xff]
    %v120 = vld [vmem:[#allocation5 + $0x118] sm:$0xff]
    %v121 = vld [vmem:[#allocation5 + $0x120] sm:$0xff]
    %v122 = vld [vmem:[#allocation5 + $0x128] sm:$0xff]
    %v123 = vld [vmem:[#allocation5 + $0x130] sm:$0xff]
    %v124 = vld [vmem:[#allocation5 + $0x138] sm:$0xff]
    %v125 = vld [vmem:[#allocation5 + $0x140] sm:$0xff]
    %v126 = vld [vmem:[#allocation5 + $0x148] sm:$0xff]
    %v127 = vld [vmem:[#allocation5 + $0x150] sm:$0xff]
    %v128 = vld [vmem:[#allocation5 + $0x158] sm:$0xff]
    %v129 = vld [vmem:[#allocation5 + $0x160] sm:$0xff]
    %v130 = vld [vmem:[#allocation5 + $0x168] sm:$0xff]
    %v131 = vld [vmem:[#allocation5 + $0x170] sm:$0xff]
    %v132 = vld [vmem:[#allocation5 + $0x178] sm:$0xff]
    %v133 = vld [vmem:[#allocation5 + $0x180] sm:$0xff]
    %v134 = vld [vmem:[#allocation5 + $0x188] sm:$0xff]
    %v135 = vld [vmem:[#allocation5 + $0x190] sm:$0xff]
    %v136 = vld [vmem:[#allocation5 + $0x198] sm:$0xff]
    %v137 = vld [vmem:[#allocation5 + $0x1a0] sm:$0xff]
    %v138 = vld [vmem:[#allocation5 + $0x1a8] sm:$0xff]
    %v139 = vld [vmem:[#allocation5 + $0x1b0] sm:$0xff]
    %v140 = vld [vmem:[#allocation5 + $0x1b8] sm:$0xff]
    %v141 = vld [vmem:[#allocation5 + $0x1c0] sm:$0xff]
    %v142 = vld [vmem:[#allocation5 + $0x1c8] sm:$0xff]
    %v143 = vld [vmem:[#allocation5 + $0x1d0] sm:$0xff]
    %v144 = vld [vmem:[#allocation5 + $0x1d8] sm:$0xff]
    %v145 = vld [vmem:[#allocation5 + $0x1e0] sm:$0xff]
    %v146 = vld [vmem:[#allocation5 + $0x1e8] sm:$0xff]
    %v147 = vld [vmem:[#allocation5 + $0x1f0] sm:$0xff]
    %v148 = vld [vmem:[#allocation5 + $0x1f8] sm:$0xff]
    %v149 = vld [vmem:[#allocation5 + $0x200] sm:$0xff]
    %v150 = vld [vmem:[#allocation5 + $0x208] sm:$0xff]
    %v151 = vld [vmem:[#allocation5 + $0x210] sm:$0xff]
    %v152 = vld [vmem:[#allocation5 + $0x218] sm:$0xff]
    %v153 = vld [vmem:[#allocation5 + $0x220] sm:$0xff]
    %v154 = vld [vmem:[#allocation5 + $0x228] sm:$0xff]
    %v155 = vld [vmem:[#allocation5 + $0x230] sm:$0xff]
    %v156 = vld [vmem:[#allocation5 + $0x238] sm:$0xff]
    %v157 = vld [vmem:[#allocation5 + $0x240] sm:$0xff]
    %v158 = vld [vmem:[#allocation5 + $0x248] sm:$0xff]
    %v159 = vld [vmem:[#allocation5 + $0x250] sm:$0xff]
    %v160 = vld [vmem:[#allocation5 + $0x258] sm:$0xff]
    %v161 = vld [vmem:[#allocation5 + $0x260] sm:$0xff]
    %v162 = vld [vmem:[#allocation5 + $0x268] sm:$0xff]
    %v163 = vld [vmem:[#allocation5 + $0x270] sm:$0xff]
    %v164 = vld [vmem:[#allocation5 + $0x278] sm:$0xff]
    %v165 = vld [vmem:[#allocation5 + $0x280] sm:$0xff]
    %v166 = vld [vmem:[#allocation5 + $0x288] sm:$0xff]
    %v167 = vld [vmem:[#allocation5 + $0x290] sm:$0xff]
    %v168 = vld [vmem:[#allocation5 + $0x298] sm:$0xff]
    %v169 = vld [vmem:[#allocation5 + $0x2a0] sm:$0xff]
    %v170 = vld [vmem:[#allocation5 + $0x2a8] sm:$0xff]
    %v171 = vld [vmem:[#allocation5 + $0x2b0] sm:$0xff]
    %v172 = vld [vmem:[#allocation5 + $0x2b8] sm:$0xff]
    %v173 = vld [vmem:[#allocation5 + $0x2c0] sm:$0xff]
    %v174 = vld [vmem:[#allocation5 + $0x2c8] sm:$0xff]
    %v175 = vld [vmem:[#allocation5 + $0x2d0] sm:$0xff]
    %v176 = vld [vmem:[#allocation5 + $0x2d8] sm:$0xff]
    %v177 = vld [vmem:[#allocation5 + $0x2e0] sm:$0xff]
    %v178 = vld [vmem:[#allocation5 + $0x2e8] sm:$0xff]
    %v179 = vld [vmem:[#allocation5 + $0x2f0] sm:$0xff]
    %v180 = vld [vmem:[#allocation5 + $0x2f8] sm:$0xff]
    %v181 = vld [vmem:[#allocation5 + $0x300] sm:$0xff]
    %v182 = vld [vmem:[#allocation5 + $0x308] sm:$0xff]
    %v183 = vld [vmem:[#allocation5 + $0x310] sm:$0xff]
    %v184 = vld [vmem:[#allocation5 + $0x318] sm:$0xff]
    %v185 = vld [vmem:[#allocation5 + $0x320] sm:$0xff]
    %v186 = vld [vmem:[#allocation5 + $0x328] sm:$0xff]
    %v187 = vld [vmem:[#allocation5 + $0x330] sm:$0xff]
    %v188 = vld [vmem:[#allocation5 + $0x338] sm:$0xff]
    %v189 = vld [vmem:[#allocation5 + $0x340] sm:$0xff]
    %v190 = vld [vmem:[#allocation5 + $0x348] sm:$0xff]
    %v191 = vld [vmem:[#allocation5 + $0x350] sm:$0xff]
    %v192 = vld [vmem:[#allocation5 + $0x358] sm:$0xff]
    %v193 = vld [vmem:[#allocation5 + $0x360] sm:$0xff]
    %v194 = vld [vmem:[#allocation5 + $0x368] sm:$0xff]
    %v195 = vld [vmem:[#allocation5 + $0x370] sm:$0xff]
    %v196 = vld [vmem:[#allocation5 + $0x378] sm:$0xff]
    %v197 = vld [vmem:[#allocation5 + $0x380] sm:$0xff]
    %v198 = vld [vmem:[#allocation5 + $0x388] sm:$0xff]
    %v199 = vld [vmem:[#allocation5 + $0x390] sm:$0xff]
    %v200 = vld [vmem:[#allocation5 + $0x398] sm:$0xff]
    %v201 = vld [vmem:[#allocation5 + $0x3a0] sm:$0xff]
    %v202 = vld [vmem:[#allocation5 + $0x3a8] sm:$0xff]
    %v203 = vld [vmem:[#allocation5 + $0x3b0] sm:$0xff]
    %v204 = vld [vmem:[#allocation5 + $0x3b8] sm:$0xff]
    %v205 = vld [vmem:[#allocation5 + $0x3c0] sm:$0xff]
    %v206 = vld [vmem:[#allocation5 + $0x3c8] sm:$0xff]
    %v207 = vld [vmem:[#allocation5 + $0x3d0] sm:$0xff]
    %v208 = vld [vmem:[#allocation5 + $0x3d8] sm:$0xff]
    %v209 = vld [vmem:[#allocation5 + $0x3e0] sm:$0xff]
    %v210 = vld [vmem:[#allocation5 + $0x3e8] sm:$0xff]
    %v211 = vld [vmem:[#allocation5 + $0x3f0] sm:$0xff]
    %v212 = vld [vmem:[#allocation5 + $0x3f8] sm:$0xff]
    %v213 = vld [vmem:[#allocation5 + $0x400] sm:$0xff]
    %v214 = vld [vmem:[#allocation5 + $0x408] sm:$0xff]
    %v215 = vld [vmem:[#allocation5 + $0x410] sm:$0xff]
    %v216 = vld [vmem:[#allocation5 + $0x418] sm:$0xff]
    %v217 = vld [vmem:[#allocation5 + $0x420] sm:$0xff]
    %v218 = vld [vmem:[#allocation5 + $0x428] sm:$0xff]
    %v219 = vld [vmem:[#allocation5 + $0x430] sm:$0xff]
    %v220 = vld [vmem:[#allocation5 + $0x438] sm:$0xff]
    %v221 = vld [vmem:[#allocation5 + $0x440] sm:$0xff]
    %v222 = vld [vmem:[#allocation5 + $0x448] sm:$0xff]
    %v223 = vld [vmem:[#allocation5 + $0x450] sm:$0xff]
    %v224 = vld [vmem:[#allocation5 + $0x458] sm:$0xff]
    %v225 = vld [vmem:[#allocation5 + $0x460] sm:$0xff]
    %v226 = vld [vmem:[#allocation5 + $0x468] sm:$0xff]
    %v227 = vld [vmem:[#allocation5 + $0x470] sm:$0xff]
    %v228 = vld [vmem:[#allocation5 + $0x478] sm:$0xff]
    %v229 = vld [vmem:[#allocation5 + $0x480] sm:$0xff]
    %v230 = vld [vmem:[#allocation5 + $0x488] sm:$0xff]
    %v231 = vld [vmem:[#allocation5 + $0x490] sm:$0xff]
    %v232 = vld [vmem:[#allocation5 + $0x498] sm:$0xff]
    %v233 = vld [vmem:[#allocation5 + $0x4a0] sm:$0xff]
    %v234 = vld [vmem:[#allocation5 + $0x4a8] sm:$0xff]
    %v235 = vld [vmem:[#allocation5 + $0x4b0] sm:$0xff]
    %v236 = vld [vmem:[#allocation5 + $0x4b8] sm:$0xff]
    %v237 = vld [vmem:[#allocation5 + $0x4c0] sm:$0xff]
    %v238 = vld [vmem:[#allocation5 + $0x4c8] sm:$0xff]
    %v239 = vld [vmem:[#allocation5 + $0x4d0] sm:$0xff]
    %v240 = vld [vmem:[#allocation5 + $0x4d8] sm:$0xff]
    %v241 = vld [vmem:[#allocation5 + $0x4e0] sm:$0xff]
    %v242 = vld [vmem:[#allocation5 + $0x4e8] sm:$0xff]
    %v243 = vld [vmem:[#allocation5 + $0x4f0] sm:$0xff]
    %v244 = vld [vmem:[#allocation5 + $0x4f8] sm:$0xff]
    %v245 = vld [vmem:[#allocation5 + $0x500] sm:$0xff]
    %v246 = vld [vmem:[#allocation5 + $0x508] sm:$0xff]
    %v247 = vld [vmem:[#allocation5 + $0x510] sm:$0xff]
    %v248 = vld [vmem:[#allocation5 + $0x518] sm:$0xff]
    %v249 = vld [vmem:[#allocation5 + $0x520] sm:$0xff]
    %v250 = vld [vmem:[#allocation5 + $0x528] sm:$0xff]
    %v251 = vld [vmem:[#allocation5 + $0x530] sm:$0xff]
    %v252 = vld [vmem:[#allocation5 + $0x538] sm:$0xff]
    %v253 = vld [vmem:[#allocation5 + $0x540] sm:$0xff]
    %v254 = vld [vmem:[#allocation5 + $0x548] sm:$0xff]
    %v255 = vld [vmem:[#allocation5 + $0x550] sm:$0xff]
    %v256 = vld [vmem:[#allocation5 + $0x558] sm:$0xff]
    %v257 = vld [vmem:[#allocation5 + $0x560] sm:$0xff]
    %v258 = vld [vmem:[#allocation5 + $0x568] sm:$0xff]
    %v259 = vld [vmem:[#allocation5 + $0x570] sm:$0xff]
    %v260 = vld [vmem:[#allocation5 + $0x578] sm:$0xff]
    %v261 = vld [vmem:[#allocation5 + $0x580] sm:$0xff]
    %v262 = vld [vmem:[#allocation5 + $0x588] sm:$0xff]
    %v263 = vld [vmem:[#allocation5 + $0x590] sm:$0xff]
    %v264 = vld [vmem:[#allocation5 + $0x598] sm:$0xff]
    %v265 = vld [vmem:[#allocation5 + $0x5a0] sm:$0xff]
    %v266 = vld [vmem:[#allocation5 + $0x5a8] sm:$0xff]
    %v267 = vld [vmem:[#allocation5 + $0x5b0] sm:$0xff]
    %v268 = vld [vmem:[#allocation5 + $0x5b8] sm:$0xff]
    %v269 = vld [vmem:[#allocation5 + $0x5c0] sm:$0xff]
    %v270 = vld [vmem:[#allocation5 + $0x5c8] sm:$0xff]
    %v271 = vld [vmem:[#allocation5 + $0x5d0] sm:$0xff]
    %v272 = vld [vmem:[#allocation5 + $0x5d8] sm:$0xff]
    %v273 = vld [vmem:[#allocation5 + $0x5e0] sm:$0xff]
    %v274 = vld [vmem:[#allocation5 + $0x5e8] sm:$0xff]
    %v275 = vld [vmem:[#allocation5 + $0x5f0] sm:$0xff]
    %v276 = vld [vmem:[#allocation5 + $0x5f8] sm:$0xff]
    %v277 = vld [vmem:[#allocation7] sm:$0x3f]
    %v279 = vlaneseq
    %v280 = vshrl.u32 %v279, 7
    %v281 = vsub.s32 0, %v280
    %v282 = vrot.slane %v277, %v281
    %v283 = vlaneseq
    %v284 = vshrl.u32 %v283, 7
    %v285 = vsub.s32 1, %v284
    %v286 = vrot.slane %v277, %v285
    %v287 = vlaneseq
    %v288 = vshrl.u32 %v287, 7
    %v289 = vsub.s32 2, %v288
    %v290 = vrot.slane %v277, %v289
    %v291 = vlaneseq
    %v292 = vshrl.u32 %v291, 7
    %v293 = vsub.s32 3, %v292
    %v294 = vrot.slane %v277, %v293
    %v295 = vlaneseq
    %v296 = vshrl.u32 %v295, 7
    %v297 = vsub.s32 4, %v296
    %v298 = vrot.slane %v277, %v297
    %v299 = vlaneseq
    %v300 = vshrl.u32 %v299, 7
    %v301 = vsub.s32 5, %v300
    %v302 = vrot.slane %v277, %v301
    %v311 = vunpack.c.l.b16 %v83
    %v312 = vunpack.c.h.b16 %v83
    %v313 = vunpack.c.l.b16 %v84
    %v314 = vunpack.c.h.b16 %v84
    %v315 = vpack.c.b16 %v311, %v311
    %v316 = vpack.c.b16 %v312, %v312
    %v317 = vpack.c.b16 %v313, %v313
    %v318 = vpack.c.b16 %v314, %v314
    %v515 = vunpack.c.l.b16 %v85
    %v516 = vunpack.c.h.b16 %v85
    %v517 = vunpack.c.l.b16 %v86
    %v518 = vunpack.c.h.b16 %v86
    %v519 = vunpack.c.l.b16 %v87
    %v520 = vunpack.c.h.b16 %v87
    %v521 = vunpack.c.l.b16 %v88
    %v522 = vunpack.c.h.b16 %v88
    %v523 = vunpack.c.l.b16 %v89
    %v524 = vunpack.c.h.b16 %v89
    %v525 = vunpack.c.l.b16 %v90
    %v526 = vunpack.c.h.b16 %v90
    %v527 = vunpack.c.l.b16 %v91
    %v528 = vunpack.c.h.b16 %v91
    %v529 = vunpack.c.l.b16 %v92
    %v530 = vunpack.c.h.b16 %v92
    %v531 = vunpack.c.l.b16 %v93
    %v532 = vunpack.c.h.b16 %v93
    %v533 = vunpack.c.l.b16 %v94
    %v534 = vunpack.c.h.b16 %v94
    %v535 = vunpack.c.l.b16 %v95
    %v536 = vunpack.c.h.b16 %v95
    %v537 = vunpack.c.l.b16 %v96
    %v538 = vunpack.c.h.b16 %v96
    %v539 = vunpack.c.l.b16 %v97
    %v540 = vunpack.c.h.b16 %v97
    %v541 = vunpack.c.l.b16 %v98
    %v542 = vunpack.c.h.b16 %v98
    %v543 = vunpack.c.l.b16 %v99
    %v544 = vunpack.c.h.b16 %v99
    %v545 = vunpack.c.l.b16 %v100
    %v546 = vunpack.c.h.b16 %v100
    %v547 = vunpack.c.l.b16 %v101
    %v548 = vunpack.c.h.b16 %v101
    %v549 = vunpack.c.l.b16 %v102
    %v550 = vunpack.c.h.b16 %v102
    %v551 = vunpack.c.l.b16 %v103
    %v552 = vunpack.c.h.b16 %v103
    %v553 = vunpack.c.l.b16 %v104
    %v554 = vunpack.c.h.b16 %v104
    %v555 = vunpack.c.l.b16 %v105
    %v556 = vunpack.c.h.b16 %v105
    %v557 = vunpack.c.l.b16 %v106
    %v558 = vunpack.c.h.b16 %v106
    %v559 = vunpack.c.l.b16 %v107
    %v560 = vunpack.c.h.b16 %v107
    %v561 = vunpack.c.l.b16 %v108
    %v562 = vunpack.c.h.b16 %v108
    %v563 = vunpack.c.l.b16 %v109
    %v564 = vunpack.c.h.b16 %v109
    %v565 = vunpack.c.l.b16 %v110
    %v566 = vunpack.c.h.b16 %v110
    %v567 = vunpack.c.l.b16 %v111
    %v568 = vunpack.c.h.b16 %v111
    %v569 = vunpack.c.l.b16 %v112
    %v570 = vunpack.c.h.b16 %v112
    %v571 = vunpack.c.l.b16 %v113
    %v572 = vunpack.c.h.b16 %v113
    %v573 = vunpack.c.l.b16 %v114
    %v574 = vunpack.c.h.b16 %v114
    %v575 = vunpack.c.l.b16 %v115
    %v576 = vunpack.c.h.b16 %v115
    %v577 = vunpack.c.l.b16 %v116
    %v578 = vunpack.c.h.b16 %v116
    %v579 = vunpack.c.l.b16 %v117
    %v580 = vunpack.c.h.b16 %v117
    %v581 = vunpack.c.l.b16 %v118
    %v582 = vunpack.c.h.b16 %v118
    %v583 = vunpack.c.l.b16 %v119
    %v584 = vunpack.c.h.b16 %v119
    %v585 = vunpack.c.l.b16 %v120
    %v586 = vunpack.c.h.b16 %v120
    %v587 = vunpack.c.l.b16 %v121
    %v588 = vunpack.c.h.b16 %v121
    %v589 = vunpack.c.l.b16 %v122
    %v590 = vunpack.c.h.b16 %v122
    %v591 = vunpack.c.l.b16 %v123
    %v592 = vunpack.c.h.b16 %v123
    %v593 = vunpack.c.l.b16 %v124
    %v594 = vunpack.c.h.b16 %v124
    %v595 = vunpack.c.l.b16 %v125
    %v596 = vunpack.c.h.b16 %v125
    %v597 = vunpack.c.l.b16 %v126
    %v598 = vunpack.c.h.b16 %v126
    %v599 = vunpack.c.l.b16 %v127
    %v600 = vunpack.c.h.b16 %v127
    %v601 = vunpack.c.l.b16 %v128
    %v602 = vunpack.c.h.b16 %v128
    %v603 = vunpack.c.l.b16 %v129
    %v604 = vunpack.c.h.b16 %v129
    %v605 = vunpack.c.l.b16 %v130
    %v606 = vunpack.c.h.b16 %v130
    %v607 = vunpack.c.l.b16 %v131
    %v608 = vunpack.c.h.b16 %v131
    %v609 = vunpack.c.l.b16 %v132
    %v610 = vunpack.c.h.b16 %v132
    %v611 = vunpack.c.l.b16 %v133
    %v612 = vunpack.c.h.b16 %v133
    %v613 = vunpack.c.l.b16 %v134
    %v614 = vunpack.c.h.b16 %v134
    %v615 = vunpack.c.l.b16 %v135
    %v616 = vunpack.c.h.b16 %v135
    %v617 = vunpack.c.l.b16 %v136
    %v618 = vunpack.c.h.b16 %v136
    %v619 = vunpack.c.l.b16 %v137
    %v620 = vunpack.c.h.b16 %v137
    %v621 = vunpack.c.l.b16 %v138
    %v622 = vunpack.c.h.b16 %v138
    %v623 = vunpack.c.l.b16 %v139
    %v624 = vunpack.c.h.b16 %v139
    %v625 = vunpack.c.l.b16 %v140
    %v626 = vunpack.c.h.b16 %v140
    %v627 = vunpack.c.l.b16 %v141
    %v628 = vunpack.c.h.b16 %v141
    %v629 = vunpack.c.l.b16 %v142
    %v630 = vunpack.c.h.b16 %v142
    %v631 = vunpack.c.l.b16 %v143
    %v632 = vunpack.c.h.b16 %v143
    %v633 = vunpack.c.l.b16 %v144
    %v634 = vunpack.c.h.b16 %v144
    %v635 = vunpack.c.l.b16 %v145
    %v636 = vunpack.c.h.b16 %v145
    %v637 = vunpack.c.l.b16 %v146
    %v638 = vunpack.c.h.b16 %v146
    %v639 = vunpack.c.l.b16 %v147
    %v640 = vunpack.c.h.b16 %v147
    %v641 = vunpack.c.l.b16 %v148
    %v642 = vunpack.c.h.b16 %v148
    %v643 = vunpack.c.l.b16 %v149
    %v644 = vunpack.c.h.b16 %v149
    %v645 = vunpack.c.l.b16 %v150
    %v646 = vunpack.c.h.b16 %v150
    %v647 = vunpack.c.l.b16 %v151
    %v648 = vunpack.c.h.b16 %v151
    %v649 = vunpack.c.l.b16 %v152
    %v650 = vunpack.c.h.b16 %v152
    %v651 = vunpack.c.l.b16 %v153
    %v652 = vunpack.c.h.b16 %v153
    %v653 = vunpack.c.l.b16 %v154
    %v654 = vunpack.c.h.b16 %v154
    %v655 = vunpack.c.l.b16 %v155
    %v656 = vunpack.c.h.b16 %v155
    %v657 = vunpack.c.l.b16 %v156
    %v658 = vunpack.c.h.b16 %v156
    %v659 = vunpack.c.l.b16 %v157
    %v660 = vunpack.c.h.b16 %v157
    %v661 = vunpack.c.l.b16 %v158
    %v662 = vunpack.c.h.b16 %v158
    %v663 = vunpack.c.l.b16 %v159
    %v664 = vunpack.c.h.b16 %v159
    %v665 = vunpack.c.l.b16 %v160
    %v666 = vunpack.c.h.b16 %v160
    %v667 = vunpack.c.l.b16 %v161
    %v668 = vunpack.c.h.b16 %v161
    %v669 = vunpack.c.l.b16 %v162
    %v670 = vunpack.c.h.b16 %v162
    %v671 = vunpack.c.l.b16 %v163
    %v672 = vunpack.c.h.b16 %v163
    %v673 = vunpack.c.l.b16 %v164
    %v674 = vunpack.c.h.b16 %v164
    %v675 = vunpack.c.l.b16 %v165
    %v676 = vunpack.c.h.b16 %v165
    %v677 = vunpack.c.l.b16 %v166
    %v678 = vunpack.c.h.b16 %v166
    %v679 = vunpack.c.l.b16 %v167
    %v680 = vunpack.c.h.b16 %v167
    %v681 = vunpack.c.l.b16 %v168
    %v682 = vunpack.c.h.b16 %v168
    %v683 = vunpack.c.l.b16 %v169
    %v684 = vunpack.c.h.b16 %v169
    %v685 = vunpack.c.l.b16 %v170
    %v686 = vunpack.c.h.b16 %v170
    %v687 = vunpack.c.l.b16 %v171
    %v688 = vunpack.c.h.b16 %v171
    %v689 = vunpack.c.l.b16 %v172
    %v690 = vunpack.c.h.b16 %v172
    %v691 = vunpack.c.l.b16 %v173
    %v692 = vunpack.c.h.b16 %v173
    %v693 = vunpack.c.l.b16 %v174
    %v694 = vunpack.c.h.b16 %v174
    %v695 = vunpack.c.l.b16 %v175
    %v696 = vunpack.c.h.b16 %v175
    %v697 = vunpack.c.l.b16 %v176
    %v698 = vunpack.c.h.b16 %v176
    %v699 = vunpack.c.l.b16 %v177
    %v700 = vunpack.c.h.b16 %v177
    %v701 = vunpack.c.l.b16 %v178
    %v702 = vunpack.c.h.b16 %v178
    %v703 = vunpack.c.l.b16 %v179
    %v704 = vunpack.c.h.b16 %v179
    %v705 = vunpack.c.l.b16 %v180
    %v706 = vunpack.c.h.b16 %v180
    %v707 = vunpack.c.l.b16 %v181
    %v708 = vunpack.c.h.b16 %v181
    %v709 = vunpack.c.l.b16 %v182
    %v710 = vunpack.c.h.b16 %v182
    %v711 = vunpack.c.l.b16 %v183
    %v712 = vunpack.c.h.b16 %v183
    %v713 = vunpack.c.l.b16 %v184
    %v714 = vunpack.c.h.b16 %v184
    %v715 = vunpack.c.l.b16 %v185
    %v716 = vunpack.c.h.b16 %v185
    %v717 = vunpack.c.l.b16 %v186
    %v718 = vunpack.c.h.b16 %v186
    %v719 = vunpack.c.l.b16 %v187
    %v720 = vunpack.c.h.b16 %v187
    %v721 = vunpack.c.l.b16 %v188
    %v722 = vunpack.c.h.b16 %v188
    %v723 = vunpack.c.l.b16 %v189
    %v724 = vunpack.c.h.b16 %v189
    %v725 = vunpack.c.l.b16 %v190
    %v726 = vunpack.c.h.b16 %v190
    %v727 = vunpack.c.l.b16 %v191
    %v728 = vunpack.c.h.b16 %v191
    %v729 = vunpack.c.l.b16 %v192
    %v730 = vunpack.c.h.b16 %v192
    %v731 = vunpack.c.l.b16 %v193
    %v732 = vunpack.c.h.b16 %v193
    %v733 = vunpack.c.l.b16 %v194
    %v734 = vunpack.c.h.b16 %v194
    %v735 = vunpack.c.l.b16 %v195
    %v736 = vunpack.c.h.b16 %v195
    %v737 = vunpack.c.l.b16 %v196
    %v738 = vunpack.c.h.b16 %v196
    %v739 = vunpack.c.l.b16 %v197
    %v740 = vunpack.c.h.b16 %v197
    %v741 = vunpack.c.l.b16 %v198
    %v742 = vunpack.c.h.b16 %v198
    %v743 = vunpack.c.l.b16 %v199
    %v744 = vunpack.c.h.b16 %v199
    %v745 = vunpack.c.l.b16 %v200
    %v746 = vunpack.c.h.b16 %v200
    %v747 = vunpack.c.l.b16 %v201
    %v748 = vunpack.c.h.b16 %v201
    %v749 = vunpack.c.l.b16 %v202
    %v750 = vunpack.c.h.b16 %v202
    %v751 = vunpack.c.l.b16 %v203
    %v752 = vunpack.c.h.b16 %v203
    %v753 = vunpack.c.l.b16 %v204
    %v754 = vunpack.c.h.b16 %v204
    %v755 = vunpack.c.l.b16 %v205
    %v756 = vunpack.c.h.b16 %v205
    %v757 = vunpack.c.l.b16 %v206
    %v758 = vunpack.c.h.b16 %v206
    %v759 = vunpack.c.l.b16 %v207
    %v760 = vunpack.c.h.b16 %v207
    %v761 = vunpack.c.l.b16 %v208
    %v762 = vunpack.c.h.b16 %v208
    %v763 = vunpack.c.l.b16 %v209
    %v764 = vunpack.c.h.b16 %v209
    %v765 = vunpack.c.l.b16 %v210
    %v766 = vunpack.c.h.b16 %v210
    %v767 = vunpack.c.l.b16 %v211
    %v768 = vunpack.c.h.b16 %v211
    %v769 = vunpack.c.l.b16 %v212
    %v770 = vunpack.c.h.b16 %v212
    %v771 = vunpack.c.l.b16 %v213
    %v772 = vunpack.c.h.b16 %v213
    %v773 = vunpack.c.l.b16 %v214
    %v774 = vunpack.c.h.b16 %v214
    %v775 = vunpack.c.l.b16 %v215
    %v776 = vunpack.c.h.b16 %v215
    %v777 = vunpack.c.l.b16 %v216
    %v778 = vunpack.c.h.b16 %v216
    %v779 = vunpack.c.l.b16 %v217
    %v780 = vunpack.c.h.b16 %v217
    %v781 = vunpack.c.l.b16 %v218
    %v782 = vunpack.c.h.b16 %v218
    %v783 = vunpack.c.l.b16 %v219
    %v784 = vunpack.c.h.b16 %v219
    %v785 = vunpack.c.l.b16 %v220
    %v786 = vunpack.c.h.b16 %v220
    %v787 = vunpack.c.l.b16 %v221
    %v788 = vunpack.c.h.b16 %v221
    %v789 = vunpack.c.l.b16 %v222
    %v790 = vunpack.c.h.b16 %v222
    %v791 = vunpack.c.l.b16 %v223
    %v792 = vunpack.c.h.b16 %v223
    %v793 = vunpack.c.l.b16 %v224
    %v794 = vunpack.c.h.b16 %v224
    %v795 = vunpack.c.l.b16 %v225
    %v796 = vunpack.c.h.b16 %v225
    %v797 = vunpack.c.l.b16 %v226
    %v798 = vunpack.c.h.b16 %v226
    %v799 = vunpack.c.l.b16 %v227
    %v800 = vunpack.c.h.b16 %v227
    %v801 = vunpack.c.l.b16 %v228
    %v802 = vunpack.c.h.b16 %v228
    %v803 = vunpack.c.l.b16 %v229
    %v804 = vunpack.c.h.b16 %v229
    %v805 = vunpack.c.l.b16 %v230
    %v806 = vunpack.c.h.b16 %v230
    %v807 = vunpack.c.l.b16 %v231
    %v808 = vunpack.c.h.b16 %v231
    %v809 = vunpack.c.l.b16 %v232
    %v810 = vunpack.c.h.b16 %v232
    %v811 = vunpack.c.l.b16 %v233
    %v812 = vunpack.c.h.b16 %v233
    %v813 = vunpack.c.l.b16 %v234
    %v814 = vunpack.c.h.b16 %v234
    %v815 = vunpack.c.l.b16 %v235
    %v816 = vunpack.c.h.b16 %v235
    %v817 = vunpack.c.l.b16 %v236
    %v818 = vunpack.c.h.b16 %v236
    %v819 = vunpack.c.l.b16 %v237
    %v820 = vunpack.c.h.b16 %v237
    %v821 = vunpack.c.l.b16 %v238
    %v822 = vunpack.c.h.b16 %v238
    %v823 = vunpack.c.l.b16 %v239
    %v824 = vunpack.c.h.b16 %v239
    %v825 = vunpack.c.l.b16 %v240
    %v826 = vunpack.c.h.b16 %v240
    %v827 = vunpack.c.l.b16 %v241
    %v828 = vunpack.c.h.b16 %v241
    %v829 = vunpack.c.l.b16 %v242
    %v830 = vunpack.c.h.b16 %v242
    %v831 = vunpack.c.l.b16 %v243
    %v832 = vunpack.c.h.b16 %v243
    %v833 = vunpack.c.l.b16 %v244
    %v834 = vunpack.c.h.b16 %v244
    %v835 = vunpack.c.l.b16 %v245
    %v836 = vunpack.c.h.b16 %v245
    %v837 = vunpack.c.l.b16 %v246
    %v838 = vunpack.c.h.b16 %v246
    %v839 = vunpack.c.l.b16 %v247
    %v840 = vunpack.c.h.b16 %v247
    %v841 = vunpack.c.l.b16 %v248
    %v842 = vunpack.c.h.b16 %v248
    %v843 = vunpack.c.l.b16 %v249
    %v844 = vunpack.c.h.b16 %v249
    %v845 = vunpack.c.l.b16 %v250
    %v846 = vunpack.c.h.b16 %v250
    %v847 = vunpack.c.l.b16 %v251
    %v848 = vunpack.c.h.b16 %v251
    %v849 = vunpack.c.l.b16 %v252
    %v850 = vunpack.c.h.b16 %v252
    %v851 = vunpack.c.l.b16 %v253
    %v852 = vunpack.c.h.b16 %v253
    %v853 = vunpack.c.l.b16 %v254
    %v854 = vunpack.c.h.b16 %v254
    %v855 = vunpack.c.l.b16 %v255
    %v856 = vunpack.c.h.b16 %v255
    %v857 = vunpack.c.l.b16 %v256
    %v858 = vunpack.c.h.b16 %v256
    %v859 = vunpack.c.l.b16 %v257
    %v860 = vunpack.c.h.b16 %v257
    %v861 = vunpack.c.l.b16 %v258
    %v862 = vunpack.c.h.b16 %v258
    %v863 = vunpack.c.l.b16 %v259
    %v864 = vunpack.c.h.b16 %v259
    %v865 = vunpack.c.l.b16 %v260
    %v866 = vunpack.c.h.b16 %v260
    %v867 = vunpack.c.l.b16 %v261
    %v868 = vunpack.c.h.b16 %v261
    %v869 = vunpack.c.l.b16 %v262
    %v870 = vunpack.c.h.b16 %v262
    %v871 = vunpack.c.l.b16 %v263
    %v872 = vunpack.c.h.b16 %v263
    %v873 = vunpack.c.l.b16 %v264
    %v874 = vunpack.c.h.b16 %v264
    %v875 = vunpack.c.l.b16 %v265
    %v876 = vunpack.c.h.b16 %v265
    %v877 = vunpack.c.l.b16 %v266
    %v878 = vunpack.c.h.b16 %v266
    %v879 = vunpack.c.l.b16 %v267
    %v880 = vunpack.c.h.b16 %v267
    %v881 = vunpack.c.l.b16 %v268
    %v882 = vunpack.c.h.b16 %v268
    %v883 = vunpack.c.l.b16 %v269
    %v884 = vunpack.c.h.b16 %v269
    %v885 = vunpack.c.l.b16 %v270
    %v886 = vunpack.c.h.b16 %v270
    %v887 = vunpack.c.l.b16 %v271
    %v888 = vunpack.c.h.b16 %v271
    %v889 = vunpack.c.l.b16 %v272
    %v890 = vunpack.c.h.b16 %v272
    %v891 = vunpack.c.l.b16 %v273
    %v892 = vunpack.c.h.b16 %v273
    %v893 = vunpack.c.l.b16 %v274
    %v894 = vunpack.c.h.b16 %v274
    %v895 = vunpack.c.l.b16 %v275
    %v896 = vunpack.c.h.b16 %v275
    %v897 = vunpack.c.l.b16 %v276
    %v898 = vunpack.c.h.b16 %v276
    %v899 = vpack.c.b16 %v521, %v515
    %v900 = vpack.c.b16 %v522, %v516
    %v901 = vpack.c.b16 %v523, %v517
    %v902 = vpack.c.b16 %v524, %v518
    %v903 = vpack.c.b16 %v525, %v519
    %v904 = vpack.c.b16 %v526, %v520
    %v905 = vpack.c.b16 %v533, %v527
    %v906 = vpack.c.b16 %v534, %v528
    %v907 = vpack.c.b16 %v535, %v529
    %v908 = vpack.c.b16 %v536, %v530
    %v909 = vpack.c.b16 %v537, %v531
    %v910 = vpack.c.b16 %v538, %v532
    %v911 = vpack.c.b16 %v545, %v539
    %v912 = vpack.c.b16 %v546, %v540
    %v913 = vpack.c.b16 %v547, %v541
    %v914 = vpack.c.b16 %v548, %v542
    %v915 = vpack.c.b16 %v549, %v543
    %v916 = vpack.c.b16 %v550, %v544
    %v917 = vpack.c.b16 %v557, %v551
    %v918 = vpack.c.b16 %v558, %v552
    %v919 = vpack.c.b16 %v559, %v553
    %v920 = vpack.c.b16 %v560, %v554
    %v921 = vpack.c.b16 %v561, %v555
    %v922 = vpack.c.b16 %v562, %v556
    %v923 = vpack.c.b16 %v569, %v563
    %v924 = vpack.c.b16 %v570, %v564
    %v925 = vpack.c.b16 %v571, %v565
    %v926 = vpack.c.b16 %v572, %v566
    %v927 = vpack.c.b16 %v573, %v567
    %v928 = vpack.c.b16 %v574, %v568
    %v929 = vpack.c.b16 %v581, %v575
    %v930 = vpack.c.b16 %v582, %v576
    %v931 = vpack.c.b16 %v583, %v577
    %v932 = vpack.c.b16 %v584, %v578
    %v933 = vpack.c.b16 %v585, %v579
    %v934 = vpack.c.b16 %v586, %v580
    %v935 = vpack.c.b16 %v593, %v587
    %v936 = vpack.c.b16 %v594, %v588
    %v937 = vpack.c.b16 %v595, %v589
    %v938 = vpack.c.b16 %v596, %v590
    %v939 = vpack.c.b16 %v597, %v591
    %v940 = vpack.c.b16 %v598, %v592
    %v941 = vpack.c.b16 %v605, %v599
    %v942 = vpack.c.b16 %v606, %v600
    %v943 = vpack.c.b16 %v607, %v601
    %v944 = vpack.c.b16 %v608, %v602
    %v945 = vpack.c.b16 %v609, %v603
    %v946 = vpack.c.b16 %v610, %v604
    %v947 = vpack.c.b16 %v617, %v611
    %v948 = vpack.c.b16 %v618, %v612
    %v949 = vpack.c.b16 %v619, %v613
    %v950 = vpack.c.b16 %v620, %v614
    %v951 = vpack.c.b16 %v621, %v615
    %v952 = vpack.c.b16 %v622, %v616
    %v953 = vpack.c.b16 %v629, %v623
    %v954 = vpack.c.b16 %v630, %v624
    %v955 = vpack.c.b16 %v631, %v625
    %v956 = vpack.c.b16 %v632, %v626
    %v957 = vpack.c.b16 %v633, %v627
    %v958 = vpack.c.b16 %v634, %v628
    %v959 = vpack.c.b16 %v641, %v635
    %v960 = vpack.c.b16 %v642, %v636
    %v961 = vpack.c.b16 %v643, %v637
    %v962 = vpack.c.b16 %v644, %v638
    %v963 = vpack.c.b16 %v645, %v639
    %v964 = vpack.c.b16 %v646, %v640
    %v965 = vpack.c.b16 %v653, %v647
    %v966 = vpack.c.b16 %v654, %v648
    %v967 = vpack.c.b16 %v655, %v649
    %v968 = vpack.c.b16 %v656, %v650
    %v969 = vpack.c.b16 %v657, %v651
    %v970 = vpack.c.b16 %v658, %v652
    %v971 = vpack.c.b16 %v665, %v659
    %v972 = vpack.c.b16 %v666, %v660
    %v973 = vpack.c.b16 %v667, %v661
    %v974 = vpack.c.b16 %v668, %v662
    %v975 = vpack.c.b16 %v669, %v663
    %v976 = vpack.c.b16 %v670, %v664
    %v977 = vpack.c.b16 %v677, %v671
    %v978 = vpack.c.b16 %v678, %v672
    %v979 = vpack.c.b16 %v679, %v673
    %v980 = vpack.c.b16 %v680, %v674
    %v981 = vpack.c.b16 %v681, %v675
    %v982 = vpack.c.b16 %v682, %v676
    %v983 = vpack.c.b16 %v689, %v683
    %v984 = vpack.c.b16 %v690, %v684
    %v985 = vpack.c.b16 %v691, %v685
    %v986 = vpack.c.b16 %v692, %v686
    %v987 = vpack.c.b16 %v693, %v687
    %v988 = vpack.c.b16 %v694, %v688
    %v989 = vpack.c.b16 %v701, %v695
    %v990 = vpack.c.b16 %v702, %v696
    %v991 = vpack.c.b16 %v703, %v697
    %v992 = vpack.c.b16 %v704, %v698
    %v993 = vpack.c.b16 %v705, %v699
    %v994 = vpack.c.b16 %v706, %v700
    %v995 = vpack.c.b16 %v713, %v707
    %v996 = vpack.c.b16 %v714, %v708
    %v997 = vpack.c.b16 %v715, %v709
    %v998 = vpack.c.b16 %v716, %v710
    %v999 = vpack.c.b16 %v717, %v711
    %v1000 = vpack.c.b16 %v718, %v712
    %v1001 = vpack.c.b16 %v725, %v719
    %v1002 = vpack.c.b16 %v726, %v720
    %v1003 = vpack.c.b16 %v727, %v721
    %v1004 = vpack.c.b16 %v728, %v722
    %v1005 = vpack.c.b16 %v729, %v723
    %v1006 = vpack.c.b16 %v730, %v724
    %v1007 = vpack.c.b16 %v737, %v731
    %v1008 = vpack.c.b16 %v738, %v732
    %v1009 = vpack.c.b16 %v739, %v733
    %v1010 = vpack.c.b16 %v740, %v734
    %v1011 = vpack.c.b16 %v741, %v735
    %v1012 = vpack.c.b16 %v742, %v736
    %v1013 = vpack.c.b16 %v749, %v743
    %v1014 = vpack.c.b16 %v750, %v744
    %v1015 = vpack.c.b16 %v751, %v745
    %v1016 = vpack.c.b16 %v752, %v746
    %v1017 = vpack.c.b16 %v753, %v747
    %v1018 = vpack.c.b16 %v754, %v748
    %v1019 = vpack.c.b16 %v761, %v755
    %v1020 = vpack.c.b16 %v762, %v756
    %v1021 = vpack.c.b16 %v763, %v757
    %v1022 = vpack.c.b16 %v764, %v758
    %v1023 = vpack.c.b16 %v765, %v759
    %v1024 = vpack.c.b16 %v766, %v760
    %v1025 = vpack.c.b16 %v773, %v767
    %v1026 = vpack.c.b16 %v774, %v768
    %v1027 = vpack.c.b16 %v775, %v769
    %v1028 = vpack.c.b16 %v776, %v770
    %v1029 = vpack.c.b16 %v777, %v771
    %v1030 = vpack.c.b16 %v778, %v772
    %v1031 = vpack.c.b16 %v785, %v779
    %v1032 = vpack.c.b16 %v786, %v780
    %v1033 = vpack.c.b16 %v787, %v781
    %v1034 = vpack.c.b16 %v788, %v782
    %v1035 = vpack.c.b16 %v789, %v783
    %v1036 = vpack.c.b16 %v790, %v784
    %v1037 = vpack.c.b16 %v797, %v791
    %v1038 = vpack.c.b16 %v798, %v792
    %v1039 = vpack.c.b16 %v799, %v793
    %v1040 = vpack.c.b16 %v800, %v794
    %v1041 = vpack.c.b16 %v801, %v795
    %v1042 = vpack.c.b16 %v802, %v796
    %v1043 = vpack.c.b16 %v809, %v803
    %v1044 = vpack.c.b16 %v810, %v804
    %v1045 = vpack.c.b16 %v811, %v805
    %v1046 = vpack.c.b16 %v812, %v806
    %v1047 = vpack.c.b16 %v813, %v807
    %v1048 = vpack.c.b16 %v814, %v808
    %v1049 = vpack.c.b16 %v821, %v815
    %v1050 = vpack.c.b16 %v822, %v816
    %v1051 = vpack.c.b16 %v823, %v817
    %v1052 = vpack.c.b16 %v824, %v818
    %v1053 = vpack.c.b16 %v825, %v819
    %v1054 = vpack.c.b16 %v826, %v820
    %v1055 = vpack.c.b16 %v833, %v827
    %v1056 = vpack.c.b16 %v834, %v828
    %v1057 = vpack.c.b16 %v835, %v829
    %v1058 = vpack.c.b16 %v836, %v830
    %v1059 = vpack.c.b16 %v837, %v831
    %v1060 = vpack.c.b16 %v838, %v832
    %v1061 = vpack.c.b16 %v845, %v839
    %v1062 = vpack.c.b16 %v846, %v840
    %v1063 = vpack.c.b16 %v847, %v841
    %v1064 = vpack.c.b16 %v848, %v842
    %v1065 = vpack.c.b16 %v849, %v843
    %v1066 = vpack.c.b16 %v850, %v844
    %v1067 = vpack.c.b16 %v857, %v851
    %v1068 = vpack.c.b16 %v858, %v852
    %v1069 = vpack.c.b16 %v859, %v853
    %v1070 = vpack.c.b16 %v860, %v854
    %v1071 = vpack.c.b16 %v861, %v855
    %v1072 = vpack.c.b16 %v862, %v856
    %v1073 = vpack.c.b16 %v869, %v863
    %v1074 = vpack.c.b16 %v870, %v864
    %v1075 = vpack.c.b16 %v871, %v865
    %v1076 = vpack.c.b16 %v872, %v866
    %v1077 = vpack.c.b16 %v873, %v867
    %v1078 = vpack.c.b16 %v874, %v868
    %v1079 = vpack.c.b16 %v881, %v875
    %v1080 = vpack.c.b16 %v882, %v876
    %v1081 = vpack.c.b16 %v883, %v877
    %v1082 = vpack.c.b16 %v884, %v878
    %v1083 = vpack.c.b16 %v885, %v879
    %v1084 = vpack.c.b16 %v886, %v880
    %v1085 = vpack.c.b16 %v893, %v887
    %v1086 = vpack.c.b16 %v894, %v888
    %v1087 = vpack.c.b16 %v895, %v889
    %v1088 = vpack.c.b16 %v896, %v890
    %v1089 = vpack.c.b16 %v897, %v891
    %v1090 = vpack.c.b16 %v898, %v892
    %1283 = vmatprep.subr.bf16.mxu0 %v942
    %1284 = vmatpush1.bf16.msra.mxu0 %v941
    %1285 = vmatprep.subr.bf16.mxu0 %v936
    %1286 = vmatpush1.bf16.msra.mxu0 %v935
    %1287 = vmatprep.subr.bf16.mxu0 %v930
    %1288 = vmatpush1.bf16.msra.mxu0 %v929
    %1289 = vmatprep.subr.bf16.mxu0 %v924
    %1290 = vmatpush1.bf16.msra.mxu0 %v923
    %1291 = vmatprep.subr.bf16.mxu0 %v918
    %1292 = vmatpush1.bf16.msra.mxu0 %v917
    %1293 = vmatprep.subr.bf16.mxu0 %v912
    %1294 = vmatpush1.bf16.msra.mxu0 %v911
    %1295 = vmatprep.subr.bf16.mxu0 %v906
    %1296 = vmatpush1.bf16.msra.mxu0 %v905
    %1297 = vmatprep.subr.bf16.mxu0 %v900
    %1298 = vmatpush1.bf16.msra.mxu0 %v899
    %1299 = vmatprep.subr.bf16.mxu0 %v990
    %1300 = vmatpush2.bf16.msra.mxu0 %v989
    %1301 = vmatprep.subr.bf16.mxu0 %v984
    %1302 = vmatpush2.bf16.msra.mxu0 %v983
    %1303 = vmatprep.subr.bf16.mxu0 %v978
    %1304 = vmatpush2.bf16.msra.mxu0 %v977
    %1305 = vmatprep.subr.bf16.mxu0 %v972
    %1306 = vmatpush2.bf16.msra.mxu0 %v971
    %1307 = vmatprep.subr.bf16.mxu0 %v966
    %1308 = vmatpush2.bf16.msra.mxu0 %v965
    %1309 = vmatprep.subr.bf16.mxu0 %v960
    %1310 = vmatpush2.bf16.msra.mxu0 %v959
    %1311 = vmatprep.subr.bf16.mxu0 %v954
    %1312 = vmatpush2.bf16.msra.mxu0 %v953
    %1313 = vmatprep.subr.bf16.mxu0 %v948
    %1314 = vmatpush2.bf16.msra.mxu0 %v947
    %1315 = vmatprep.mubr.bf16.mxu0 %v316
    %1316 = vmatmul.mubr.bf16.gmra.mxu0 %v315
    %v1317 = vpop.f32.mrf.mxu0
    %v1318 = vadd.f32 %v282, %v1317
    %v1319 = vpop.f32.mrf.mxu0
    %v1320 = vadd.f32 %v286, %v1319
    %v1321 = vpop.f32.mrf.mxu0
    %v1322 = vpop.f32.mrf.mxu0
    %1323 = vdwg.mxu0
    %1324 = vmatprep.subr.bf16.mxu0 %v1038
    %1325 = vmatpush1.bf16.msra.mxu0 %v1037
    %1326 = vmatprep.subr.bf16.mxu0 %v1032
    %1327 = vmatpush1.bf16.msra.mxu0 %v1031
    %1328 = vmatprep.subr.bf16.mxu0 %v1026
    %1329 = vmatpush1.bf16.msra.mxu0 %v1025
    %1330 = vmatprep.subr.bf16.mxu0 %v1020
    %1331 = vmatpush1.bf16.msra.mxu0 %v1019
    %1332 = vmatprep.subr.bf16.mxu0 %v1014
    %1333 = vmatpush1.bf16.msra.mxu0 %v1013
    %1334 = vmatprep.subr.bf16.mxu0 %v1008
    %1335 = vmatpush1.bf16.msra.mxu0 %v1007
    %1336 = vmatprep.subr.bf16.mxu0 %v1002
    %1337 = vmatpush1.bf16.msra.mxu0 %v1001
    %1338 = vmatprep.subr.bf16.mxu0 %v996
    %1339 = vmatpush1.bf16.msra.mxu0 %v995
    %1340 = vmatprep.subr.bf16.mxu0 %v1086
    %1341 = vmatpush2.bf16.msra.mxu0 %v1085
    %1342 = vmatprep.subr.bf16.mxu0 %v1080
    %1343 = vmatpush2.bf16.msra.mxu0 %v1079
    %1344 = vmatprep.subr.bf16.mxu0 %v1074
    %1345 = vmatpush2.bf16.msra.mxu0 %v1073
    %1346 = vmatprep.subr.bf16.mxu0 %v1068
    %1347 = vmatpush2.bf16.msra.mxu0 %v1067
    %1348 = vmatprep.subr.bf16.mxu0 %v1062
    %1349 = vmatpush2.bf16.msra.mxu0 %v1061
    %1350 = vmatprep.subr.bf16.mxu0 %v1056
    %1351 = vmatpush2.bf16.msra.mxu0 %v1055
    %1352 = vmatprep.subr.bf16.mxu0 %v1050
    %1353 = vmatpush2.bf16.msra.mxu0 %v1049
    %1354 = vmatprep.subr.bf16.mxu0 %v1044
    %1355 = vmatpush2.bf16.msra.mxu0 %v1043
    %1356 = vmatprep.mubr.bf16.mxu0 %v318
    %1357 = vmatmul.mubr.bf16.gmra.mxu0 %v317
    %v1358 = vpop.f32.mrf.mxu0
    %v1359 = vadd.f32 %v1318, %v1358
    %v1360 = vpop.f32.mrf.mxu0
    %v1361 = vadd.f32 %v1320, %v1360
    %v1362 = vpop.f32.mrf.mxu0
    %v1363 = vpop.f32.mrf.mxu0
    %1364 = vdwg.mxu0
    %1365 = vmatprep.subr.bf16.mxu0 %v944
    %1366 = vmatpush1.bf16.msra.mxu0 %v943
    %1367 = vmatprep.subr.bf16.mxu0 %v938
    %1368 = vmatpush1.bf16.msra.mxu0 %v937
    %1369 = vmatprep.subr.bf16.mxu0 %v932
    %1370 = vmatpush1.bf16.msra.mxu0 %v931
    %1371 = vmatprep.subr.bf16.mxu0 %v926
    %1372 = vmatpush1.bf16.msra.mxu0 %v925
    %1373 = vmatprep.subr.bf16.mxu0 %v920
    %1374 = vmatpush1.bf16.msra.mxu0 %v919
    %1375 = vmatprep.subr.bf16.mxu0 %v914
    %1376 = vmatpush1.bf16.msra.mxu0 %v913
    %1377 = vmatprep.subr.bf16.mxu0 %v908
    %1378 = vmatpush1.bf16.msra.mxu0 %v907
    %1379 = vmatprep.subr.bf16.mxu0 %v902
    %1380 = vmatpush1.bf16.msra.mxu0 %v901
    %1381 = vmatprep.subr.bf16.mxu0 %v992
    %1382 = vmatpush2.bf16.msra.mxu0 %v991
    %1383 = vmatprep.subr.bf16.mxu0 %v986
    %1384 = vmatpush2.bf16.msra.mxu0 %v985
    %1385 = vmatprep.subr.bf16.mxu0 %v980
    %1386 = vmatpush2.bf16.msra.mxu0 %v979
    %1387 = vmatprep.subr.bf16.mxu0 %v974
    %1388 = vmatpush2.bf16.msra.mxu0 %v973
    %1389 = vmatprep.subr.bf16.mxu0 %v968
    %1390 = vmatpush2.bf16.msra.mxu0 %v967
    %1391 = vmatprep.subr.bf16.mxu0 %v962
    %1392 = vmatpush2.bf16.msra.mxu0 %v961
    %1393 = vmatprep.subr.bf16.mxu0 %v956
    %1394 = vmatpush2.bf16.msra.mxu0 %v955
    %1395 = vmatprep.subr.bf16.mxu0 %v950
    %1396 = vmatpush2.bf16.msra.mxu0 %v949
    %1397 = vmatprep.mubr.bf16.mxu0 %v316
    %1398 = vmatmul.mubr.bf16.gmra.mxu0 %v315
    %v1399 = vpop.f32.mrf.mxu0
    %v1400 = vadd.f32 %v290, %v1399
    %v1401 = vpop.f32.mrf.mxu0
    %v1402 = vadd.f32 %v294, %v1401
    %v1403 = vpop.f32.mrf.mxu0
    %v1404 = vpop.f32.mrf.mxu0
    %1405 = vdwg.mxu0
    %1406 = vmatprep.subr.bf16.mxu0 %v1040
    %1407 = vmatpush1.bf16.msra.mxu0 %v1039
    %1408 = vmatprep.subr.bf16.mxu0 %v1034
    %1409 = vmatpush1.bf16.msra.mxu0 %v1033
    %1410 = vmatprep.subr.bf16.mxu0 %v1028
    %1411 = vmatpush1.bf16.msra.mxu0 %v1027
    %1412 = vmatprep.subr.bf16.mxu0 %v1022
    %1413 = vmatpush1.bf16.msra.mxu0 %v1021
    %1414 = vmatprep.subr.bf16.mxu0 %v1016
    %1415 = vmatpush1.bf16.msra.mxu0 %v1015
    %1416 = vmatprep.subr.bf16.mxu0 %v1010
    %1417 = vmatpush1.bf16.msra.mxu0 %v1009
    %1418 = vmatprep.subr.bf16.mxu0 %v1004
    %1419 = vmatpush1.bf16.msra.mxu0 %v1003
    %1420 = vmatprep.subr.bf16.mxu0 %v998
    %1421 = vmatpush1.bf16.msra.mxu0 %v997
    %1422 = vmatprep.subr.bf16.mxu0 %v1088
    %1423 = vmatpush2.bf16.msra.mxu0 %v1087
    %1424 = vmatprep.subr.bf16.mxu0 %v1082
    %1425 = vmatpush2.bf16.msra.mxu0 %v1081
    %1426 = vmatprep.subr.bf16.mxu0 %v1076
    %1427 = vmatpush2.bf16.msra.mxu0 %v1075
    %1428 = vmatprep.subr.bf16.mxu0 %v1070
    %1429 = vmatpush2.bf16.msra.mxu0 %v1069
    %1430 = vmatprep.subr.bf16.mxu0 %v1064
    %1431 = vmatpush2.bf16.msra.mxu0 %v1063
    %1432 = vmatprep.subr.bf16.mxu0 %v1058
    %1433 = vmatpush2.bf16.msra.mxu0 %v1057
    %1434 = vmatprep.subr.bf16.mxu0 %v1052
    %1435 = vmatpush2.bf16.msra.mxu0 %v1051
    %1436 = vmatprep.subr.bf16.mxu0 %v1046
    %1437 = vmatpush2.bf16.msra.mxu0 %v1045
    %1438 = vmatprep.mubr.bf16.mxu0 %v318
    %1439 = vmatmul.mubr.bf16.gmra.mxu0 %v317
    %v1440 = vpop.f32.mrf.mxu0
    %v1441 = vadd.f32 %v1400, %v1440
    %v1442 = vpop.f32.mrf.mxu0
    %v1443 = vadd.f32 %v1402, %v1442
    %v1444 = vpop.f32.mrf.mxu0
    %v1445 = vpop.f32.mrf.mxu0
    %1446 = vdwg.mxu0
    %1447 = vmatprep.subr.bf16.mxu0 %v946
    %1448 = vmatpush1.bf16.msra.mxu0 %v945
    %1449 = vmatprep.subr.bf16.mxu0 %v940
    %1450 = vmatpush1.bf16.msra.mxu0 %v939
    %1451 = vmatprep.subr.bf16.mxu0 %v934
    %1452 = vmatpush1.bf16.msra.mxu0 %v933
    %1453 = vmatprep.subr.bf16.mxu0 %v928
    %1454 = vmatpush1.bf16.msra.mxu0 %v927
    %1455 = vmatprep.subr.bf16.mxu0 %v922
    %1456 = vmatpush1.bf16.msra.mxu0 %v921
    %1457 = vmatprep.subr.bf16.mxu0 %v916
    %1458 = vmatpush1.bf16.msra.mxu0 %v915
    %1459 = vmatprep.subr.bf16.mxu0 %v910
    %1460 = vmatpush1.bf16.msra.mxu0 %v909
    %1461 = vmatprep.subr.bf16.mxu0 %v904
    %1462 = vmatpush1.bf16.msra.mxu0 %v903
    %1463 = vmatprep.subr.bf16.mxu0 %v994
    %1464 = vmatpush2.bf16.msra.mxu0 %v993
    %1465 = vmatprep.subr.bf16.mxu0 %v988
    %1466 = vmatpush2.bf16.msra.mxu0 %v987
    %1467 = vmatprep.subr.bf16.mxu0 %v982
    %1468 = vmatpush2.bf16.msra.mxu0 %v981
    %1469 = vmatprep.subr.bf16.mxu0 %v976
    %1470 = vmatpush2.bf16.msra.mxu0 %v975
    %1471 = vmatprep.subr.bf16.mxu0 %v970
    %1472 = vmatpush2.bf16.msra.mxu0 %v969
    %1473 = vmatprep.subr.bf16.mxu0 %v964
    %1474 = vmatpush2.bf16.msra.mxu0 %v963
    %1475 = vmatprep.subr.bf16.mxu0 %v958
    %1476 = vmatpush2.bf16.msra.mxu0 %v957
    %1477 = vmatprep.subr.bf16.mxu0 %v952
    %1478 = vmatpush2.bf16.msra.mxu0 %v951
    %1479 = vmatprep.mubr.bf16.mxu0 %v316
    %1480 = vmatmul.mubr.bf16.gmra.mxu0 %v315
    %v1481 = vpop.f32.mrf.mxu0
    %v1482 = vadd.f32 %v298, %v1481
    %v1483 = vpop.f32.mrf.mxu0
    %v1484 = vadd.f32 %v302, %v1483
    %v1485 = vpop.f32.mrf.mxu0
    %v1486 = vpop.f32.mrf.mxu0
    %1487 = vdwg.mxu0
    %1488 = vmatprep.subr.bf16.mxu0 %v1042
    %1489 = vmatpush1.bf16.msra.mxu0 %v1041
    %1490 = vmatprep.subr.bf16.mxu0 %v1036
    %1491 = vmatpush1.bf16.msra.mxu0 %v1035
    %1492 = vmatprep.subr.bf16.mxu0 %v1030
    %1493 = vmatpush1.bf16.msra.mxu0 %v1029
    %1494 = vmatprep.subr.bf16.mxu0 %v1024
    %1495 = vmatpush1.bf16.msra.mxu0 %v1023
    %1496 = vmatprep.subr.bf16.mxu0 %v1018
    %1497 = vmatpush1.bf16.msra.mxu0 %v1017
    %1498 = vmatprep.subr.bf16.mxu0 %v1012
    %1499 = vmatpush1.bf16.msra.mxu0 %v1011
    %1500 = vmatprep.subr.bf16.mxu0 %v1006
    %1501 = vmatpush1.bf16.msra.mxu0 %v1005
    %1502 = vmatprep.subr.bf16.mxu0 %v1000
    %1503 = vmatpush1.bf16.msra.mxu0 %v999
    %1504 = vmatprep.subr.bf16.mxu0 %v1090
    %1505 = vmatpush2.bf16.msra.mxu0 %v1089
    %1506 = vmatprep.subr.bf16.mxu0 %v1084
    %1507 = vmatpush2.bf16.msra.mxu0 %v1083
    %1508 = vmatprep.subr.bf16.mxu0 %v1078
    %1509 = vmatpush2.bf16.msra.mxu0 %v1077
    %1510 = vmatprep.subr.bf16.mxu0 %v1072
    %1511 = vmatpush2.bf16.msra.mxu0 %v1071
    %1512 = vmatprep.subr.bf16.mxu0 %v1066
    %1513 = vmatpush2.bf16.msra.mxu0 %v1065
    %1514 = vmatprep.subr.bf16.mxu0 %v1060
    %1515 = vmatpush2.bf16.msra.mxu0 %v1059
    %1516 = vmatprep.subr.bf16.mxu0 %v1054
    %1517 = vmatpush2.bf16.msra.mxu0 %v1053
    %1518 = vmatprep.subr.bf16.mxu0 %v1048
    %1519 = vmatpush2.bf16.msra.mxu0 %v1047
    %1520 = vmatprep.mubr.bf16.mxu0 %v318
    %1521 = vmatmul.mubr.bf16.gmra.mxu0 %v317
    %v1522 = vpop.f32.mrf.mxu0
    %v1523 = vadd.f32 %v1482, %v1522
    %v1524 = vpop.f32.mrf.mxu0
    %v1525 = vadd.f32 %v1484, %v1524
    %v1526 = vpop.f32.mrf.mxu0
    %v1527 = vpop.f32.mrf.mxu0
    %1528 = vdwg.mxu0
    %vm1529 = vcmp.ge.f32.partialorder %v1359, 0.0
    %vm1530 = vcmp.ge.f32.partialorder %v1361, 0.0
    %vm1531 = vcmp.ge.f32.partialorder %v1441, 0.0
    %vm1532 = vcmp.ge.f32.partialorder %v1443, 0.0
    %vm1533 = vcmp.ge.f32.partialorder %v1523, 0.0
    %vm1534 = vcmp.ge.f32.partialorder %v1525, 0.0
    %v1535 = vmul.f32 %v1359, 0.01
    %v1536 = vmul.f32 %v1361, 0.01
    %v1537 = vmul.f32 %v1441, 0.01
    %v1538 = vmul.f32 %v1443, 0.01
    %v1539 = vmul.f32 %v1523, 0.01
    %v1540 = vmul.f32 %v1525, 0.01
    %v1541 = vsel %vm1529, %v1359, %v1535
    %v1542 = vsel %vm1530, %v1361, %v1536
    %v1543 = vsel %vm1531, %v1441, %v1537
    %v1544 = vsel %vm1532, %v1443, %v1538
    %v1545 = vsel %vm1533, %v1523, %v1539
    %v1546 = vsel %vm1534, %v1525, %v1540
    %v1547 = vpack.c.bf16 %v1541, %v1541
    %v1548 = vpack.c.bf16 %v1542, %v1542
    %v1549 = vpack.c.bf16 %v1543, %v1543
    %v1550 = vpack.c.bf16 %v1544, %v1544
    %v1551 = vpack.c.bf16 %v1545, %v1545
    %v1552 = vpack.c.bf16 %v1546, %v1546
    %v1553 = vld [vmem:[#allocation8] sm:$0xff]
    %v1554 = vld [vmem:[#allocation8 + $0x8] sm:$0xff]
    %v1555 = vld [vmem:[#allocation8 + $0x10] sm:$0xff]
    %v1556 = vld [vmem:[#allocation8 + $0x18] sm:$0xff]
    %v1557 = vld [vmem:[#allocation8 + $0x20] sm:$0xff]
    %v1558 = vld [vmem:[#allocation8 + $0x28] sm:$0xff]
    %v1559 = vld [vmem:[#allocation8 + $0x30] sm:$0xff]
    %v1560 = vld [vmem:[#allocation8 + $0x38] sm:$0xff]
    %v1561 = vld [vmem:[#allocation8 + $0x40] sm:$0xff]
    %v1562 = vld [vmem:[#allocation8 + $0x48] sm:$0xff]
    %v1563 = vld [vmem:[#allocation8 + $0x50] sm:$0xff]
    %v1564 = vld [vmem:[#allocation8 + $0x58] sm:$0xff]
    %v1565 = vld [vmem:[#allocation8 + $0x60] sm:$0xff]
    %v1566 = vld [vmem:[#allocation8 + $0x68] sm:$0xff]
    %v1567 = vld [vmem:[#allocation8 + $0x70] sm:$0xff]
    %v1568 = vld [vmem:[#allocation8 + $0x78] sm:$0xff]
    %v1569 = vld [vmem:[#allocation8 + $0x80] sm:$0xff]
    %v1570 = vld [vmem:[#allocation8 + $0x88] sm:$0xff]
    %v1571 = vld [vmem:[#allocation8 + $0x90] sm:$0xff]
    %v1572 = vld [vmem:[#allocation8 + $0x98] sm:$0xff]
    %v1573 = vld [vmem:[#allocation8 + $0xa0] sm:$0xff]
    %v1574 = vld [vmem:[#allocation8 + $0xa8] sm:$0xff]
    %v1575 = vld [vmem:[#allocation8 + $0xb0] sm:$0xff]
    %v1576 = vld [vmem:[#allocation8 + $0xb8] sm:$0xff]
    %v1577 = vld [vmem:[#allocation8 + $0xc0] sm:$0xff]
    %v1578 = vld [vmem:[#allocation8 + $0xc8] sm:$0xff]
    %v1579 = vld [vmem:[#allocation8 + $0xd0] sm:$0xff]
    %v1580 = vld [vmem:[#allocation8 + $0xd8] sm:$0xff]
    %v1581 = vld [vmem:[#allocation8 + $0xe0] sm:$0xff]
    %v1582 = vld [vmem:[#allocation8 + $0xe8] sm:$0xff]
    %v1583 = vld [vmem:[#allocation8 + $0xf0] sm:$0xff]
    %v1584 = vld [vmem:[#allocation8 + $0xf8] sm:$0xff]
    %v1585 = vld [vmem:[#allocation8 + $0x100] sm:$0xff]
    %v1586 = vld [vmem:[#allocation8 + $0x108] sm:$0xff]
    %v1587 = vld [vmem:[#allocation8 + $0x110] sm:$0xff]
    %v1588 = vld [vmem:[#allocation8 + $0x118] sm:$0xff]
    %v1589 = vld [vmem:[#allocation8 + $0x120] sm:$0xff]
    %v1590 = vld [vmem:[#allocation8 + $0x128] sm:$0xff]
    %v1591 = vld [vmem:[#allocation8 + $0x130] sm:$0xff]
    %v1592 = vld [vmem:[#allocation8 + $0x138] sm:$0xff]
    %v1593 = vld [vmem:[#allocation8 + $0x140] sm:$0xff]
    %v1594 = vld [vmem:[#allocation8 + $0x148] sm:$0xff]
    %v1595 = vld [vmem:[#allocation8 + $0x150] sm:$0xff]
    %v1596 = vld [vmem:[#allocation8 + $0x158] sm:$0xff]
    %v1597 = vld [vmem:[#allocation8 + $0x160] sm:$0xff]
    %v1598 = vld [vmem:[#allocation8 + $0x168] sm:$0xff]
    %v1599 = vld [vmem:[#allocation8 + $0x170] sm:$0xff]
    %v1600 = vld [vmem:[#allocation8 + $0x178] sm:$0xff]
    %v1601 = vld [vmem:[#allocation8 + $0x180] sm:$0xff]
    %v1602 = vld [vmem:[#allocation8 + $0x188] sm:$0xff]
    %v1603 = vld [vmem:[#allocation8 + $0x190] sm:$0xff]
    %v1604 = vld [vmem:[#allocation8 + $0x198] sm:$0xff]
    %v1605 = vld [vmem:[#allocation8 + $0x1a0] sm:$0xff]
    %v1606 = vld [vmem:[#allocation8 + $0x1a8] sm:$0xff]
    %v1607 = vld [vmem:[#allocation8 + $0x1b0] sm:$0xff]
    %v1608 = vld [vmem:[#allocation8 + $0x1b8] sm:$0xff]
    %v1609 = vld [vmem:[#allocation8 + $0x1c0] sm:$0xff]
    %v1610 = vld [vmem:[#allocation8 + $0x1c8] sm:$0xff]
    %v1611 = vld [vmem:[#allocation8 + $0x1d0] sm:$0xff]
    %v1612 = vld [vmem:[#allocation8 + $0x1d8] sm:$0xff]
    %v1613 = vld [vmem:[#allocation8 + $0x1e0] sm:$0xff]
    %v1614 = vld [vmem:[#allocation8 + $0x1e8] sm:$0xff]
    %v1615 = vld [vmem:[#allocation8 + $0x1f0] sm:$0xff]
    %v1616 = vld [vmem:[#allocation8 + $0x1f8] sm:$0xff]
    %v1617 = vld [vmem:[#allocation8 + $0x200] sm:$0xff]
    %v1618 = vld [vmem:[#allocation8 + $0x208] sm:$0xff]
    %v1619 = vld [vmem:[#allocation8 + $0x210] sm:$0xff]
    %v1620 = vld [vmem:[#allocation8 + $0x218] sm:$0xff]
    %v1621 = vld [vmem:[#allocation8 + $0x220] sm:$0xff]
    %v1622 = vld [vmem:[#allocation8 + $0x228] sm:$0xff]
    %v1623 = vld [vmem:[#allocation8 + $0x230] sm:$0xff]
    %v1624 = vld [vmem:[#allocation8 + $0x238] sm:$0xff]
    %v1625 = vld [vmem:[#allocation8 + $0x240] sm:$0xff]
    %v1626 = vld [vmem:[#allocation8 + $0x248] sm:$0xff]
    %v1627 = vld [vmem:[#allocation8 + $0x250] sm:$0xff]
    %v1628 = vld [vmem:[#allocation8 + $0x258] sm:$0xff]
    %v1629 = vld [vmem:[#allocation8 + $0x260] sm:$0xff]
    %v1630 = vld [vmem:[#allocation8 + $0x268] sm:$0xff]
    %v1631 = vld [vmem:[#allocation8 + $0x270] sm:$0xff]
    %v1632 = vld [vmem:[#allocation8 + $0x278] sm:$0xff]
    %v1633 = vld [vmem:[#allocation8 + $0x280] sm:$0xff]
    %v1634 = vld [vmem:[#allocation8 + $0x288] sm:$0xff]
    %v1635 = vld [vmem:[#allocation8 + $0x290] sm:$0xff]
    %v1636 = vld [vmem:[#allocation8 + $0x298] sm:$0xff]
    %v1637 = vld [vmem:[#allocation8 + $0x2a0] sm:$0xff]
    %v1638 = vld [vmem:[#allocation8 + $0x2a8] sm:$0xff]
    %v1639 = vld [vmem:[#allocation8 + $0x2b0] sm:$0xff]
    %v1640 = vld [vmem:[#allocation8 + $0x2b8] sm:$0xff]
    %v1641 = vld [vmem:[#allocation8 + $0x2c0] sm:$0xff]
    %v1642 = vld [vmem:[#allocation8 + $0x2c8] sm:$0xff]
    %v1643 = vld [vmem:[#allocation8 + $0x2d0] sm:$0xff]
    %v1644 = vld [vmem:[#allocation8 + $0x2d8] sm:$0xff]
    %v1645 = vld [vmem:[#allocation8 + $0x2e0] sm:$0xff]
    %v1646 = vld [vmem:[#allocation8 + $0x2e8] sm:$0xff]
    %v1647 = vld [vmem:[#allocation8 + $0x2f0] sm:$0xff]
    %v1648 = vld [vmem:[#allocation8 + $0x2f8] sm:$0xff]
    %v1649 = vld [vmem:[#allocation8 + $0x300] sm:$0xff]
    %v1650 = vld [vmem:[#allocation8 + $0x308] sm:$0xff]
    %v1651 = vld [vmem:[#allocation8 + $0x310] sm:$0xff]
    %v1652 = vld [vmem:[#allocation8 + $0x318] sm:$0xff]
    %v1653 = vld [vmem:[#allocation8 + $0x320] sm:$0xff]
    %v1654 = vld [vmem:[#allocation8 + $0x328] sm:$0xff]
    %v1655 = vld [vmem:[#allocation8 + $0x330] sm:$0xff]
    %v1656 = vld [vmem:[#allocation8 + $0x338] sm:$0xff]
    %v1657 = vld [vmem:[#allocation8 + $0x340] sm:$0xff]
    %v1658 = vld [vmem:[#allocation8 + $0x348] sm:$0xff]
    %v1659 = vld [vmem:[#allocation8 + $0x350] sm:$0xff]
    %v1660 = vld [vmem:[#allocation8 + $0x358] sm:$0xff]
    %v1661 = vld [vmem:[#allocation8 + $0x360] sm:$0xff]
    %v1662 = vld [vmem:[#allocation8 + $0x368] sm:$0xff]
    %v1663 = vld [vmem:[#allocation8 + $0x370] sm:$0xff]
    %v1664 = vld [vmem:[#allocation8 + $0x378] sm:$0xff]
    %v1665 = vld [vmem:[#allocation8 + $0x380] sm:$0xff]
    %v1666 = vld [vmem:[#allocation8 + $0x388] sm:$0xff]
    %v1667 = vld [vmem:[#allocation8 + $0x390] sm:$0xff]
    %v1668 = vld [vmem:[#allocation8 + $0x398] sm:$0xff]
    %v1669 = vld [vmem:[#allocation8 + $0x3a0] sm:$0xff]
    %v1670 = vld [vmem:[#allocation8 + $0x3a8] sm:$0xff]
    %v1671 = vld [vmem:[#allocation8 + $0x3b0] sm:$0xff]
    %v1672 = vld [vmem:[#allocation8 + $0x3b8] sm:$0xff]
    %v1673 = vld [vmem:[#allocation8 + $0x3c0] sm:$0xff]
    %v1674 = vld [vmem:[#allocation8 + $0x3c8] sm:$0xff]
    %v1675 = vld [vmem:[#allocation8 + $0x3d0] sm:$0xff]
    %v1676 = vld [vmem:[#allocation8 + $0x3d8] sm:$0xff]
    %v1677 = vld [vmem:[#allocation8 + $0x3e0] sm:$0xff]
    %v1678 = vld [vmem:[#allocation8 + $0x3e8] sm:$0xff]
    %v1679 = vld [vmem:[#allocation8 + $0x3f0] sm:$0xff]
    %v1680 = vld [vmem:[#allocation8 + $0x3f8] sm:$0xff]
    %v1681 = vld [vmem:[#allocation8 + $0x400] sm:$0xff]
    %v1682 = vld [vmem:[#allocation8 + $0x408] sm:$0xff]
    %v1683 = vld [vmem:[#allocation8 + $0x410] sm:$0xff]
    %v1684 = vld [vmem:[#allocation8 + $0x418] sm:$0xff]
    %v1685 = vld [vmem:[#allocation8 + $0x420] sm:$0xff]
    %v1686 = vld [vmem:[#allocation8 + $0x428] sm:$0xff]
    %v1687 = vld [vmem:[#allocation8 + $0x430] sm:$0xff]
    %v1688 = vld [vmem:[#allocation8 + $0x438] sm:$0xff]
    %v1689 = vld [vmem:[#allocation8 + $0x440] sm:$0xff]
    %v1690 = vld [vmem:[#allocation8 + $0x448] sm:$0xff]
    %v1691 = vld [vmem:[#allocation8 + $0x450] sm:$0xff]
    %v1692 = vld [vmem:[#allocation8 + $0x458] sm:$0xff]
    %v1693 = vld [vmem:[#allocation8 + $0x460] sm:$0xff]
    %v1694 = vld [vmem:[#allocation8 + $0x468] sm:$0xff]
    %v1695 = vld [vmem:[#allocation8 + $0x470] sm:$0xff]
    %v1696 = vld [vmem:[#allocation8 + $0x478] sm:$0xff]
    %v1697 = vld [vmem:[#allocation8 + $0x480] sm:$0xff]
    %v1698 = vld [vmem:[#allocation8 + $0x488] sm:$0xff]
    %v1699 = vld [vmem:[#allocation8 + $0x490] sm:$0xff]
    %v1700 = vld [vmem:[#allocation8 + $0x498] sm:$0xff]
    %v1701 = vld [vmem:[#allocation8 + $0x4a0] sm:$0xff]
    %v1702 = vld [vmem:[#allocation8 + $0x4a8] sm:$0xff]
    %v1703 = vld [vmem:[#allocation8 + $0x4b0] sm:$0xff]
    %v1704 = vld [vmem:[#allocation8 + $0x4b8] sm:$0xff]
    %v1705 = vld [vmem:[#allocation8 + $0x4c0] sm:$0xff]
    %v1706 = vld [vmem:[#allocation8 + $0x4c8] sm:$0xff]
    %v1707 = vld [vmem:[#allocation8 + $0x4d0] sm:$0xff]
    %v1708 = vld [vmem:[#allocation8 + $0x4d8] sm:$0xff]
    %v1709 = vld [vmem:[#allocation8 + $0x4e0] sm:$0xff]
    %v1710 = vld [vmem:[#allocation8 + $0x4e8] sm:$0xff]
    %v1711 = vld [vmem:[#allocation8 + $0x4f0] sm:$0xff]
    %v1712 = vld [vmem:[#allocation8 + $0x4f8] sm:$0xff]
    %v1713 = vld [vmem:[#allocation8 + $0x500] sm:$0xff]
    %v1714 = vld [vmem:[#allocation8 + $0x508] sm:$0xff]
    %v1715 = vld [vmem:[#allocation8 + $0x510] sm:$0xff]
    %v1716 = vld [vmem:[#allocation8 + $0x518] sm:$0xff]
    %v1717 = vld [vmem:[#allocation8 + $0x520] sm:$0xff]
    %v1718 = vld [vmem:[#allocation8 + $0x528] sm:$0xff]
    %v1719 = vld [vmem:[#allocation8 + $0x530] sm:$0xff]
    %v1720 = vld [vmem:[#allocation8 + $0x538] sm:$0xff]
    %v1721 = vld [vmem:[#allocation8 + $0x540] sm:$0xff]
    %v1722 = vld [vmem:[#allocation8 + $0x548] sm:$0xff]
    %v1723 = vld [vmem:[#allocation8 + $0x550] sm:$0xff]
    %v1724 = vld [vmem:[#allocation8 + $0x558] sm:$0xff]
    %v1725 = vld [vmem:[#allocation8 + $0x560] sm:$0xff]
    %v1726 = vld [vmem:[#allocation8 + $0x568] sm:$0xff]
    %v1727 = vld [vmem:[#allocation8 + $0x570] sm:$0xff]
    %v1728 = vld [vmem:[#allocation8 + $0x578] sm:$0xff]
    %v1729 = vld [vmem:[#allocation8 + $0x580] sm:$0xff]
    %v1730 = vld [vmem:[#allocation8 + $0x588] sm:$0xff]
    %v1731 = vld [vmem:[#allocation8 + $0x590] sm:$0xff]
    %v1732 = vld [vmem:[#allocation8 + $0x598] sm:$0xff]
    %v1733 = vld [vmem:[#allocation8 + $0x5a0] sm:$0xff]
    %v1734 = vld [vmem:[#allocation8 + $0x5a8] sm:$0xff]
    %v1735 = vld [vmem:[#allocation8 + $0x5b0] sm:$0xff]
    %v1736 = vld [vmem:[#allocation8 + $0x5b8] sm:$0xff]
    %v1737 = vld [vmem:[#allocation8 + $0x5c0] sm:$0xff]
    %v1738 = vld [vmem:[#allocation8 + $0x5c8] sm:$0xff]
    %v1739 = vld [vmem:[#allocation8 + $0x5d0] sm:$0xff]
    %v1740 = vld [vmem:[#allocation8 + $0x5d8] sm:$0xff]
    %v1741 = vld [vmem:[#allocation8 + $0x5e0] sm:$0xff]
    %v1742 = vld [vmem:[#allocation8 + $0x5e8] sm:$0xff]
    %v1743 = vld [vmem:[#allocation8 + $0x5f0] sm:$0xff]
    %v1744 = vld [vmem:[#allocation8 + $0x5f8] sm:$0xff]
    %v1745 = vld [vmem:[#allocation8 + $0x600] sm:$0xff]
    %v1746 = vld [vmem:[#allocation8 + $0x608] sm:$0xff]
    %v1747 = vld [vmem:[#allocation8 + $0x610] sm:$0xff]
    %v1748 = vld [vmem:[#allocation8 + $0x618] sm:$0xff]
    %v1749 = vld [vmem:[#allocation8 + $0x620] sm:$0xff]
    %v1750 = vld [vmem:[#allocation8 + $0x628] sm:$0xff]
    %v1751 = vld [vmem:[#allocation8 + $0x630] sm:$0xff]
    %v1752 = vld [vmem:[#allocation8 + $0x638] sm:$0xff]
    %v1753 = vld [vmem:[#allocation8 + $0x640] sm:$0xff]
    %v1754 = vld [vmem:[#allocation8 + $0x648] sm:$0xff]
    %v1755 = vld [vmem:[#allocation8 + $0x650] sm:$0xff]
    %v1756 = vld [vmem:[#allocation8 + $0x658] sm:$0xff]
    %v1757 = vld [vmem:[#allocation8 + $0x660] sm:$0xff]
    %v1758 = vld [vmem:[#allocation8 + $0x668] sm:$0xff]
    %v1759 = vld [vmem:[#allocation8 + $0x670] sm:$0xff]
    %v1760 = vld [vmem:[#allocation8 + $0x678] sm:$0xff]
    %v1761 = vld [vmem:[#allocation8 + $0x680] sm:$0xff]
    %v1762 = vld [vmem:[#allocation8 + $0x688] sm:$0xff]
    %v1763 = vld [vmem:[#allocation8 + $0x690] sm:$0xff]
    %v1764 = vld [vmem:[#allocation8 + $0x698] sm:$0xff]
    %v1765 = vld [vmem:[#allocation8 + $0x6a0] sm:$0xff]
    %v1766 = vld [vmem:[#allocation8 + $0x6a8] sm:$0xff]
    %v1767 = vld [vmem:[#allocation8 + $0x6b0] sm:$0xff]
    %v1768 = vld [vmem:[#allocation8 + $0x6b8] sm:$0xff]
    %v1769 = vld [vmem:[#allocation8 + $0x6c0] sm:$0xff]
    %v1770 = vld [vmem:[#allocation8 + $0x6c8] sm:$0xff]
    %v1771 = vld [vmem:[#allocation8 + $0x6d0] sm:$0xff]
    %v1772 = vld [vmem:[#allocation8 + $0x6d8] sm:$0xff]
    %v1773 = vld [vmem:[#allocation8 + $0x6e0] sm:$0xff]
    %v1774 = vld [vmem:[#allocation8 + $0x6e8] sm:$0xff]
    %v1775 = vld [vmem:[#allocation8 + $0x6f0] sm:$0xff]
    %v1776 = vld [vmem:[#allocation8 + $0x6f8] sm:$0xff]
    %v1777 = vld [vmem:[#allocation8 + $0x700] sm:$0xff]
    %v1778 = vld [vmem:[#allocation8 + $0x708] sm:$0xff]
    %v1779 = vld [vmem:[#allocation8 + $0x710] sm:$0xff]
    %v1780 = vld [vmem:[#allocation8 + $0x718] sm:$0xff]
    %v1781 = vld [vmem:[#allocation8 + $0x720] sm:$0xff]
    %v1782 = vld [vmem:[#allocation8 + $0x728] sm:$0xff]
    %v1783 = vld [vmem:[#allocation8 + $0x730] sm:$0xff]
    %v1784 = vld [vmem:[#allocation8 + $0x738] sm:$0xff]
    %v1785 = vld [vmem:[#allocation8 + $0x740] sm:$0xff]
    %v1786 = vld [vmem:[#allocation8 + $0x748] sm:$0xff]
    %v1787 = vld [vmem:[#allocation8 + $0x750] sm:$0xff]
    %v1788 = vld [vmem:[#allocation8 + $0x758] sm:$0xff]
    %v1789 = vld [vmem:[#allocation8 + $0x760] sm:$0xff]
    %v1790 = vld [vmem:[#allocation8 + $0x768] sm:$0xff]
    %v1791 = vld [vmem:[#allocation8 + $0x770] sm:$0xff]
    %v1792 = vld [vmem:[#allocation8 + $0x778] sm:$0xff]
    %v1793 = vld [vmem:[#allocation8 + $0x780] sm:$0xff]
    %v1794 = vld [vmem:[#allocation8 + $0x788] sm:$0xff]
    %v1795 = vld [vmem:[#allocation8 + $0x790] sm:$0xff]
    %v1796 = vld [vmem:[#allocation8 + $0x798] sm:$0xff]
    %v1797 = vld [vmem:[#allocation8 + $0x7a0] sm:$0xff]
    %v1798 = vld [vmem:[#allocation8 + $0x7a8] sm:$0xff]
    %v1799 = vld [vmem:[#allocation8 + $0x7b0] sm:$0xff]
    %v1800 = vld [vmem:[#allocation8 + $0x7b8] sm:$0xff]
    %v1801 = vld [vmem:[#allocation8 + $0x7c0] sm:$0xff]
    %v1802 = vld [vmem:[#allocation8 + $0x7c8] sm:$0xff]
    %v1803 = vld [vmem:[#allocation8 + $0x7d0] sm:$0xff]
    %v1804 = vld [vmem:[#allocation8 + $0x7d8] sm:$0xff]
    %v1805 = vld [vmem:[#allocation8 + $0x7e0] sm:$0xff]
    %v1806 = vld [vmem:[#allocation8 + $0x7e8] sm:$0xff]
    %v1807 = vld [vmem:[#allocation8 + $0x7f0] sm:$0xff]
    %v1808 = vld [vmem:[#allocation8 + $0x7f8] sm:$0xff]
    %v1809 = vld [vmem:[#allocation8 + $0x800] sm:$0xff]
    %v1810 = vld [vmem:[#allocation8 + $0x808] sm:$0xff]
    %v1811 = vld [vmem:[#allocation8 + $0x810] sm:$0xff]
    %v1812 = vld [vmem:[#allocation8 + $0x818] sm:$0xff]
    %v1813 = vld [vmem:[#allocation8 + $0x820] sm:$0xff]
    %v1814 = vld [vmem:[#allocation8 + $0x828] sm:$0xff]
    %v1815 = vld [vmem:[#allocation8 + $0x830] sm:$0xff]
    %v1816 = vld [vmem:[#allocation8 + $0x838] sm:$0xff]
    %v1817 = vld [vmem:[#allocation8 + $0x840] sm:$0xff]
    %v1818 = vld [vmem:[#allocation8 + $0x848] sm:$0xff]
    %v1819 = vld [vmem:[#allocation8 + $0x850] sm:$0xff]
    %v1820 = vld [vmem:[#allocation8 + $0x858] sm:$0xff]
    %v1821 = vld [vmem:[#allocation8 + $0x860] sm:$0xff]
    %v1822 = vld [vmem:[#allocation8 + $0x868] sm:$0xff]
    %v1823 = vld [vmem:[#allocation8 + $0x870] sm:$0xff]
    %v1824 = vld [vmem:[#allocation8 + $0x878] sm:$0xff]
    %v1825 = vld [vmem:[#allocation8 + $0x880] sm:$0xff]
    %v1826 = vld [vmem:[#allocation8 + $0x888] sm:$0xff]
    %v1827 = vld [vmem:[#allocation8 + $0x890] sm:$0xff]
    %v1828 = vld [vmem:[#allocation8 + $0x898] sm:$0xff]
    %v1829 = vld [vmem:[#allocation8 + $0x8a0] sm:$0xff]
    %v1830 = vld [vmem:[#allocation8 + $0x8a8] sm:$0xff]
    %v1831 = vld [vmem:[#allocation8 + $0x8b0] sm:$0xff]
    %v1832 = vld [vmem:[#allocation8 + $0x8b8] sm:$0xff]
    %v1833 = vld [vmem:[#allocation8 + $0x8c0] sm:$0xff]
    %v1834 = vld [vmem:[#allocation8 + $0x8c8] sm:$0xff]
    %v1835 = vld [vmem:[#allocation8 + $0x8d0] sm:$0xff]
    %v1836 = vld [vmem:[#allocation8 + $0x8d8] sm:$0xff]
    %v1837 = vld [vmem:[#allocation8 + $0x8e0] sm:$0xff]
    %v1838 = vld [vmem:[#allocation8 + $0x8e8] sm:$0xff]
    %v1839 = vld [vmem:[#allocation8 + $0x8f0] sm:$0xff]
    %v1840 = vld [vmem:[#allocation8 + $0x8f8] sm:$0xff]
    %v1841 = vld [vmem:[#allocation10] sm:$0x3f]
    %v1843 = vlaneseq
    %v1844 = vshrl.u32 %v1843, 7
    %v1845 = vsub.s32 0, %v1844
    %v1846 = vrot.slane %v1841, %v1845
    %v1847 = vlaneseq
    %v1848 = vshrl.u32 %v1847, 7
    %v1849 = vsub.s32 1, %v1848
    %v1850 = vrot.slane %v1841, %v1849
    %v1851 = vlaneseq
    %v1852 = vshrl.u32 %v1851, 7
    %v1853 = vsub.s32 2, %v1852
    %v1854 = vrot.slane %v1841, %v1853
    %v1855 = vlaneseq
    %v1856 = vshrl.u32 %v1855, 7
    %v1857 = vsub.s32 3, %v1856
    %v1858 = vrot.slane %v1841, %v1857
    %v1859 = vlaneseq
    %v1860 = vshrl.u32 %v1859, 7
    %v1861 = vsub.s32 4, %v1860
    %v1862 = vrot.slane %v1841, %v1861
    %v1863 = vlaneseq
    %v1864 = vshrl.u32 %v1863, 7
    %v1865 = vsub.s32 5, %v1864
    %v1866 = vrot.slane %v1841, %v1865
    %v2161 = vunpack.c.l.b16 %v1553
    %v2162 = vunpack.c.h.b16 %v1553
    %v2163 = vunpack.c.l.b16 %v1554
    %v2164 = vunpack.c.h.b16 %v1554
    %v2165 = vunpack.c.l.b16 %v1555
    %v2166 = vunpack.c.h.b16 %v1555
    %v2167 = vunpack.c.l.b16 %v1556
    %v2168 = vunpack.c.h.b16 %v1556
    %v2169 = vunpack.c.l.b16 %v1557
    %v2170 = vunpack.c.h.b16 %v1557
    %v2171 = vunpack.c.l.b16 %v1558
    %v2172 = vunpack.c.h.b16 %v1558
    %v2173 = vunpack.c.l.b16 %v1559
    %v2174 = vunpack.c.h.b16 %v1559
    %v2175 = vunpack.c.l.b16 %v1560
    %v2176 = vunpack.c.h.b16 %v1560
    %v2177 = vunpack.c.l.b16 %v1561
    %v2178 = vunpack.c.h.b16 %v1561
    %v2179 = vunpack.c.l.b16 %v1562
    %v2180 = vunpack.c.h.b16 %v1562
    %v2181 = vunpack.c.l.b16 %v1563
    %v2182 = vunpack.c.h.b16 %v1563
    %v2183 = vunpack.c.l.b16 %v1564
    %v2184 = vunpack.c.h.b16 %v1564
    %v2185 = vunpack.c.l.b16 %v1565
    %v2186 = vunpack.c.h.b16 %v1565
    %v2187 = vunpack.c.l.b16 %v1566
    %v2188 = vunpack.c.h.b16 %v1566
    %v2189 = vunpack.c.l.b16 %v1567
    %v2190 = vunpack.c.h.b16 %v1567
    %v2191 = vunpack.c.l.b16 %v1568
    %v2192 = vunpack.c.h.b16 %v1568
    %v2193 = vunpack.c.l.b16 %v1569
    %v2194 = vunpack.c.h.b16 %v1569
    %v2195 = vunpack.c.l.b16 %v1570
    %v2196 = vunpack.c.h.b16 %v1570
    %v2197 = vunpack.c.l.b16 %v1571
    %v2198 = vunpack.c.h.b16 %v1571
    %v2199 = vunpack.c.l.b16 %v1572
    %v2200 = vunpack.c.h.b16 %v1572
    %v2201 = vunpack.c.l.b16 %v1573
    %v2202 = vunpack.c.h.b16 %v1573
    %v2203 = vunpack.c.l.b16 %v1574
    %v2204 = vunpack.c.h.b16 %v1574
    %v2205 = vunpack.c.l.b16 %v1575
    %v2206 = vunpack.c.h.b16 %v1575
    %v2207 = vunpack.c.l.b16 %v1576
    %v2208 = vunpack.c.h.b16 %v1576
    %v2209 = vunpack.c.l.b16 %v1577
    %v2210 = vunpack.c.h.b16 %v1577
    %v2211 = vunpack.c.l.b16 %v1578
    %v2212 = vunpack.c.h.b16 %v1578
    %v2213 = vunpack.c.l.b16 %v1579
    %v2214 = vunpack.c.h.b16 %v1579
    %v2215 = vunpack.c.l.b16 %v1580
    %v2216 = vunpack.c.h.b16 %v1580
    %v2217 = vunpack.c.l.b16 %v1581
    %v2218 = vunpack.c.h.b16 %v1581
    %v2219 = vunpack.c.l.b16 %v1582
    %v2220 = vunpack.c.h.b16 %v1582
    %v2221 = vunpack.c.l.b16 %v1583
    %v2222 = vunpack.c.h.b16 %v1583
    %v2223 = vunpack.c.l.b16 %v1584
    %v2224 = vunpack.c.h.b16 %v1584
    %v2225 = vunpack.c.l.b16 %v1585
    %v2226 = vunpack.c.h.b16 %v1585
    %v2227 = vunpack.c.l.b16 %v1586
    %v2228 = vunpack.c.h.b16 %v1586
    %v2229 = vunpack.c.l.b16 %v1587
    %v2230 = vunpack.c.h.b16 %v1587
    %v2231 = vunpack.c.l.b16 %v1588
    %v2232 = vunpack.c.h.b16 %v1588
    %v2233 = vunpack.c.l.b16 %v1589
    %v2234 = vunpack.c.h.b16 %v1589
    %v2235 = vunpack.c.l.b16 %v1590
    %v2236 = vunpack.c.h.b16 %v1590
    %v2237 = vunpack.c.l.b16 %v1591
    %v2238 = vunpack.c.h.b16 %v1591
    %v2239 = vunpack.c.l.b16 %v1592
    %v2240 = vunpack.c.h.b16 %v1592
    %v2241 = vunpack.c.l.b16 %v1593
    %v2242 = vunpack.c.h.b16 %v1593
    %v2243 = vunpack.c.l.b16 %v1594
    %v2244 = vunpack.c.h.b16 %v1594
    %v2245 = vunpack.c.l.b16 %v1595
    %v2246 = vunpack.c.h.b16 %v1595
    %v2247 = vunpack.c.l.b16 %v1596
    %v2248 = vunpack.c.h.b16 %v1596
    %v2249 = vunpack.c.l.b16 %v1597
    %v2250 = vunpack.c.h.b16 %v1597
    %v2251 = vunpack.c.l.b16 %v1598
    %v2252 = vunpack.c.h.b16 %v1598
    %v2253 = vunpack.c.l.b16 %v1599
    %v2254 = vunpack.c.h.b16 %v1599
    %v2255 = vunpack.c.l.b16 %v1600
    %v2256 = vunpack.c.h.b16 %v1600
    %v2257 = vunpack.c.l.b16 %v1601
    %v2258 = vunpack.c.h.b16 %v1601
    %v2259 = vunpack.c.l.b16 %v1602
    %v2260 = vunpack.c.h.b16 %v1602
    %v2261 = vunpack.c.l.b16 %v1603
    %v2262 = vunpack.c.h.b16 %v1603
    %v2263 = vunpack.c.l.b16 %v1604
    %v2264 = vunpack.c.h.b16 %v1604
    %v2265 = vunpack.c.l.b16 %v1605
    %v2266 = vunpack.c.h.b16 %v1605
    %v2267 = vunpack.c.l.b16 %v1606
    %v2268 = vunpack.c.h.b16 %v1606
    %v2269 = vunpack.c.l.b16 %v1607
    %v2270 = vunpack.c.h.b16 %v1607
    %v2271 = vunpack.c.l.b16 %v1608
    %v2272 = vunpack.c.h.b16 %v1608
    %v2273 = vunpack.c.l.b16 %v1609
    %v2274 = vunpack.c.h.b16 %v1609
    %v2275 = vunpack.c.l.b16 %v1610
    %v2276 = vunpack.c.h.b16 %v1610
    %v2277 = vunpack.c.l.b16 %v1611
    %v2278 = vunpack.c.h.b16 %v1611
    %v2279 = vunpack.c.l.b16 %v1612
    %v2280 = vunpack.c.h.b16 %v1612
    %v2281 = vunpack.c.l.b16 %v1613
    %v2282 = vunpack.c.h.b16 %v1613
    %v2283 = vunpack.c.l.b16 %v1614
    %v2284 = vunpack.c.h.b16 %v1614
    %v2285 = vunpack.c.l.b16 %v1615
    %v2286 = vunpack.c.h.b16 %v1615
    %v2287 = vunpack.c.l.b16 %v1616
    %v2288 = vunpack.c.h.b16 %v1616
    %v2289 = vunpack.c.l.b16 %v1617
    %v2290 = vunpack.c.h.b16 %v1617
    %v2291 = vunpack.c.l.b16 %v1618
    %v2292 = vunpack.c.h.b16 %v1618
    %v2293 = vunpack.c.l.b16 %v1619
    %v2294 = vunpack.c.h.b16 %v1619
    %v2295 = vunpack.c.l.b16 %v1620
    %v2296 = vunpack.c.h.b16 %v1620
    %v2297 = vunpack.c.l.b16 %v1621
    %v2298 = vunpack.c.h.b16 %v1621
    %v2299 = vunpack.c.l.b16 %v1622
    %v2300 = vunpack.c.h.b16 %v1622
    %v2301 = vunpack.c.l.b16 %v1623
    %v2302 = vunpack.c.h.b16 %v1623
    %v2303 = vunpack.c.l.b16 %v1624
    %v2304 = vunpack.c.h.b16 %v1624
    %v2305 = vunpack.c.l.b16 %v1625
    %v2306 = vunpack.c.h.b16 %v1625
    %v2307 = vunpack.c.l.b16 %v1626
    %v2308 = vunpack.c.h.b16 %v1626
    %v2309 = vunpack.c.l.b16 %v1627
    %v2310 = vunpack.c.h.b16 %v1627
    %v2311 = vunpack.c.l.b16 %v1628
    %v2312 = vunpack.c.h.b16 %v1628
    %v2313 = vunpack.c.l.b16 %v1629
    %v2314 = vunpack.c.h.b16 %v1629
    %v2315 = vunpack.c.l.b16 %v1630
    %v2316 = vunpack.c.h.b16 %v1630
    %v2317 = vunpack.c.l.b16 %v1631
    %v2318 = vunpack.c.h.b16 %v1631
    %v2319 = vunpack.c.l.b16 %v1632
    %v2320 = vunpack.c.h.b16 %v1632
    %v2321 = vunpack.c.l.b16 %v1633
    %v2322 = vunpack.c.h.b16 %v1633
    %v2323 = vunpack.c.l.b16 %v1634
    %v2324 = vunpack.c.h.b16 %v1634
    %v2325 = vunpack.c.l.b16 %v1635
    %v2326 = vunpack.c.h.b16 %v1635
    %v2327 = vunpack.c.l.b16 %v1636
    %v2328 = vunpack.c.h.b16 %v1636
    %v2329 = vunpack.c.l.b16 %v1637
    %v2330 = vunpack.c.h.b16 %v1637
    %v2331 = vunpack.c.l.b16 %v1638
    %v2332 = vunpack.c.h.b16 %v1638
    %v2333 = vunpack.c.l.b16 %v1639
    %v2334 = vunpack.c.h.b16 %v1639
    %v2335 = vunpack.c.l.b16 %v1640
    %v2336 = vunpack.c.h.b16 %v1640
    %v2337 = vunpack.c.l.b16 %v1641
    %v2338 = vunpack.c.h.b16 %v1641
    %v2339 = vunpack.c.l.b16 %v1642
    %v2340 = vunpack.c.h.b16 %v1642
    %v2341 = vunpack.c.l.b16 %v1643
    %v2342 = vunpack.c.h.b16 %v1643
    %v2343 = vunpack.c.l.b16 %v1644
    %v2344 = vunpack.c.h.b16 %v1644
    %v2345 = vunpack.c.l.b16 %v1645
    %v2346 = vunpack.c.h.b16 %v1645
    %v2347 = vunpack.c.l.b16 %v1646
    %v2348 = vunpack.c.h.b16 %v1646
    %v2349 = vunpack.c.l.b16 %v1647
    %v2350 = vunpack.c.h.b16 %v1647
    %v2351 = vunpack.c.l.b16 %v1648
    %v2352 = vunpack.c.h.b16 %v1648
    %v2353 = vunpack.c.l.b16 %v1649
    %v2354 = vunpack.c.h.b16 %v1649
    %v2355 = vunpack.c.l.b16 %v1650
    %v2356 = vunpack.c.h.b16 %v1650
    %v2357 = vunpack.c.l.b16 %v1651
    %v2358 = vunpack.c.h.b16 %v1651
    %v2359 = vunpack.c.l.b16 %v1652
    %v2360 = vunpack.c.h.b16 %v1652
    %v2361 = vunpack.c.l.b16 %v1653
    %v2362 = vunpack.c.h.b16 %v1653
    %v2363 = vunpack.c.l.b16 %v1654
    %v2364 = vunpack.c.h.b16 %v1654
    %v2365 = vunpack.c.l.b16 %v1655
    %v2366 = vunpack.c.h.b16 %v1655
    %v2367 = vunpack.c.l.b16 %v1656
    %v2368 = vunpack.c.h.b16 %v1656
    %v2369 = vunpack.c.l.b16 %v1657
    %v2370 = vunpack.c.h.b16 %v1657
    %v2371 = vunpack.c.l.b16 %v1658
    %v2372 = vunpack.c.h.b16 %v1658
    %v2373 = vunpack.c.l.b16 %v1659
    %v2374 = vunpack.c.h.b16 %v1659
    %v2375 = vunpack.c.l.b16 %v1660
    %v2376 = vunpack.c.h.b16 %v1660
    %v2377 = vunpack.c.l.b16 %v1661
    %v2378 = vunpack.c.h.b16 %v1661
    %v2379 = vunpack.c.l.b16 %v1662
    %v2380 = vunpack.c.h.b16 %v1662
    %v2381 = vunpack.c.l.b16 %v1663
    %v2382 = vunpack.c.h.b16 %v1663
    %v2383 = vunpack.c.l.b16 %v1664
    %v2384 = vunpack.c.h.b16 %v1664
    %v2385 = vunpack.c.l.b16 %v1665
    %v2386 = vunpack.c.h.b16 %v1665
    %v2387 = vunpack.c.l.b16 %v1666
    %v2388 = vunpack.c.h.b16 %v1666
    %v2389 = vunpack.c.l.b16 %v1667
    %v2390 = vunpack.c.h.b16 %v1667
    %v2391 = vunpack.c.l.b16 %v1668
    %v2392 = vunpack.c.h.b16 %v1668
    %v2393 = vunpack.c.l.b16 %v1669
    %v2394 = vunpack.c.h.b16 %v1669
    %v2395 = vunpack.c.l.b16 %v1670
    %v2396 = vunpack.c.h.b16 %v1670
    %v2397 = vunpack.c.l.b16 %v1671
    %v2398 = vunpack.c.h.b16 %v1671
    %v2399 = vunpack.c.l.b16 %v1672
    %v2400 = vunpack.c.h.b16 %v1672
    %v2401 = vunpack.c.l.b16 %v1673
    %v2402 = vunpack.c.h.b16 %v1673
    %v2403 = vunpack.c.l.b16 %v1674
    %v2404 = vunpack.c.h.b16 %v1674
    %v2405 = vunpack.c.l.b16 %v1675
    %v2406 = vunpack.c.h.b16 %v1675
    %v2407 = vunpack.c.l.b16 %v1676
    %v2408 = vunpack.c.h.b16 %v1676
    %v2409 = vunpack.c.l.b16 %v1677
    %v2410 = vunpack.c.h.b16 %v1677
    %v2411 = vunpack.c.l.b16 %v1678
    %v2412 = vunpack.c.h.b16 %v1678
    %v2413 = vunpack.c.l.b16 %v1679
    %v2414 = vunpack.c.h.b16 %v1679
    %v2415 = vunpack.c.l.b16 %v1680
    %v2416 = vunpack.c.h.b16 %v1680
    %v2417 = vunpack.c.l.b16 %v1681
    %v2418 = vunpack.c.h.b16 %v1681
    %v2419 = vunpack.c.l.b16 %v1682
    %v2420 = vunpack.c.h.b16 %v1682
    %v2421 = vunpack.c.l.b16 %v1683
    %v2422 = vunpack.c.h.b16 %v1683
    %v2423 = vunpack.c.l.b16 %v1684
    %v2424 = vunpack.c.h.b16 %v1684
    %v2425 = vunpack.c.l.b16 %v1685
    %v2426 = vunpack.c.h.b16 %v1685
    %v2427 = vunpack.c.l.b16 %v1686
    %v2428 = vunpack.c.h.b16 %v1686
    %v2429 = vunpack.c.l.b16 %v1687
    %v2430 = vunpack.c.h.b16 %v1687
    %v2431 = vunpack.c.l.b16 %v1688
    %v2432 = vunpack.c.h.b16 %v1688
    %v2433 = vunpack.c.l.b16 %v1689
    %v2434 = vunpack.c.h.b16 %v1689
    %v2435 = vunpack.c.l.b16 %v1690
    %v2436 = vunpack.c.h.b16 %v1690
    %v2437 = vunpack.c.l.b16 %v1691
    %v2438 = vunpack.c.h.b16 %v1691
    %v2439 = vunpack.c.l.b16 %v1692
    %v2440 = vunpack.c.h.b16 %v1692
    %v2441 = vunpack.c.l.b16 %v1693
    %v2442 = vunpack.c.h.b16 %v1693
    %v2443 = vunpack.c.l.b16 %v1694
    %v2444 = vunpack.c.h.b16 %v1694
    %v2445 = vunpack.c.l.b16 %v1695
    %v2446 = vunpack.c.h.b16 %v1695
    %v2447 = vunpack.c.l.b16 %v1696
    %v2448 = vunpack.c.h.b16 %v1696
    %v2449 = vunpack.c.l.b16 %v1697
    %v2450 = vunpack.c.h.b16 %v1697
    %v2451 = vunpack.c.l.b16 %v1698
    %v2452 = vunpack.c.h.b16 %v1698
    %v2453 = vunpack.c.l.b16 %v1699
    %v2454 = vunpack.c.h.b16 %v1699
    %v2455 = vunpack.c.l.b16 %v1700
    %v2456 = vunpack.c.h.b16 %v1700
    %v2457 = vunpack.c.l.b16 %v1701
    %v2458 = vunpack.c.h.b16 %v1701
    %v2459 = vunpack.c.l.b16 %v1702
    %v2460 = vunpack.c.h.b16 %v1702
    %v2461 = vunpack.c.l.b16 %v1703
    %v2462 = vunpack.c.h.b16 %v1703
    %v2463 = vunpack.c.l.b16 %v1704
    %v2464 = vunpack.c.h.b16 %v1704
    %v2465 = vunpack.c.l.b16 %v1705
    %v2466 = vunpack.c.h.b16 %v1705
    %v2467 = vunpack.c.l.b16 %v1706
    %v2468 = vunpack.c.h.b16 %v1706
    %v2469 = vunpack.c.l.b16 %v1707
    %v2470 = vunpack.c.h.b16 %v1707
    %v2471 = vunpack.c.l.b16 %v1708
    %v2472 = vunpack.c.h.b16 %v1708
    %v2473 = vunpack.c.l.b16 %v1709
    %v2474 = vunpack.c.h.b16 %v1709
    %v2475 = vunpack.c.l.b16 %v1710
    %v2476 = vunpack.c.h.b16 %v1710
    %v2477 = vunpack.c.l.b16 %v1711
    %v2478 = vunpack.c.h.b16 %v1711
    %v2479 = vunpack.c.l.b16 %v1712
    %v2480 = vunpack.c.h.b16 %v1712
    %v2481 = vunpack.c.l.b16 %v1713
    %v2482 = vunpack.c.h.b16 %v1713
    %v2483 = vunpack.c.l.b16 %v1714
    %v2484 = vunpack.c.h.b16 %v1714
    %v2485 = vunpack.c.l.b16 %v1715
    %v2486 = vunpack.c.h.b16 %v1715
    %v2487 = vunpack.c.l.b16 %v1716
    %v2488 = vunpack.c.h.b16 %v1716
    %v2489 = vunpack.c.l.b16 %v1717
    %v2490 = vunpack.c.h.b16 %v1717
    %v2491 = vunpack.c.l.b16 %v1718
    %v2492 = vunpack.c.h.b16 %v1718
    %v2493 = vunpack.c.l.b16 %v1719
    %v2494 = vunpack.c.h.b16 %v1719
    %v2495 = vunpack.c.l.b16 %v1720
    %v2496 = vunpack.c.h.b16 %v1720
    %v2497 = vunpack.c.l.b16 %v1721
    %v2498 = vunpack.c.h.b16 %v1721
    %v2499 = vunpack.c.l.b16 %v1722
    %v2500 = vunpack.c.h.b16 %v1722
    %v2501 = vunpack.c.l.b16 %v1723
    %v2502 = vunpack.c.h.b16 %v1723
    %v2503 = vunpack.c.l.b16 %v1724
    %v2504 = vunpack.c.h.b16 %v1724
    %v2505 = vunpack.c.l.b16 %v1725
    %v2506 = vunpack.c.h.b16 %v1725
    %v2507 = vunpack.c.l.b16 %v1726
    %v2508 = vunpack.c.h.b16 %v1726
    %v2509 = vunpack.c.l.b16 %v1727
    %v2510 = vunpack.c.h.b16 %v1727
    %v2511 = vunpack.c.l.b16 %v1728
    %v2512 = vunpack.c.h.b16 %v1728
    %v2513 = vunpack.c.l.b16 %v1729
    %v2514 = vunpack.c.h.b16 %v1729
    %v2515 = vunpack.c.l.b16 %v1730
    %v2516 = vunpack.c.h.b16 %v1730
    %v2517 = vunpack.c.l.b16 %v1731
    %v2518 = vunpack.c.h.b16 %v1731
    %v2519 = vunpack.c.l.b16 %v1732
    %v2520 = vunpack.c.h.b16 %v1732
    %v2521 = vunpack.c.l.b16 %v1733
    %v2522 = vunpack.c.h.b16 %v1733
    %v2523 = vunpack.c.l.b16 %v1734
    %v2524 = vunpack.c.h.b16 %v1734
    %v2525 = vunpack.c.l.b16 %v1735
    %v2526 = vunpack.c.h.b16 %v1735
    %v2527 = vunpack.c.l.b16 %v1736
    %v2528 = vunpack.c.h.b16 %v1736
    %v2529 = vunpack.c.l.b16 %v1737
    %v2530 = vunpack.c.h.b16 %v1737
    %v2531 = vunpack.c.l.b16 %v1738
    %v2532 = vunpack.c.h.b16 %v1738
    %v2533 = vunpack.c.l.b16 %v1739
    %v2534 = vunpack.c.h.b16 %v1739
    %v2535 = vunpack.c.l.b16 %v1740
    %v2536 = vunpack.c.h.b16 %v1740
    %v2537 = vunpack.c.l.b16 %v1741
    %v2538 = vunpack.c.h.b16 %v1741
    %v2539 = vunpack.c.l.b16 %v1742
    %v2540 = vunpack.c.h.b16 %v1742
    %v2541 = vunpack.c.l.b16 %v1743
    %v2542 = vunpack.c.h.b16 %v1743
    %v2543 = vunpack.c.l.b16 %v1744
    %v2544 = vunpack.c.h.b16 %v1744
    %v2545 = vunpack.c.l.b16 %v1745
    %v2546 = vunpack.c.h.b16 %v1745
    %v2547 = vunpack.c.l.b16 %v1746
    %v2548 = vunpack.c.h.b16 %v1746
    %v2549 = vunpack.c.l.b16 %v1747
    %v2550 = vunpack.c.h.b16 %v1747
    %v2551 = vunpack.c.l.b16 %v1748
    %v2552 = vunpack.c.h.b16 %v1748
    %v2553 = vunpack.c.l.b16 %v1749
    %v2554 = vunpack.c.h.b16 %v1749
    %v2555 = vunpack.c.l.b16 %v1750
    %v2556 = vunpack.c.h.b16 %v1750
    %v2557 = vunpack.c.l.b16 %v1751
    %v2558 = vunpack.c.h.b16 %v1751
    %v2559 = vunpack.c.l.b16 %v1752
    %v2560 = vunpack.c.h.b16 %v1752
    %v2561 = vunpack.c.l.b16 %v1753
    %v2562 = vunpack.c.h.b16 %v1753
    %v2563 = vunpack.c.l.b16 %v1754
    %v2564 = vunpack.c.h.b16 %v1754
    %v2565 = vunpack.c.l.b16 %v1755
    %v2566 = vunpack.c.h.b16 %v1755
    %v2567 = vunpack.c.l.b16 %v1756
    %v2568 = vunpack.c.h.b16 %v1756
    %v2569 = vunpack.c.l.b16 %v1757
    %v2570 = vunpack.c.h.b16 %v1757
    %v2571 = vunpack.c.l.b16 %v1758
    %v2572 = vunpack.c.h.b16 %v1758
    %v2573 = vunpack.c.l.b16 %v1759
    %v2574 = vunpack.c.h.b16 %v1759
    %v2575 = vunpack.c.l.b16 %v1760
    %v2576 = vunpack.c.h.b16 %v1760
    %v2577 = vunpack.c.l.b16 %v1761
    %v2578 = vunpack.c.h.b16 %v1761
    %v2579 = vunpack.c.l.b16 %v1762
    %v2580 = vunpack.c.h.b16 %v1762
    %v2581 = vunpack.c.l.b16 %v1763
    %v2582 = vunpack.c.h.b16 %v1763
    %v2583 = vunpack.c.l.b16 %v1764
    %v2584 = vunpack.c.h.b16 %v1764
    %v2585 = vunpack.c.l.b16 %v1765
    %v2586 = vunpack.c.h.b16 %v1765
    %v2587 = vunpack.c.l.b16 %v1766
    %v2588 = vunpack.c.h.b16 %v1766
    %v2589 = vunpack.c.l.b16 %v1767
    %v2590 = vunpack.c.h.b16 %v1767
    %v2591 = vunpack.c.l.b16 %v1768
    %v2592 = vunpack.c.h.b16 %v1768
    %v2593 = vunpack.c.l.b16 %v1769
    %v2594 = vunpack.c.h.b16 %v1769
    %v2595 = vunpack.c.l.b16 %v1770
    %v2596 = vunpack.c.h.b16 %v1770
    %v2597 = vunpack.c.l.b16 %v1771
    %v2598 = vunpack.c.h.b16 %v1771
    %v2599 = vunpack.c.l.b16 %v1772
    %v2600 = vunpack.c.h.b16 %v1772
    %v2601 = vunpack.c.l.b16 %v1773
    %v2602 = vunpack.c.h.b16 %v1773
    %v2603 = vunpack.c.l.b16 %v1774
    %v2604 = vunpack.c.h.b16 %v1774
    %v2605 = vunpack.c.l.b16 %v1775
    %v2606 = vunpack.c.h.b16 %v1775
    %v2607 = vunpack.c.l.b16 %v1776
    %v2608 = vunpack.c.h.b16 %v1776
    %v2609 = vunpack.c.l.b16 %v1777
    %v2610 = vunpack.c.h.b16 %v1777
    %v2611 = vunpack.c.l.b16 %v1778
    %v2612 = vunpack.c.h.b16 %v1778
    %v2613 = vunpack.c.l.b16 %v1779
    %v2614 = vunpack.c.h.b16 %v1779
    %v2615 = vunpack.c.l.b16 %v1780
    %v2616 = vunpack.c.h.b16 %v1780
    %v2617 = vunpack.c.l.b16 %v1781
    %v2618 = vunpack.c.h.b16 %v1781
    %v2619 = vunpack.c.l.b16 %v1782
    %v2620 = vunpack.c.h.b16 %v1782
    %v2621 = vunpack.c.l.b16 %v1783
    %v2622 = vunpack.c.h.b16 %v1783
    %v2623 = vunpack.c.l.b16 %v1784
    %v2624 = vunpack.c.h.b16 %v1784
    %v2625 = vunpack.c.l.b16 %v1785
    %v2626 = vunpack.c.h.b16 %v1785
    %v2627 = vunpack.c.l.b16 %v1786
    %v2628 = vunpack.c.h.b16 %v1786
    %v2629 = vunpack.c.l.b16 %v1787
    %v2630 = vunpack.c.h.b16 %v1787
    %v2631 = vunpack.c.l.b16 %v1788
    %v2632 = vunpack.c.h.b16 %v1788
    %v2633 = vunpack.c.l.b16 %v1789
    %v2634 = vunpack.c.h.b16 %v1789
    %v2635 = vunpack.c.l.b16 %v1790
    %v2636 = vunpack.c.h.b16 %v1790
    %v2637 = vunpack.c.l.b16 %v1791
    %v2638 = vunpack.c.h.b16 %v1791
    %v2639 = vunpack.c.l.b16 %v1792
    %v2640 = vunpack.c.h.b16 %v1792
    %v2641 = vunpack.c.l.b16 %v1793
    %v2642 = vunpack.c.h.b16 %v1793
    %v2643 = vunpack.c.l.b16 %v1794
    %v2644 = vunpack.c.h.b16 %v1794
    %v2645 = vunpack.c.l.b16 %v1795
    %v2646 = vunpack.c.h.b16 %v1795
    %v2647 = vunpack.c.l.b16 %v1796
    %v2648 = vunpack.c.h.b16 %v1796
    %v2649 = vunpack.c.l.b16 %v1797
    %v2650 = vunpack.c.h.b16 %v1797
    %v2651 = vunpack.c.l.b16 %v1798
    %v2652 = vunpack.c.h.b16 %v1798
    %v2653 = vunpack.c.l.b16 %v1799
    %v2654 = vunpack.c.h.b16 %v1799
    %v2655 = vunpack.c.l.b16 %v1800
    %v2656 = vunpack.c.h.b16 %v1800
    %v2657 = vunpack.c.l.b16 %v1801
    %v2658 = vunpack.c.h.b16 %v1801
    %v2659 = vunpack.c.l.b16 %v1802
    %v2660 = vunpack.c.h.b16 %v1802
    %v2661 = vunpack.c.l.b16 %v1803
    %v2662 = vunpack.c.h.b16 %v1803
    %v2663 = vunpack.c.l.b16 %v1804
    %v2664 = vunpack.c.h.b16 %v1804
    %v2665 = vunpack.c.l.b16 %v1805
    %v2666 = vunpack.c.h.b16 %v1805
    %v2667 = vunpack.c.l.b16 %v1806
    %v2668 = vunpack.c.h.b16 %v1806
    %v2669 = vunpack.c.l.b16 %v1807
    %v2670 = vunpack.c.h.b16 %v1807
    %v2671 = vunpack.c.l.b16 %v1808
    %v2672 = vunpack.c.h.b16 %v1808
    %v2673 = vunpack.c.l.b16 %v1809
    %v2674 = vunpack.c.h.b16 %v1809
    %v2675 = vunpack.c.l.b16 %v1810
    %v2676 = vunpack.c.h.b16 %v1810
    %v2677 = vunpack.c.l.b16 %v1811
    %v2678 = vunpack.c.h.b16 %v1811
    %v2679 = vunpack.c.l.b16 %v1812
    %v2680 = vunpack.c.h.b16 %v1812
    %v2681 = vunpack.c.l.b16 %v1813
    %v2682 = vunpack.c.h.b16 %v1813
    %v2683 = vunpack.c.l.b16 %v1814
    %v2684 = vunpack.c.h.b16 %v1814
    %v2685 = vunpack.c.l.b16 %v1815
    %v2686 = vunpack.c.h.b16 %v1815
    %v2687 = vunpack.c.l.b16 %v1816
    %v2688 = vunpack.c.h.b16 %v1816
    %v2689 = vunpack.c.l.b16 %v1817
    %v2690 = vunpack.c.h.b16 %v1817
    %v2691 = vunpack.c.l.b16 %v1818
    %v2692 = vunpack.c.h.b16 %v1818
    %v2693 = vunpack.c.l.b16 %v1819
    %v2694 = vunpack.c.h.b16 %v1819
    %v2695 = vunpack.c.l.b16 %v1820
    %v2696 = vunpack.c.h.b16 %v1820
    %v2697 = vunpack.c.l.b16 %v1821
    %v2698 = vunpack.c.h.b16 %v1821
    %v2699 = vunpack.c.l.b16 %v1822
    %v2700 = vunpack.c.h.b16 %v1822
    %v2701 = vunpack.c.l.b16 %v1823
    %v2702 = vunpack.c.h.b16 %v1823
    %v2703 = vunpack.c.l.b16 %v1824
    %v2704 = vunpack.c.h.b16 %v1824
    %v2705 = vunpack.c.l.b16 %v1825
    %v2706 = vunpack.c.h.b16 %v1825
    %v2707 = vunpack.c.l.b16 %v1826
    %v2708 = vunpack.c.h.b16 %v1826
    %v2709 = vunpack.c.l.b16 %v1827
    %v2710 = vunpack.c.h.b16 %v1827
    %v2711 = vunpack.c.l.b16 %v1828
    %v2712 = vunpack.c.h.b16 %v1828
    %v2713 = vunpack.c.l.b16 %v1829
    %v2714 = vunpack.c.h.b16 %v1829
    %v2715 = vunpack.c.l.b16 %v1830
    %v2716 = vunpack.c.h.b16 %v1830
    %v2717 = vunpack.c.l.b16 %v1831
    %v2718 = vunpack.c.h.b16 %v1831
    %v2719 = vunpack.c.l.b16 %v1832
    %v2720 = vunpack.c.h.b16 %v1832
    %v2721 = vunpack.c.l.b16 %v1833
    %v2722 = vunpack.c.h.b16 %v1833
    %v2723 = vunpack.c.l.b16 %v1834
    %v2724 = vunpack.c.h.b16 %v1834
    %v2725 = vunpack.c.l.b16 %v1835
    %v2726 = vunpack.c.h.b16 %v1835
    %v2727 = vunpack.c.l.b16 %v1836
    %v2728 = vunpack.c.h.b16 %v1836
    %v2729 = vunpack.c.l.b16 %v1837
    %v2730 = vunpack.c.h.b16 %v1837
    %v2731 = vunpack.c.l.b16 %v1838
    %v2732 = vunpack.c.h.b16 %v1838
    %v2733 = vunpack.c.l.b16 %v1839
    %v2734 = vunpack.c.h.b16 %v1839
    %v2735 = vunpack.c.l.b16 %v1840
    %v2736 = vunpack.c.h.b16 %v1840
    %v2737 = vpack.c.b16 %v2167, %v2161
    %v2738 = vpack.c.b16 %v2168, %v2162
    %v2739 = vpack.c.b16 %v2169, %v2163
    %v2740 = vpack.c.b16 %v2170, %v2164
    %v2741 = vpack.c.b16 %v2171, %v2165
    %v2742 = vpack.c.b16 %v2172, %v2166
    %v2743 = vpack.c.b16 %v2179, %v2173
    %v2744 = vpack.c.b16 %v2180, %v2174
    %v2745 = vpack.c.b16 %v2181, %v2175
    %v2746 = vpack.c.b16 %v2182, %v2176
    %v2747 = vpack.c.b16 %v2183, %v2177
    %v2748 = vpack.c.b16 %v2184, %v2178
    %v2749 = vpack.c.b16 %v2191, %v2185
    %v2750 = vpack.c.b16 %v2192, %v2186
    %v2751 = vpack.c.b16 %v2193, %v2187
    %v2752 = vpack.c.b16 %v2194, %v2188
    %v2753 = vpack.c.b16 %v2195, %v2189
    %v2754 = vpack.c.b16 %v2196, %v2190
    %v2755 = vpack.c.b16 %v2203, %v2197
    %v2756 = vpack.c.b16 %v2204, %v2198
    %v2757 = vpack.c.b16 %v2205, %v2199
    %v2758 = vpack.c.b16 %v2206, %v2200
    %v2759 = vpack.c.b16 %v2207, %v2201
    %v2760 = vpack.c.b16 %v2208, %v2202
    %v2761 = vpack.c.b16 %v2215, %v2209
    %v2762 = vpack.c.b16 %v2216, %v2210
    %v2763 = vpack.c.b16 %v2217, %v2211
    %v2764 = vpack.c.b16 %v2218, %v2212
    %v2765 = vpack.c.b16 %v2219, %v2213
    %v2766 = vpack.c.b16 %v2220, %v2214
    %v2767 = vpack.c.b16 %v2227, %v2221
    %v2768 = vpack.c.b16 %v2228, %v2222
    %v2769 = vpack.c.b16 %v2229, %v2223
    %v2770 = vpack.c.b16 %v2230, %v2224
    %v2771 = vpack.c.b16 %v2231, %v2225
    %v2772 = vpack.c.b16 %v2232, %v2226
    %v2773 = vpack.c.b16 %v2239, %v2233
    %v2774 = vpack.c.b16 %v2240, %v2234
    %v2775 = vpack.c.b16 %v2241, %v2235
    %v2776 = vpack.c.b16 %v2242, %v2236
    %v2777 = vpack.c.b16 %v2243, %v2237
    %v2778 = vpack.c.b16 %v2244, %v2238
    %v2779 = vpack.c.b16 %v2251, %v2245
    %v2780 = vpack.c.b16 %v2252, %v2246
    %v2781 = vpack.c.b16 %v2253, %v2247
    %v2782 = vpack.c.b16 %v2254, %v2248
    %v2783 = vpack.c.b16 %v2255, %v2249
    %v2784 = vpack.c.b16 %v2256, %v2250
    %v2785 = vpack.c.b16 %v2263, %v2257
    %v2786 = vpack.c.b16 %v2264, %v2258
    %v2787 = vpack.c.b16 %v2265, %v2259
    %v2788 = vpack.c.b16 %v2266, %v2260
    %v2789 = vpack.c.b16 %v2267, %v2261
    %v2790 = vpack.c.b16 %v2268, %v2262
    %v2791 = vpack.c.b16 %v2275, %v2269
    %v2792 = vpack.c.b16 %v2276, %v2270
    %v2793 = vpack.c.b16 %v2277, %v2271
    %v2794 = vpack.c.b16 %v2278, %v2272
    %v2795 = vpack.c.b16 %v2279, %v2273
    %v2796 = vpack.c.b16 %v2280, %v2274
    %v2797 = vpack.c.b16 %v2287, %v2281
    %v2798 = vpack.c.b16 %v2288, %v2282
    %v2799 = vpack.c.b16 %v2289, %v2283
    %v2800 = vpack.c.b16 %v2290, %v2284
    %v2801 = vpack.c.b16 %v2291, %v2285
    %v2802 = vpack.c.b16 %v2292, %v2286
    %v2803 = vpack.c.b16 %v2299, %v2293
    %v2804 = vpack.c.b16 %v2300, %v2294
    %v2805 = vpack.c.b16 %v2301, %v2295
    %v2806 = vpack.c.b16 %v2302, %v2296
    %v2807 = vpack.c.b16 %v2303, %v2297
    %v2808 = vpack.c.b16 %v2304, %v2298
    %v2809 = vpack.c.b16 %v2311, %v2305
    %v2810 = vpack.c.b16 %v2312, %v2306
    %v2811 = vpack.c.b16 %v2313, %v2307
    %v2812 = vpack.c.b16 %v2314, %v2308
    %v2813 = vpack.c.b16 %v2315, %v2309
    %v2814 = vpack.c.b16 %v2316, %v2310
    %v2815 = vpack.c.b16 %v2323, %v2317
    %v2816 = vpack.c.b16 %v2324, %v2318
    %v2817 = vpack.c.b16 %v2325, %v2319
    %v2818 = vpack.c.b16 %v2326, %v2320
    %v2819 = vpack.c.b16 %v2327, %v2321
    %v2820 = vpack.c.b16 %v2328, %v2322
    %v2821 = vpack.c.b16 %v2335, %v2329
    %v2822 = vpack.c.b16 %v2336, %v2330
    %v2823 = vpack.c.b16 %v2337, %v2331
    %v2824 = vpack.c.b16 %v2338, %v2332
    %v2825 = vpack.c.b16 %v2339, %v2333
    %v2826 = vpack.c.b16 %v2340, %v2334
    %v2827 = vpack.c.b16 %v2347, %v2341
    %v2828 = vpack.c.b16 %v2348, %v2342
    %v2829 = vpack.c.b16 %v2349, %v2343
    %v2830 = vpack.c.b16 %v2350, %v2344
    %v2831 = vpack.c.b16 %v2351, %v2345
    %v2832 = vpack.c.b16 %v2352, %v2346
    %v2833 = vpack.c.b16 %v2359, %v2353
    %v2834 = vpack.c.b16 %v2360, %v2354
    %v2835 = vpack.c.b16 %v2361, %v2355
    %v2836 = vpack.c.b16 %v2362, %v2356
    %v2837 = vpack.c.b16 %v2363, %v2357
    %v2838 = vpack.c.b16 %v2364, %v2358
    %v2839 = vpack.c.b16 %v2371, %v2365
    %v2840 = vpack.c.b16 %v2372, %v2366
    %v2841 = vpack.c.b16 %v2373, %v2367
    %v2842 = vpack.c.b16 %v2374, %v2368
    %v2843 = vpack.c.b16 %v2375, %v2369
    %v2844 = vpack.c.b16 %v2376, %v2370
    %v2845 = vpack.c.b16 %v2383, %v2377
    %v2846 = vpack.c.b16 %v2384, %v2378
    %v2847 = vpack.c.b16 %v2385, %v2379
    %v2848 = vpack.c.b16 %v2386, %v2380
    %v2849 = vpack.c.b16 %v2387, %v2381
    %v2850 = vpack.c.b16 %v2388, %v2382
    %v2851 = vpack.c.b16 %v2395, %v2389
    %v2852 = vpack.c.b16 %v2396, %v2390
    %v2853 = vpack.c.b16 %v2397, %v2391
    %v2854 = vpack.c.b16 %v2398, %v2392
    %v2855 = vpack.c.b16 %v2399, %v2393
    %v2856 = vpack.c.b16 %v2400, %v2394
    %v2857 = vpack.c.b16 %v2407, %v2401
    %v2858 = vpack.c.b16 %v2408, %v2402
    %v2859 = vpack.c.b16 %v2409, %v2403
    %v2860 = vpack.c.b16 %v2410, %v2404
    %v2861 = vpack.c.b16 %v2411, %v2405
    %v2862 = vpack.c.b16 %v2412, %v2406
    %v2863 = vpack.c.b16 %v2419, %v2413
    %v2864 = vpack.c.b16 %v2420, %v2414
    %v2865 = vpack.c.b16 %v2421, %v2415
    %v2866 = vpack.c.b16 %v2422, %v2416
    %v2867 = vpack.c.b16 %v2423, %v2417
    %v2868 = vpack.c.b16 %v2424, %v2418
    %v2869 = vpack.c.b16 %v2431, %v2425
    %v2870 = vpack.c.b16 %v2432, %v2426
    %v2871 = vpack.c.b16 %v2433, %v2427
    %v2872 = vpack.c.b16 %v2434, %v2428
    %v2873 = vpack.c.b16 %v2435, %v2429
    %v2874 = vpack.c.b16 %v2436, %v2430
    %v2875 = vpack.c.b16 %v2443, %v2437
    %v2876 = vpack.c.b16 %v2444, %v2438
    %v2877 = vpack.c.b16 %v2445, %v2439
    %v2878 = vpack.c.b16 %v2446, %v2440
    %v2879 = vpack.c.b16 %v2447, %v2441
    %v2880 = vpack.c.b16 %v2448, %v2442
    %v2881 = vpack.c.b16 %v2455, %v2449
    %v2882 = vpack.c.b16 %v2456, %v2450
    %v2883 = vpack.c.b16 %v2457, %v2451
    %v2884 = vpack.c.b16 %v2458, %v2452
    %v2885 = vpack.c.b16 %v2459, %v2453
    %v2886 = vpack.c.b16 %v2460, %v2454
    %v2887 = vpack.c.b16 %v2467, %v2461
    %v2888 = vpack.c.b16 %v2468, %v2462
    %v2889 = vpack.c.b16 %v2469, %v2463
    %v2890 = vpack.c.b16 %v2470, %v2464
    %v2891 = vpack.c.b16 %v2471, %v2465
    %v2892 = vpack.c.b16 %v2472, %v2466
    %v2893 = vpack.c.b16 %v2479, %v2473
    %v2894 = vpack.c.b16 %v2480, %v2474
    %v2895 = vpack.c.b16 %v2481, %v2475
    %v2896 = vpack.c.b16 %v2482, %v2476
    %v2897 = vpack.c.b16 %v2483, %v2477
    %v2898 = vpack.c.b16 %v2484, %v2478
    %v2899 = vpack.c.b16 %v2491, %v2485
    %v2900 = vpack.c.b16 %v2492, %v2486
    %v2901 = vpack.c.b16 %v2493, %v2487
    %v2902 = vpack.c.b16 %v2494, %v2488
    %v2903 = vpack.c.b16 %v2495, %v2489
    %v2904 = vpack.c.b16 %v2496, %v2490
    %v2905 = vpack.c.b16 %v2503, %v2497
    %v2906 = vpack.c.b16 %v2504, %v2498
    %v2907 = vpack.c.b16 %v2505, %v2499
    %v2908 = vpack.c.b16 %v2506, %v2500
    %v2909 = vpack.c.b16 %v2507, %v2501
    %v2910 = vpack.c.b16 %v2508, %v2502
    %v2911 = vpack.c.b16 %v2515, %v2509
    %v2912 = vpack.c.b16 %v2516, %v2510
    %v2913 = vpack.c.b16 %v2517, %v2511
    %v2914 = vpack.c.b16 %v2518, %v2512
    %v2915 = vpack.c.b16 %v2519, %v2513
    %v2916 = vpack.c.b16 %v2520, %v2514
    %v2917 = vpack.c.b16 %v2527, %v2521
    %v2918 = vpack.c.b16 %v2528, %v2522
    %v2919 = vpack.c.b16 %v2529, %v2523
    %v2920 = vpack.c.b16 %v2530, %v2524
    %v2921 = vpack.c.b16 %v2531, %v2525
    %v2922 = vpack.c.b16 %v2532, %v2526
    %v2923 = vpack.c.b16 %v2539, %v2533
    %v2924 = vpack.c.b16 %v2540, %v2534
    %v2925 = vpack.c.b16 %v2541, %v2535
    %v2926 = vpack.c.b16 %v2542, %v2536
    %v2927 = vpack.c.b16 %v2543, %v2537
    %v2928 = vpack.c.b16 %v2544, %v2538
    %v2929 = vpack.c.b16 %v2551, %v2545
    %v2930 = vpack.c.b16 %v2552, %v2546
    %v2931 = vpack.c.b16 %v2553, %v2547
    %v2932 = vpack.c.b16 %v2554, %v2548
    %v2933 = vpack.c.b16 %v2555, %v2549
    %v2934 = vpack.c.b16 %v2556, %v2550
    %v2935 = vpack.c.b16 %v2563, %v2557
    %v2936 = vpack.c.b16 %v2564, %v2558
    %v2937 = vpack.c.b16 %v2565, %v2559
    %v2938 = vpack.c.b16 %v2566, %v2560
    %v2939 = vpack.c.b16 %v2567, %v2561
    %v2940 = vpack.c.b16 %v2568, %v2562
    %v2941 = vpack.c.b16 %v2575, %v2569
    %v2942 = vpack.c.b16 %v2576, %v2570
    %v2943 = vpack.c.b16 %v2577, %v2571
    %v2944 = vpack.c.b16 %v2578, %v2572
    %v2945 = vpack.c.b16 %v2579, %v2573
    %v2946 = vpack.c.b16 %v2580, %v2574
    %v2947 = vpack.c.b16 %v2587, %v2581
    %v2948 = vpack.c.b16 %v2588, %v2582
    %v2949 = vpack.c.b16 %v2589, %v2583
    %v2950 = vpack.c.b16 %v2590, %v2584
    %v2951 = vpack.c.b16 %v2591, %v2585
    %v2952 = vpack.c.b16 %v2592, %v2586
    %v2953 = vpack.c.b16 %v2599, %v2593
    %v2954 = vpack.c.b16 %v2600, %v2594
    %v2955 = vpack.c.b16 %v2601, %v2595
    %v2956 = vpack.c.b16 %v2602, %v2596
    %v2957 = vpack.c.b16 %v2603, %v2597
    %v2958 = vpack.c.b16 %v2604, %v2598
    %v2959 = vpack.c.b16 %v2611, %v2605
    %v2960 = vpack.c.b16 %v2612, %v2606
    %v2961 = vpack.c.b16 %v2613, %v2607
    %v2962 = vpack.c.b16 %v2614, %v2608
    %v2963 = vpack.c.b16 %v2615, %v2609
    %v2964 = vpack.c.b16 %v2616, %v2610
    %v2965 = vpack.c.b16 %v2623, %v2617
    %v2966 = vpack.c.b16 %v2624, %v2618
    %v2967 = vpack.c.b16 %v2625, %v2619
    %v2968 = vpack.c.b16 %v2626, %v2620
    %v2969 = vpack.c.b16 %v2627, %v2621
    %v2970 = vpack.c.b16 %v2628, %v2622
    %v2971 = vpack.c.b16 %v2635, %v2629
    %v2972 = vpack.c.b16 %v2636, %v2630
    %v2973 = vpack.c.b16 %v2637, %v2631
    %v2974 = vpack.c.b16 %v2638, %v2632
    %v2975 = vpack.c.b16 %v2639, %v2633
    %v2976 = vpack.c.b16 %v2640, %v2634
    %v2977 = vpack.c.b16 %v2647, %v2641
    %v2978 = vpack.c.b16 %v2648, %v2642
    %v2979 = vpack.c.b16 %v2649, %v2643
    %v2980 = vpack.c.b16 %v2650, %v2644
    %v2981 = vpack.c.b16 %v2651, %v2645
    %v2982 = vpack.c.b16 %v2652, %v2646
    %v2983 = vpack.c.b16 %v2659, %v2653
    %v2984 = vpack.c.b16 %v2660, %v2654
    %v2985 = vpack.c.b16 %v2661, %v2655
    %v2986 = vpack.c.b16 %v2662, %v2656
    %v2987 = vpack.c.b16 %v2663, %v2657
    %v2988 = vpack.c.b16 %v2664, %v2658
    %v2989 = vpack.c.b16 %v2671, %v2665
    %v2990 = vpack.c.b16 %v2672, %v2666
    %v2991 = vpack.c.b16 %v2673, %v2667
    %v2992 = vpack.c.b16 %v2674, %v2668
    %v2993 = vpack.c.b16 %v2675, %v2669
    %v2994 = vpack.c.b16 %v2676, %v2670
    %v2995 = vpack.c.b16 %v2683, %v2677
    %v2996 = vpack.c.b16 %v2684, %v2678
    %v2997 = vpack.c.b16 %v2685, %v2679
    %v2998 = vpack.c.b16 %v2686, %v2680
    %v2999 = vpack.c.b16 %v2687, %v2681
    %v3000 = vpack.c.b16 %v2688, %v2682
    %v3001 = vpack.c.b16 %v2695, %v2689
    %v3002 = vpack.c.b16 %v2696, %v2690
    %v3003 = vpack.c.b16 %v2697, %v2691
    %v3004 = vpack.c.b16 %v2698, %v2692
    %v3005 = vpack.c.b16 %v2699, %v2693
    %v3006 = vpack.c.b16 %v2700, %v2694
    %v3007 = vpack.c.b16 %v2707, %v2701
    %v3008 = vpack.c.b16 %v2708, %v2702
    %v3009 = vpack.c.b16 %v2709, %v2703
    %v3010 = vpack.c.b16 %v2710, %v2704
    %v3011 = vpack.c.b16 %v2711, %v2705
    %v3012 = vpack.c.b16 %v2712, %v2706
    %v3013 = vpack.c.b16 %v2719, %v2713
    %v3014 = vpack.c.b16 %v2720, %v2714
    %v3015 = vpack.c.b16 %v2721, %v2715
    %v3016 = vpack.c.b16 %v2722, %v2716
    %v3017 = vpack.c.b16 %v2723, %v2717
    %v3018 = vpack.c.b16 %v2724, %v2718
    %v3019 = vpack.c.b16 %v2731, %v2725
    %v3020 = vpack.c.b16 %v2732, %v2726
    %v3021 = vpack.c.b16 %v2733, %v2727
    %v3022 = vpack.c.b16 %v2734, %v2728
    %v3023 = vpack.c.b16 %v2735, %v2729
    %v3024 = vpack.c.b16 %v2736, %v2730
    %3313 = vmatprep.subr.bf16.mxu0 %v2780
    %3314 = vmatpush1.bf16.msra.mxu0 %v2779
    %3315 = vmatprep.subr.bf16.mxu0 %v2774
    %3316 = vmatpush1.bf16.msra.mxu0 %v2773
    %3317 = vmatprep.subr.bf16.mxu0 %v2768
    %3318 = vmatpush1.bf16.msra.mxu0 %v2767
    %3319 = vmatprep.subr.bf16.mxu0 %v2762
    %3320 = vmatpush1.bf16.msra.mxu0 %v2761
    %3321 = vmatprep.subr.bf16.mxu0 %v2756
    %3322 = vmatpush1.bf16.msra.mxu0 %v2755
    %3323 = vmatprep.subr.bf16.mxu0 %v2750
    %3324 = vmatpush1.bf16.msra.mxu0 %v2749
    %3325 = vmatprep.subr.bf16.mxu0 %v2744
    %3326 = vmatpush1.bf16.msra.mxu0 %v2743
    %3327 = vmatprep.subr.bf16.mxu0 %v2738
    %3328 = vmatpush1.bf16.msra.mxu0 %v2737
    %3329 = vmatprep.subr.bf16.mxu0 %v2828
    %3330 = vmatpush2.bf16.msra.mxu0 %v2827
    %3331 = vmatprep.subr.bf16.mxu0 %v2822
    %3332 = vmatpush2.bf16.msra.mxu0 %v2821
    %3333 = vmatprep.subr.bf16.mxu0 %v2816
    %3334 = vmatpush2.bf16.msra.mxu0 %v2815
    %3335 = vmatprep.subr.bf16.mxu0 %v2810
    %3336 = vmatpush2.bf16.msra.mxu0 %v2809
    %3337 = vmatprep.subr.bf16.mxu0 %v2804
    %3338 = vmatpush2.bf16.msra.mxu0 %v2803
    %3339 = vmatprep.subr.bf16.mxu0 %v2798
    %3340 = vmatpush2.bf16.msra.mxu0 %v2797
    %3341 = vmatprep.subr.bf16.mxu0 %v2792
    %3342 = vmatpush2.bf16.msra.mxu0 %v2791
    %3343 = vmatprep.subr.bf16.mxu0 %v2786
    %3344 = vmatpush2.bf16.msra.mxu0 %v2785
    %3345 = vmatprep.mubr.bf16.mxu0 %v1548
    %3346 = vmatmul.mubr.bf16.gmra.mxu0 %v1547
    %v3347 = vpop.f32.mrf.mxu0
    %v3348 = vadd.f32 %v1846, %v3347
    %v3349 = vpop.f32.mrf.mxu0
    %v3350 = vadd.f32 %v1850, %v3349
    %v3351 = vpop.f32.mrf.mxu0
    %v3352 = vpop.f32.mrf.mxu0
    %3353 = vdwg.mxu0
    %3354 = vmatprep.subr.bf16.mxu0 %v2876
    %3355 = vmatpush1.bf16.msra.mxu0 %v2875
    %3356 = vmatprep.subr.bf16.mxu0 %v2870
    %3357 = vmatpush1.bf16.msra.mxu0 %v2869
    %3358 = vmatprep.subr.bf16.mxu0 %v2864
    %3359 = vmatpush1.bf16.msra.mxu0 %v2863
    %3360 = vmatprep.subr.bf16.mxu0 %v2858
    %3361 = vmatpush1.bf16.msra.mxu0 %v2857
    %3362 = vmatprep.subr.bf16.mxu0 %v2852
    %3363 = vmatpush1.bf16.msra.mxu0 %v2851
    %3364 = vmatprep.subr.bf16.mxu0 %v2846
    %3365 = vmatpush1.bf16.msra.mxu0 %v2845
    %3366 = vmatprep.subr.bf16.mxu0 %v2840
    %3367 = vmatpush1.bf16.msra.mxu0 %v2839
    %3368 = vmatprep.subr.bf16.mxu0 %v2834
    %3369 = vmatpush1.bf16.msra.mxu0 %v2833
    %3370 = vmatprep.subr.bf16.mxu0 %v2924
    %3371 = vmatpush2.bf16.msra.mxu0 %v2923
    %3372 = vmatprep.subr.bf16.mxu0 %v2918
    %3373 = vmatpush2.bf16.msra.mxu0 %v2917
    %3374 = vmatprep.subr.bf16.mxu0 %v2912
    %3375 = vmatpush2.bf16.msra.mxu0 %v2911
    %3376 = vmatprep.subr.bf16.mxu0 %v2906
    %3377 = vmatpush2.bf16.msra.mxu0 %v2905
    %3378 = vmatprep.subr.bf16.mxu0 %v2900
    %3379 = vmatpush2.bf16.msra.mxu0 %v2899
    %3380 = vmatprep.subr.bf16.mxu0 %v2894
    %3381 = vmatpush2.bf16.msra.mxu0 %v2893
    %3382 = vmatprep.subr.bf16.mxu0 %v2888
    %3383 = vmatpush2.bf16.msra.mxu0 %v2887
    %3384 = vmatprep.subr.bf16.mxu0 %v2882
    %3385 = vmatpush2.bf16.msra.mxu0 %v2881
    %3386 = vmatprep.mubr.bf16.mxu0 %v1550
    %3387 = vmatmul.mubr.bf16.gmra.mxu0 %v1549
    %v3388 = vpop.f32.mrf.mxu0
    %v3389 = vadd.f32 %v3348, %v3388
    %v3390 = vpop.f32.mrf.mxu0
    %v3391 = vadd.f32 %v3350, %v3390
    %v3392 = vpop.f32.mrf.mxu0
    %v3393 = vpop.f32.mrf.mxu0
    %3394 = vdwg.mxu0
    %3395 = vmatprep.subr.bf16.mxu0 %v2972
    %3396 = vmatpush1.bf16.msra.mxu0 %v2971
    %3397 = vmatprep.subr.bf16.mxu0 %v2966
    %3398 = vmatpush1.bf16.msra.mxu0 %v2965
    %3399 = vmatprep.subr.bf16.mxu0 %v2960
    %3400 = vmatpush1.bf16.msra.mxu0 %v2959
    %3401 = vmatprep.subr.bf16.mxu0 %v2954
    %3402 = vmatpush1.bf16.msra.mxu0 %v2953
    %3403 = vmatprep.subr.bf16.mxu0 %v2948
    %3404 = vmatpush1.bf16.msra.mxu0 %v2947
    %3405 = vmatprep.subr.bf16.mxu0 %v2942
    %3406 = vmatpush1.bf16.msra.mxu0 %v2941
    %3407 = vmatprep.subr.bf16.mxu0 %v2936
    %3408 = vmatpush1.bf16.msra.mxu0 %v2935
    %3409 = vmatprep.subr.bf16.mxu0 %v2930
    %3410 = vmatpush1.bf16.msra.mxu0 %v2929
    %3411 = vmatprep.subr.bf16.mxu0 %v3020
    %3412 = vmatpush2.bf16.msra.mxu0 %v3019
    %3413 = vmatprep.subr.bf16.mxu0 %v3014
    %3414 = vmatpush2.bf16.msra.mxu0 %v3013
    %3415 = vmatprep.subr.bf16.mxu0 %v3008
    %3416 = vmatpush2.bf16.msra.mxu0 %v3007
    %3417 = vmatprep.subr.bf16.mxu0 %v3002
    %3418 = vmatpush2.bf16.msra.mxu0 %v3001
    %3419 = vmatprep.subr.bf16.mxu0 %v2996
    %3420 = vmatpush2.bf16.msra.mxu0 %v2995
    %3421 = vmatprep.subr.bf16.mxu0 %v2990
    %3422 = vmatpush2.bf16.msra.mxu0 %v2989
    %3423 = vmatprep.subr.bf16.mxu0 %v2984
    %3424 = vmatpush2.bf16.msra.mxu0 %v2983
    %3425 = vmatprep.subr.bf16.mxu0 %v2978
    %3426 = vmatpush2.bf16.msra.mxu0 %v2977
    %3427 = vmatprep.mubr.bf16.mxu0 %v1552
    %3428 = vmatmul.mubr.bf16.gmra.mxu0 %v1551
    %v3429 = vpop.f32.mrf.mxu0
    %v3430 = vadd.f32 %v3389, %v3429
    %v3431 = vpop.f32.mrf.mxu0
    %v3432 = vadd.f32 %v3391, %v3431
    %v3433 = vpop.f32.mrf.mxu0
    %v3434 = vpop.f32.mrf.mxu0
    %3435 = vdwg.mxu0
    %3436 = vmatprep.subr.bf16.mxu0 %v2782
    %3437 = vmatpush1.bf16.msra.mxu0 %v2781
    %3438 = vmatprep.subr.bf16.mxu0 %v2776
    %3439 = vmatpush1.bf16.msra.mxu0 %v2775
    %3440 = vmatprep.subr.bf16.mxu0 %v2770
    %3441 = vmatpush1.bf16.msra.mxu0 %v2769
    %3442 = vmatprep.subr.bf16.mxu0 %v2764
    %3443 = vmatpush1.bf16.msra.mxu0 %v2763
    %3444 = vmatprep.subr.bf16.mxu0 %v2758
    %3445 = vmatpush1.bf16.msra.mxu0 %v2757
    %3446 = vmatprep.subr.bf16.mxu0 %v2752
    %3447 = vmatpush1.bf16.msra.mxu0 %v2751
    %3448 = vmatprep.subr.bf16.mxu0 %v2746
    %3449 = vmatpush1.bf16.msra.mxu0 %v2745
    %3450 = vmatprep.subr.bf16.mxu0 %v2740
    %3451 = vmatpush1.bf16.msra.mxu0 %v2739
    %3452 = vmatprep.subr.bf16.mxu0 %v2830
    %3453 = vmatpush2.bf16.msra.mxu0 %v2829
    %3454 = vmatprep.subr.bf16.mxu0 %v2824
    %3455 = vmatpush2.bf16.msra.mxu0 %v2823
    %3456 = vmatprep.subr.bf16.mxu0 %v2818
    %3457 = vmatpush2.bf16.msra.mxu0 %v2817
    %3458 = vmatprep.subr.bf16.mxu0 %v2812
    %3459 = vmatpush2.bf16.msra.mxu0 %v2811
    %3460 = vmatprep.subr.bf16.mxu0 %v2806
    %3461 = vmatpush2.bf16.msra.mxu0 %v2805
    %3462 = vmatprep.subr.bf16.mxu0 %v2800
    %3463 = vmatpush2.bf16.msra.mxu0 %v2799
    %3464 = vmatprep.subr.bf16.mxu0 %v2794
    %3465 = vmatpush2.bf16.msra.mxu0 %v2793
    %3466 = vmatprep.subr.bf16.mxu0 %v2788
    %3467 = vmatpush2.bf16.msra.mxu0 %v2787
    %3468 = vmatprep.mubr.bf16.mxu0 %v1548
    %3469 = vmatmul.mubr.bf16.gmra.mxu0 %v1547
    %v3470 = vpop.f32.mrf.mxu0
    %v3471 = vadd.f32 %v1854, %v3470
    %v3472 = vpop.f32.mrf.mxu0
    %v3473 = vadd.f32 %v1858, %v3472
    %v3474 = vpop.f32.mrf.mxu0
    %v3475 = vpop.f32.mrf.mxu0
    %3476 = vdwg.mxu0
    %3477 = vmatprep.subr.bf16.mxu0 %v2878
    %3478 = vmatpush1.bf16.msra.mxu0 %v2877
    %3479 = vmatprep.subr.bf16.mxu0 %v2872
    %3480 = vmatpush1.bf16.msra.mxu0 %v2871
    %3481 = vmatprep.subr.bf16.mxu0 %v2866
    %3482 = vmatpush1.bf16.msra.mxu0 %v2865
    %3483 = vmatprep.subr.bf16.mxu0 %v2860
    %3484 = vmatpush1.bf16.msra.mxu0 %v2859
    %3485 = vmatprep.subr.bf16.mxu0 %v2854
    %3486 = vmatpush1.bf16.msra.mxu0 %v2853
    %3487 = vmatprep.subr.bf16.mxu0 %v2848
    %3488 = vmatpush1.bf16.msra.mxu0 %v2847
    %3489 = vmatprep.subr.bf16.mxu0 %v2842
    %3490 = vmatpush1.bf16.msra.mxu0 %v2841
    %3491 = vmatprep.subr.bf16.mxu0 %v2836
    %3492 = vmatpush1.bf16.msra.mxu0 %v2835
    %3493 = vmatprep.subr.bf16.mxu0 %v2926
    %3494 = vmatpush2.bf16.msra.mxu0 %v2925
    %3495 = vmatprep.subr.bf16.mxu0 %v2920
    %3496 = vmatpush2.bf16.msra.mxu0 %v2919
    %3497 = vmatprep.subr.bf16.mxu0 %v2914
    %3498 = vmatpush2.bf16.msra.mxu0 %v2913
    %3499 = vmatprep.subr.bf16.mxu0 %v2908
    %3500 = vmatpush2.bf16.msra.mxu0 %v2907
    %3501 = vmatprep.subr.bf16.mxu0 %v2902
    %3502 = vmatpush2.bf16.msra.mxu0 %v2901
    %3503 = vmatprep.subr.bf16.mxu0 %v2896
    %3504 = vmatpush2.bf16.msra.mxu0 %v2895
    %3505 = vmatprep.subr.bf16.mxu0 %v2890
    %3506 = vmatpush2.bf16.msra.mxu0 %v2889
    %3507 = vmatprep.subr.bf16.mxu0 %v2884
    %3508 = vmatpush2.bf16.msra.mxu0 %v2883
    %3509 = vmatprep.mubr.bf16.mxu0 %v1550
    %3510 = vmatmul.mubr.bf16.gmra.mxu0 %v1549
    %v3511 = vpop.f32.mrf.mxu0
    %v3512 = vadd.f32 %v3471, %v3511
    %v3513 = vpop.f32.mrf.mxu0
    %v3514 = vadd.f32 %v3473, %v3513
    %v3515 = vpop.f32.mrf.mxu0
    %v3516 = vpop.f32.mrf.mxu0
    %3517 = vdwg.mxu0
    %3518 = vmatprep.subr.bf16.mxu0 %v2974
    %3519 = vmatpush1.bf16.msra.mxu0 %v2973
    %3520 = vmatprep.subr.bf16.mxu0 %v2968
    %3521 = vmatpush1.bf16.msra.mxu0 %v2967
    %3522 = vmatprep.subr.bf16.mxu0 %v2962
    %3523 = vmatpush1.bf16.msra.mxu0 %v2961
    %3524 = vmatprep.subr.bf16.mxu0 %v2956
    %3525 = vmatpush1.bf16.msra.mxu0 %v2955
    %3526 = vmatprep.subr.bf16.mxu0 %v2950
    %3527 = vmatpush1.bf16.msra.mxu0 %v2949
    %3528 = vmatprep.subr.bf16.mxu0 %v2944
    %3529 = vmatpush1.bf16.msra.mxu0 %v2943
    %3530 = vmatprep.subr.bf16.mxu0 %v2938
    %3531 = vmatpush1.bf16.msra.mxu0 %v2937
    %3532 = vmatprep.subr.bf16.mxu0 %v2932
    %3533 = vmatpush1.bf16.msra.mxu0 %v2931
    %3534 = vmatprep.subr.bf16.mxu0 %v3022
    %3535 = vmatpush2.bf16.msra.mxu0 %v3021
    %3536 = vmatprep.subr.bf16.mxu0 %v3016
    %3537 = vmatpush2.bf16.msra.mxu0 %v3015
    %3538 = vmatprep.subr.bf16.mxu0 %v3010
    %3539 = vmatpush2.bf16.msra.mxu0 %v3009
    %3540 = vmatprep.subr.bf16.mxu0 %v3004
    %3541 = vmatpush2.bf16.msra.mxu0 %v3003
    %3542 = vmatprep.subr.bf16.mxu0 %v2998
    %3543 = vmatpush2.bf16.msra.mxu0 %v2997
    %3544 = vmatprep.subr.bf16.mxu0 %v2992
    %3545 = vmatpush2.bf16.msra.mxu0 %v2991
    %3546 = vmatprep.subr.bf16.mxu0 %v2986
    %3547 = vmatpush2.bf16.msra.mxu0 %v2985
    %3548 = vmatprep.subr.bf16.mxu0 %v2980
    %3549 = vmatpush2.bf16.msra.mxu0 %v2979
    %3550 = vmatprep.mubr.bf16.mxu0 %v1552
    %3551 = vmatmul.mubr.bf16.gmra.mxu0 %v1551
    %v3552 = vpop.f32.mrf.mxu0
    %v3553 = vadd.f32 %v3512, %v3552
    %v3554 = vpop.f32.mrf.mxu0
    %v3555 = vadd.f32 %v3514, %v3554
    %v3556 = vpop.f32.mrf.mxu0
    %v3557 = vpop.f32.mrf.mxu0
    %3558 = vdwg.mxu0
    %3559 = vmatprep.subr.bf16.mxu0 %v2784
    %3560 = vmatpush1.bf16.msra.mxu0 %v2783
    %3561 = vmatprep.subr.bf16.mxu0 %v2778
    %3562 = vmatpush1.bf16.msra.mxu0 %v2777
    %3563 = vmatprep.subr.bf16.mxu0 %v2772
    %3564 = vmatpush1.bf16.msra.mxu0 %v2771
    %3565 = vmatprep.subr.bf16.mxu0 %v2766
    %3566 = vmatpush1.bf16.msra.mxu0 %v2765
    %3567 = vmatprep.subr.bf16.mxu0 %v2760
    %3568 = vmatpush1.bf16.msra.mxu0 %v2759
    %3569 = vmatprep.subr.bf16.mxu0 %v2754
    %3570 = vmatpush1.bf16.msra.mxu0 %v2753
    %3571 = vmatprep.subr.bf16.mxu0 %v2748
    %3572 = vmatpush1.bf16.msra.mxu0 %v2747
    %3573 = vmatprep.subr.bf16.mxu0 %v2742
    %3574 = vmatpush1.bf16.msra.mxu0 %v2741
    %3575 = vmatprep.subr.bf16.mxu0 %v2832
    %3576 = vmatpush2.bf16.msra.mxu0 %v2831
    %3577 = vmatprep.subr.bf16.mxu0 %v2826
    %3578 = vmatpush2.bf16.msra.mxu0 %v2825
    %3579 = vmatprep.subr.bf16.mxu0 %v2820
    %3580 = vmatpush2.bf16.msra.mxu0 %v2819
    %3581 = vmatprep.subr.bf16.mxu0 %v2814
    %3582 = vmatpush2.bf16.msra.mxu0 %v2813
    %3583 = vmatprep.subr.bf16.mxu0 %v2808
    %3584 = vmatpush2.bf16.msra.mxu0 %v2807
    %3585 = vmatprep.subr.bf16.mxu0 %v2802
    %3586 = vmatpush2.bf16.msra.mxu0 %v2801
    %3587 = vmatprep.subr.bf16.mxu0 %v2796
    %3588 = vmatpush2.bf16.msra.mxu0 %v2795
    %3589 = vmatprep.subr.bf16.mxu0 %v2790
    %3590 = vmatpush2.bf16.msra.mxu0 %v2789
    %3591 = vmatprep.mubr.bf16.mxu0 %v1548
    %3592 = vmatmul.mubr.bf16.gmra.mxu0 %v1547
    %v3593 = vpop.f32.mrf.mxu0
    %v3594 = vadd.f32 %v1862, %v3593
    %v3595 = vpop.f32.mrf.mxu0
    %v3596 = vadd.f32 %v1866, %v3595
    %v3597 = vpop.f32.mrf.mxu0
    %v3598 = vpop.f32.mrf.mxu0
    %3599 = vdwg.mxu0
    %3600 = vmatprep.subr.bf16.mxu0 %v2880
    %3601 = vmatpush1.bf16.msra.mxu0 %v2879
    %3602 = vmatprep.subr.bf16.mxu0 %v2874
    %3603 = vmatpush1.bf16.msra.mxu0 %v2873
    %3604 = vmatprep.subr.bf16.mxu0 %v2868
    %3605 = vmatpush1.bf16.msra.mxu0 %v2867
    %3606 = vmatprep.subr.bf16.mxu0 %v2862
    %3607 = vmatpush1.bf16.msra.mxu0 %v2861
    %3608 = vmatprep.subr.bf16.mxu0 %v2856
    %3609 = vmatpush1.bf16.msra.mxu0 %v2855
    %3610 = vmatprep.subr.bf16.mxu0 %v2850
    %3611 = vmatpush1.bf16.msra.mxu0 %v2849
    %3612 = vmatprep.subr.bf16.mxu0 %v2844
    %3613 = vmatpush1.bf16.msra.mxu0 %v2843
    %3614 = vmatprep.subr.bf16.mxu0 %v2838
    %3615 = vmatpush1.bf16.msra.mxu0 %v2837
    %3616 = vmatprep.subr.bf16.mxu0 %v2928
    %3617 = vmatpush2.bf16.msra.mxu0 %v2927
    %3618 = vmatprep.subr.bf16.mxu0 %v2922
    %3619 = vmatpush2.bf16.msra.mxu0 %v2921
    %3620 = vmatprep.subr.bf16.mxu0 %v2916
    %3621 = vmatpush2.bf16.msra.mxu0 %v2915
    %3622 = vmatprep.subr.bf16.mxu0 %v2910
    %3623 = vmatpush2.bf16.msra.mxu0 %v2909
    %3624 = vmatprep.subr.bf16.mxu0 %v2904
    %3625 = vmatpush2.bf16.msra.mxu0 %v2903
    %3626 = vmatprep.subr.bf16.mxu0 %v2898
    %3627 = vmatpush2.bf16.msra.mxu0 %v2897
    %3628 = vmatprep.subr.bf16.mxu0 %v2892
    %3629 = vmatpush2.bf16.msra.mxu0 %v2891
    %3630 = vmatprep.subr.bf16.mxu0 %v2886
    %3631 = vmatpush2.bf16.msra.mxu0 %v2885
    %3632 = vmatprep.mubr.bf16.mxu0 %v1550
    %3633 = vmatmul.mubr.bf16.gmra.mxu0 %v1549
    %v3634 = vpop.f32.mrf.mxu0
    %v3635 = vadd.f32 %v3594, %v3634
    %v3636 = vpop.f32.mrf.mxu0
    %v3637 = vadd.f32 %v3596, %v3636
    %v3638 = vpop.f32.mrf.mxu0
    %v3639 = vpop.f32.mrf.mxu0
    %3640 = vdwg.mxu0
    %3641 = vmatprep.subr.bf16.mxu0 %v2976
    %3642 = vmatpush1.bf16.msra.mxu0 %v2975
    %3643 = vmatprep.subr.bf16.mxu0 %v2970
    %3644 = vmatpush1.bf16.msra.mxu0 %v2969
    %3645 = vmatprep.subr.bf16.mxu0 %v2964
    %3646 = vmatpush1.bf16.msra.mxu0 %v2963
    %3647 = vmatprep.subr.bf16.mxu0 %v2958
    %3648 = vmatpush1.bf16.msra.mxu0 %v2957
    %3649 = vmatprep.subr.bf16.mxu0 %v2952
    %3650 = vmatpush1.bf16.msra.mxu0 %v2951
    %3651 = vmatprep.subr.bf16.mxu0 %v2946
    %3652 = vmatpush1.bf16.msra.mxu0 %v2945
    %3653 = vmatprep.subr.bf16.mxu0 %v2940
    %3654 = vmatpush1.bf16.msra.mxu0 %v2939
    %3655 = vmatprep.subr.bf16.mxu0 %v2934
    %3656 = vmatpush1.bf16.msra.mxu0 %v2933
    %3657 = vmatprep.subr.bf16.mxu0 %v3024
    %3658 = vmatpush2.bf16.msra.mxu0 %v3023
    %3659 = vmatprep.subr.bf16.mxu0 %v3018
    %3660 = vmatpush2.bf16.msra.mxu0 %v3017
    %3661 = vmatprep.subr.bf16.mxu0 %v3012
    %3662 = vmatpush2.bf16.msra.mxu0 %v3011
    %3663 = vmatprep.subr.bf16.mxu0 %v3006
    %3664 = vmatpush2.bf16.msra.mxu0 %v3005
    %3665 = vmatprep.subr.bf16.mxu0 %v3000
    %3666 = vmatpush2.bf16.msra.mxu0 %v2999
    %3667 = vmatprep.subr.bf16.mxu0 %v2994
    %3668 = vmatpush2.bf16.msra.mxu0 %v2993
    %3669 = vmatprep.subr.bf16.mxu0 %v2988
    %3670 = vmatpush2.bf16.msra.mxu0 %v2987
    %3671 = vmatprep.subr.bf16.mxu0 %v2982
    %3672 = vmatpush2.bf16.msra.mxu0 %v2981
    %3673 = vmatprep.mubr.bf16.mxu0 %v1552
    %3674 = vmatmul.mubr.bf16.gmra.mxu0 %v1551
    %v3675 = vpop.f32.mrf.mxu0
    %v3676 = vadd.f32 %v3635, %v3675
    %v3677 = vpop.f32.mrf.mxu0
    %v3678 = vadd.f32 %v3637, %v3677
    %v3679 = vpop.f32.mrf.mxu0
    %v3680 = vpop.f32.mrf.mxu0
    %3681 = vdwg.mxu0
    %vm3682 = vcmp.ge.f32.partialorder %v3430, 0.0
    %vm3683 = vcmp.ge.f32.partialorder %v3432, 0.0
    %vm3684 = vcmp.ge.f32.partialorder %v3553, 0.0
    %vm3685 = vcmp.ge.f32.partialorder %v3555, 0.0
    %vm3686 = vcmp.ge.f32.partialorder %v3676, 0.0
    %vm3687 = vcmp.ge.f32.partialorder %v3678, 0.0
    %v3688 = vmul.f32 %v3430, 0.01
    %v3689 = vmul.f32 %v3432, 0.01
    %v3690 = vmul.f32 %v3553, 0.01
    %v3691 = vmul.f32 %v3555, 0.01
    %v3692 = vmul.f32 %v3676, 0.01
    %v3693 = vmul.f32 %v3678, 0.01
    %v3694 = vsel %vm3682, %v3430, %v3688
    %v3695 = vsel %vm3683, %v3432, %v3689
    %v3696 = vsel %vm3684, %v3553, %v3690
    %v3697 = vsel %vm3685, %v3555, %v3691
    %v3698 = vsel %vm3686, %v3676, %v3692
    %v3699 = vsel %vm3687, %v3678, %v3693
    %3700 = vst [vmem:[#allocation11] sm:$0xff] %v3694
    %3701 = vst [vmem:[#allocation11 + $0x8] sm:$0xff] %v3695
    %3702 = vst [vmem:[#allocation11 + $0x10] sm:$0xff] %v3696
    %3703 = vst [vmem:[#allocation11 + $0x18] sm:$0xff] %v3697
    %3704 = vst [vmem:[#allocation11 + $0x20] sm:$0xff] %v3698
    %3705 = vst [vmem:[#allocation11 + $0x28] sm:$0xff] %v3699
    // Predicated region
    $region42: #{tpu_custom_call.1} parent=1 // pred_check
      _
    $region43: #{tpu_custom_call.1} parent=1 // pred_check_branch
      %3707 = sbr.rel (0) target = $region45
    $region44: #{tpu_custom_call.1} parent=1 // pred_region
      %s3709 = ssub.s32 768, 768
      %3710 = vsyncadd [#allocation4], %s3709
      %s3712 = sshll.u32 [#allocation11], 4
      %s3713 = int_to_ptr.vmem [resolvable:$true] %s3712
      %3715 = dma.vmem_to_hbm [thread:$0]  %s3713, 768, %s5, [#allocation4]
    $region45: #{tpu_custom_call.1} parent=1 // pred_fallthru
      _
    // Predicated region
    $region46: #{tpu_custom_call.1} parent=1 // pred_check
      _
    $region47: #{tpu_custom_call.1} parent=1 // pred_check_branch
      %3717 = sbr.rel (0) target = $region49
    $region48: #{tpu_custom_call.1} parent=1 // pred_region
      %3718 = dma.done [#allocation4], 768
    $region49: #{tpu_custom_call.1} parent=1 // pred_fallthru
      _
    %3719 = vsyncpa [#allocation3], 1
    %3720 = vsyncpa [#allocation6], 1
    %3721 = vsyncpa [#allocation9], 1
    %3722 = vsyncpa [#allocation4], 1

// kernel: tpu_custom_call.1
$region0: #{tpu_custom_call.1}
  #allocation0 [shape = 'u32[]', space=smem, size = 0x4, offset = 0x4, fixed_abs, tag = 'smem constant byte address 0x4 - core index']
  #allocation1 [shape = 'u32[144,128]{1,0:T(1,128)}', space=vmem, size = 0x12000, scoped, tag = 'internal scratch']
  %s0 = inlined_call_operand.hbm [shape: bf16[8,512], index: 0, kind: input, shape index: {}]
  %s1 = inlined_call_operand.hbm [shape: bf16[512,768], index: 1, kind: input, shape index: {}]
  %s2 = inlined_call_operand.hbm [shape: f32[1,768], index: 2, kind: input, shape index: {}]
  %s3 = inlined_call_operand.hbm [shape: bf16[768,768], index: 3, kind: input, shape index: {}]
  %s4 = inlined_call_operand.hbm [shape: f32[1,768], index: 4, kind: input, shape index: {}]
  %s5 = inlined_call_operand.hbm [shape: f32[8,768], index: 5, kind: output, shape index: {}]
  %s6 = sld [smem:[#allocation0]]
  $region50: #{tpu_custom_call.1} parent=0
    _
  %s8 = ssub.s32 1, %s6
  %s9 = scalar_select 0, %s8, %s6
  $region1: #{tpu_custom_call.1} parent=0
    #allocation2 [shape = 'u8[8192]{0}', space=vmem, size = 0x2000, scoped, tag = 'input window, operand 0, single buffered']
    #allocation3 [shape = 's32[1]{0}', space=sflag, size = 0x4, scoped, tag = 'scoped memory for tpu_custom_call.1']
    #allocation4 [shape = 's32[1]{0}', space=sflag, size = 0x4, scoped, tag = 'scoped memory for tpu_custom_call.1']
    #allocation5 [shape = 'u8[786432]{0}', space=vmem, size = 0xc0000, scoped, tag = 'input window, operand 1, single buffered']
    #allocation6 [shape = 's32[1]{0}', space=sflag, size = 0x4, scoped, tag = 'scoped memory for tpu_custom_call.1']
    #allocation7 [shape = 'u8[3072]{0}', space=vmem, size = 0xc00, scoped, tag = 'input window, operand 2, single buffered']
    #allocation8 [shape = 'u8[1179648]{0}', space=vmem, size = 0x120000, scoped, tag = 'input window, operand 3, single buffered']
    #allocation9 [shape = 's32[1]{0}', space=sflag, size = 0x4, scoped, tag = 'scoped memory for tpu_custom_call.1']
    #allocation10 [shape = 'u8[3072]{0}', space=vmem, size = 0xc00, scoped, tag = 'input window, operand 4, single buffered']
    #allocation11 [shape = 'u8[24576]{0}', space=vmem, size = 0x6000, scoped, tag = 'output window, operand 0, single buffered']
    %10 = vsyncpa [#allocation3], 0
    %11 = vsyncpa [#allocation6], 0
    %12 = vsyncpa [#allocation9], 0
    %13 = vsyncpa [#allocation4], 0
    // Predicated region
    $region2: #{tpu_custom_call.1} parent=1 // pred_check
      _
    $region3: #{tpu_custom_call.1} parent=1 // pred_check_branch
      %15 = sbr.rel (0) target = $region5
    $region4: #{tpu_custom_call.1} parent=1 // pred_region
      %s17 = ssub.s32 256, 256
      %18 = vsyncadd [#allocation3], %s17
      %s20 = sshll.u32 [#allocation2], 4
      %s21 = int_to_ptr.vmem [resolvable:$true] %s20
      %23 = dma.hbm_to_vmem [thread:$0]  %s0, 256, %s21, [#allocation3]
    $region5: #{tpu_custom_call.1} parent=1 // pred_fallthru
      _
    // Predicated region
    $region6: #{tpu_custom_call.1} parent=1 // pred_check
      _
    $region7: #{tpu_custom_call.1} parent=1 // pred_check_branch
      %25 = sbr.rel (0) target = $region9
    $region8: #{tpu_custom_call.1} parent=1 // pred_region
      %s27 = ssub.s32 24576, 24576
      %28 = vsyncadd [#allocation6], %s27
      %s29 = sshll.u32 [#allocation5], 4
      %s30 = int_to_ptr.vmem [resolvable:$true] %s29
      %35 = dma.hbm_to_vmem [thread:$0]  %s1, 24576, %s30, [#allocation6], 384, 384, 24
    $region9: #{tpu_custom_call.1} parent=1 // pred_fallthru
      _
    // Predicated region
    $region10: #{tpu_custom_call.1} parent=1 // pred_check
      _
    $region11: #{tpu_custom_call.1} parent=1 // pred_check_branch
      %37 = sbr.rel (0) target = $region13
    $region12: #{tpu_custom_call.1} parent=1 // pred_region
      %s39 = ssub.s32 96, 96
      %40 = vsyncadd [#allocation6], %s39
      %s42 = sshll.u32 [#allocation7], 4
      %s43 = int_to_ptr.vmem [resolvable:$true] %s42
      %45 = dma.hbm_to_vmem [thread:$0]  %s2, 96, %s43, [#allocation6]
    $region13: #{tpu_custom_call.1} parent=1 // pred_fallthru
      _
    // Predicated region
    $region14: #{tpu_custom_call.1} parent=1 // pred_check
      _
    $region15: #{tpu_custom_call.1} parent=1 // pred_check_branch
      %47 = sbr.rel (0) target = $region17
    $region16: #{tpu_custom_call.1} parent=1 // pred_region
      %s49 = ssub.s32 36864, 36864
      %50 = vsyncadd [#allocation9], %s49
      %s51 = sshll.u32 [#allocation8], 4
      %s52 = int_to_ptr.vmem [resolvable:$true] %s51
      %57 = dma.hbm_to_vmem [thread:$0]  %s3, 36864, %s52, [#allocation9], 384, 384, 24
    $region17: #{tpu_custom_call.1} parent=1 // pred_fallthru
      _
    // Predicated region
    $region18: #{tpu_custom_call.1} parent=1 // pred_check
      _
    $region19: #{tpu_custom_call.1} parent=1 // pred_check_branch
      %59 = sbr.rel (0) target = $region21
    $region20: #{tpu_custom_call.1} parent=1 // pred_region
      %s61 = ssub.s32 96, 96
      %62 = vsyncadd [#allocation9], %s61
      %s64 = sshll.u32 [#allocation10], 4
      %s65 = int_to_ptr.vmem [resolvable:$true] %s64
      %67 = dma.hbm_to_vmem [thread:$0]  %s4, 96, %s65, [#allocation9]
    $region21: #{tpu_custom_call.1} parent=1 // pred_fallthru
      _
    // Predicated region
    $region22: #{tpu_custom_call.1} parent=1 // pred_check
      _
    $region23: #{tpu_custom_call.1} parent=1 // pred_check_branch
      %69 = sbr.rel (0) target = $region25
    $region24: #{tpu_custom_call.1} parent=1 // pred_region
      %70 = dma.done [#allocation3], 256
    $region25: #{tpu_custom_call.1} parent=1 // pred_fallthru
      _
    // Predicated region
    $region26: #{tpu_custom_call.1} parent=1 // pred_check
      _
    $region27: #{tpu_custom_call.1} parent=1 // pred_check_branch
      %72 = sbr.rel (0) target = $region29
    $region28: #{tpu_custom_call.1} parent=1 // pred_region
      %73 = dma.done [#allocation6], 24576
    $region29: #{tpu_custom_call.1} parent=1 // pred_fallthru
      _
    // Predicated region
    $region30: #{tpu_custom_call.1} parent=1 // pred_check
      _
    $region31: #{tpu_custom_call.1} parent=1 // pred_check_branch
      %75 = sbr.rel (0) target = $region33
    $region32: #{tpu_custom_call.1} parent=1 // pred_region
      %76 = dma.done [#allocation6], 96
    $region33: #{tpu_custom_call.1} parent=1 // pred_fallthru
      _
    // Predicated region
    $region34: #{tpu_custom_call.1} parent=1 // pred_check
      _
    $region35: #{tpu_custom_call.1} parent=1 // pred_check_branch
      %78 = sbr.rel (0) target = $region37
    $region36: #{tpu_custom_call.1} parent=1 // pred_region
      %79 = dma.done [#allocation9], 36864
    $region37: #{tpu_custom_call.1} parent=1 // pred_fallthru
      _
    // Predicated region
    $region38: #{tpu_custom_call.1} parent=1 // pred_check
      _
    $region39: #{tpu_custom_call.1} parent=1 // pred_check_branch
      %81 = sbr.rel (0) target = $region41
    $region40: #{tpu_custom_call.1} parent=1 // pred_region
      %82 = dma.done [#allocation9], 96
    $region41: #{tpu_custom_call.1} parent=1 // pred_fallthru
      _
    %v83 = vld [vmem:[#allocation2] sm:$0xff]
    %v84 = vld [vmem:[#allocation2 + $0x8] sm:$0xff]
    %v85 = vld [vmem:[#allocation5] sm:$0xff]
    %v86 = vld [vmem:[#allocation5 + $0x8] sm:$0xff]
    %v87 = vld [vmem:[#allocation5 + $0x10] sm:$0xff]
    %v88 = vld [vmem:[#allocation5 + $0x18] sm:$0xff]
    %v89 = vld [vmem:[#allocation5 + $0x20] sm:$0xff]
    %v90 = vld [vmem:[#allocation5 + $0x28] sm:$0xff]
    %v91 = vld [vmem:[#allocation5 + $0x30] sm:$0xff]
    %v92 = vld [vmem:[#allocation5 + $0x38] sm:$0xff]
    %v93 = vld [vmem:[#allocation5 + $0x40] sm:$0xff]
    %v94 = vld [vmem:[#allocation5 + $0x48] sm:$0xff]
    %v95 = vld [vmem:[#allocation5 + $0x50] sm:$0xff]
    %v96 = vld [vmem:[#allocation5 + $0x58] sm:$0xff]
    %v97 = vld [vmem:[#allocation5 + $0x60] sm:$0xff]
    %v98 = vld [vmem:[#allocation5 + $0x68] sm:$0xff]
    %v99 = vld [vmem:[#allocation5 + $0x70] sm:$0xff]
    %v100 = vld [vmem:[#allocation5 + $0x78] sm:$0xff]
    %v101 = vld [vmem:[#allocation5 + $0x80] sm:$0xff]
    %v102 = vld [vmem:[#allocation5 + $0x88] sm:$0xff]
    %v103 = vld [vmem:[#allocation5 + $0x90] sm:$0xff]
    %v104 = vld [vmem:[#allocation5 + $0x98] sm:$0xff]
    %v105 = vld [vmem:[#allocation5 + $0xa0] sm:$0xff]
    %v106 = vld [vmem:[#allocation5 + $0xa8] sm:$0xff]
    %v107 = vld [vmem:[#allocation5 + $0xb0] sm:$0xff]
    %v108 = vld [vmem:[#allocation5 + $0xb8] sm:$0xff]
    %v109 = vld [vmem:[#allocation5 + $0xc0] sm:$0xff]
    %v110 = vld [vmem:[#allocation5 + $0xc8] sm:$0xff]
    %v111 = vld [vmem:[#allocation5 + $0xd0] sm:$0xff]
    %v112 = vld [vmem:[#allocation5 + $0xd8] sm:$0xff]
    %v113 = vld [vmem:[#allocation5 + $0xe0] sm:$0xff]
    %v114 = vld [vmem:[#allocation5 + $0xe8] sm:$0xff]
    %v115 = vld [vmem:[#allocation5 + $0xf0] sm:$0xff]
    %v116 = vld [vmem:[#allocation5 + $0xf8] sm:$0xff]
    %v117 = vld [vmem:[#allocation5 + $0x100] sm:$0xff]
    %v118 = vld [vmem:[#allocation5 + $0x108] sm:$0xff]
    %v119 = vld [vmem:[#allocation5 + $0x110] sm:$0xff]
    %v120 = vld [vmem:[#allocation5 + $0x118] sm:$0xff]
    %v121 = vld [vmem:[#allocation5 + $0x120] sm:$0xff]
    %v122 = vld [vmem:[#allocation5 + $0x128] sm:$0xff]
    %v123 = vld [vmem:[#allocation5 + $0x130] sm:$0xff]
    %v124 = vld [vmem:[#allocation5 + $0x138] sm:$0xff]
    %v125 = vld [vmem:[#allocation5 + $0x140] sm:$0xff]
    %v126 = vld [vmem:[#allocation5 + $0x148] sm:$0xff]
    %v127 = vld [vmem:[#allocation5 + $0x150] sm:$0xff]
    %v128 = vld [vmem:[#allocation5 + $0x158] sm:$0xff]
    %v129 = vld [vmem:[#allocation5 + $0x160] sm:$0xff]
    %v130 = vld [vmem:[#allocation5 + $0x168] sm:$0xff]
    %v131 = vld [vmem:[#allocation5 + $0x170] sm:$0xff]
    %v132 = vld [vmem:[#allocation5 + $0x178] sm:$0xff]
    %v133 = vld [vmem:[#allocation5 + $0x180] sm:$0xff]
    %v134 = vld [vmem:[#allocation5 + $0x188] sm:$0xff]
    %v135 = vld [vmem:[#allocation5 + $0x190] sm:$0xff]
    %v136 = vld [vmem:[#allocation5 + $0x198] sm:$0xff]
    %v137 = vld [vmem:[#allocation5 + $0x1a0] sm:$0xff]
    %v138 = vld [vmem:[#allocation5 + $0x1a8] sm:$0xff]
    %v139 = vld [vmem:[#allocation5 + $0x1b0] sm:$0xff]
    %v140 = vld [vmem:[#allocation5 + $0x1b8] sm:$0xff]
    %v141 = vld [vmem:[#allocation5 + $0x1c0] sm:$0xff]
    %v142 = vld [vmem:[#allocation5 + $0x1c8] sm:$0xff]
    %v143 = vld [vmem:[#allocation5 + $0x1d0] sm:$0xff]
    %v144 = vld [vmem:[#allocation5 + $0x1d8] sm:$0xff]
    %v145 = vld [vmem:[#allocation5 + $0x1e0] sm:$0xff]
    %v146 = vld [vmem:[#allocation5 + $0x1e8] sm:$0xff]
    %v147 = vld [vmem:[#allocation5 + $0x1f0] sm:$0xff]
    %v148 = vld [vmem:[#allocation5 + $0x1f8] sm:$0xff]
    %v149 = vld [vmem:[#allocation5 + $0x200] sm:$0xff]
    %v150 = vld [vmem:[#allocation5 + $0x208] sm:$0xff]
    %v151 = vld [vmem:[#allocation5 + $0x210] sm:$0xff]
    %v152 = vld [vmem:[#allocation5 + $0x218] sm:$0xff]
    %v153 = vld [vmem:[#allocation5 + $0x220] sm:$0xff]
    %v154 = vld [vmem:[#allocation5 + $0x228] sm:$0xff]
    %v155 = vld [vmem:[#allocation5 + $0x230] sm:$0xff]
    %v156 = vld [vmem:[#allocation5 + $0x238] sm:$0xff]
    %v157 = vld [vmem:[#allocation5 + $0x240] sm:$0xff]
    %v158 = vld [vmem:[#allocation5 + $0x248] sm:$0xff]
    %v159 = vld [vmem:[#allocation5 + $0x250] sm:$0xff]
    %v160 = vld [vmem:[#allocation5 + $0x258] sm:$0xff]
    %v161 = vld [vmem:[#allocation5 + $0x260] sm:$0xff]
    %v162 = vld [vmem:[#allocation5 + $0x268] sm:$0xff]
    %v163 = vld [vmem:[#allocation5 + $0x270] sm:$0xff]
    %v164 = vld [vmem:[#allocation5 + $0x278] sm:$0xff]
    %v165 = vld [vmem:[#allocation5 + $0x280] sm:$0xff]
    %v166 = vld [vmem:[#allocation5 + $0x288] sm:$0xff]
    %v167 = vld [vmem:[#allocation5 + $0x290] sm:$0xff]
    %v168 = vld [vmem:[#allocation5 + $0x298] sm:$0xff]
    %v169 = vld [vmem:[#allocation5 + $0x2a0] sm:$0xff]
    %v170 = vld [vmem:[#allocation5 + $0x2a8] sm:$0xff]
    %v171 = vld [vmem:[#allocation5 + $0x2b0] sm:$0xff]
    %v172 = vld [vmem:[#allocation5 + $0x2b8] sm:$0xff]
    %v173 = vld [vmem:[#allocation5 + $0x2c0] sm:$0xff]
    %v174 = vld [vmem:[#allocation5 + $0x2c8] sm:$0xff]
    %v175 = vld [vmem:[#allocation5 + $0x2d0] sm:$0xff]
    %v176 = vld [vmem:[#allocation5 + $0x2d8] sm:$0xff]
    %v177 = vld [vmem:[#allocation5 + $0x2e0] sm:$0xff]
    %v178 = vld [vmem:[#allocation5 + $0x2e8] sm:$0xff]
    %v179 = vld [vmem:[#allocation5 + $0x2f0] sm:$0xff]
    %v180 = vld [vmem:[#allocation5 + $0x2f8] sm:$0xff]
    %v181 = vld [vmem:[#allocation5 + $0x300] sm:$0xff]
    %v182 = vld [vmem:[#allocation5 + $0x308] sm:$0xff]
    %v183 = vld [vmem:[#allocation5 + $0x310] sm:$0xff]
    %v184 = vld [vmem:[#allocation5 + $0x318] sm:$0xff]
    %v185 = vld [vmem:[#allocation5 + $0x320] sm:$0xff]
    %v186 = vld [vmem:[#allocation5 + $0x328] sm:$0xff]
    %v187 = vld [vmem:[#allocation5 + $0x330] sm:$0xff]
    %v188 = vld [vmem:[#allocation5 + $0x338] sm:$0xff]
    %v189 = vld [vmem:[#allocation5 + $0x340] sm:$0xff]
    %v190 = vld [vmem:[#allocation5 + $0x348] sm:$0xff]
    %v191 = vld [vmem:[#allocation5 + $0x350] sm:$0xff]
    %v192 = vld [vmem:[#allocation5 + $0x358] sm:$0xff]
    %v193 = vld [vmem:[#allocation5 + $0x360] sm:$0xff]
    %v194 = vld [vmem:[#allocation5 + $0x368] sm:$0xff]
    %v195 = vld [vmem:[#allocation5 + $0x370] sm:$0xff]
    %v196 = vld [vmem:[#allocation5 + $0x378] sm:$0xff]
    %v197 = vld [vmem:[#allocation5 + $0x380] sm:$0xff]
    %v198 = vld [vmem:[#allocation5 + $0x388] sm:$0xff]
    %v199 = vld [vmem:[#allocation5 + $0x390] sm:$0xff]
    %v200 = vld [vmem:[#allocation5 + $0x398] sm:$0xff]
    %v201 = vld [vmem:[#allocation5 + $0x3a0] sm:$0xff]
    %v202 = vld [vmem:[#allocation5 + $0x3a8] sm:$0xff]
    %v203 = vld [vmem:[#allocation5 + $0x3b0] sm:$0xff]
    %v204 = vld [vmem:[#allocation5 + $0x3b8] sm:$0xff]
    %v205 = vld [vmem:[#allocation5 + $0x3c0] sm:$0xff]
    %v206 = vld [vmem:[#allocation5 + $0x3c8] sm:$0xff]
    %v207 = vld [vmem:[#allocation5 + $0x3d0] sm:$0xff]
    %v208 = vld [vmem:[#allocation5 + $0x3d8] sm:$0xff]
    %v209 = vld [vmem:[#allocation5 + $0x3e0] sm:$0xff]
    %v210 = vld [vmem:[#allocation5 + $0x3e8] sm:$0xff]
    %v211 = vld [vmem:[#allocation5 + $0x3f0] sm:$0xff]
    %v212 = vld [vmem:[#allocation5 + $0x3f8] sm:$0xff]
    %v213 = vld [vmem:[#allocation5 + $0x400] sm:$0xff]
    %v214 = vld [vmem:[#allocation5 + $0x408] sm:$0xff]
    %v215 = vld [vmem:[#allocation5 + $0x410] sm:$0xff]
    %v216 = vld [vmem:[#allocation5 + $0x418] sm:$0xff]
    %v217 = vld [vmem:[#allocation5 + $0x420] sm:$0xff]
    %v218 = vld [vmem:[#allocation5 + $0x428] sm:$0xff]
    %v219 = vld [vmem:[#allocation5 + $0x430] sm:$0xff]
    %v220 = vld [vmem:[#allocation5 + $0x438] sm:$0xff]
    %v221 = vld [vmem:[#allocation5 + $0x440] sm:$0xff]
    %v222 = vld [vmem:[#allocation5 + $0x448] sm:$0xff]
    %v223 = vld [vmem:[#allocation5 + $0x450] sm:$0xff]
    %v224 = vld [vmem:[#allocation5 + $0x458] sm:$0xff]
    %v225 = vld [vmem:[#allocation5 + $0x460] sm:$0xff]
    %v226 = vld [vmem:[#allocation5 + $0x468] sm:$0xff]
    %v227 = vld [vmem:[#allocation5 + $0x470] sm:$0xff]
    %v228 = vld [vmem:[#allocation5 + $0x478] sm:$0xff]
    %v229 = vld [vmem:[#allocation5 + $0x480] sm:$0xff]
    %v230 = vld [vmem:[#allocation5 + $0x488] sm:$0xff]
    %v231 = vld [vmem:[#allocation5 + $0x490] sm:$0xff]
    %v232 = vld [vmem:[#allocation5 + $0x498] sm:$0xff]
    %v233 = vld [vmem:[#allocation5 + $0x4a0] sm:$0xff]
    %v234 = vld [vmem:[#allocation5 + $0x4a8] sm:$0xff]
    %v235 = vld [vmem:[#allocation5 + $0x4b0] sm:$0xff]
    %v236 = vld [vmem:[#allocation5 + $0x4b8] sm:$0xff]
    %v237 = vld [vmem:[#allocation5 + $0x4c0] sm:$0xff]
    %v238 = vld [vmem:[#allocation5 + $0x4c8] sm:$0xff]
    %v239 = vld [vmem:[#allocation5 + $0x4d0] sm:$0xff]
    %v240 = vld [vmem:[#allocation5 + $0x4d8] sm:$0xff]
    %v241 = vld [vmem:[#allocation5 + $0x4e0] sm:$0xff]
    %v242 = vld [vmem:[#allocation5 + $0x4e8] sm:$0xff]
    %v243 = vld [vmem:[#allocation5 + $0x4f0] sm:$0xff]
    %v244 = vld [vmem:[#allocation5 + $0x4f8] sm:$0xff]
    %v245 = vld [vmem:[#allocation5 + $0x500] sm:$0xff]
    %v246 = vld [vmem:[#allocation5 + $0x508] sm:$0xff]
    %v247 = vld [vmem:[#allocation5 + $0x510] sm:$0xff]
    %v248 = vld [vmem:[#allocation5 + $0x518] sm:$0xff]
    %v249 = vld [vmem:[#allocation5 + $0x520] sm:$0xff]
    %v250 = vld [vmem:[#allocation5 + $0x528] sm:$0xff]
    %v251 = vld [vmem:[#allocation5 + $0x530] sm:$0xff]
    %v252 = vld [vmem:[#allocation5 + $0x538] sm:$0xff]
    %v253 = vld [vmem:[#allocation5 + $0x540] sm:$0xff]
    %v254 = vld [vmem:[#allocation5 + $0x548] sm:$0xff]
    %v255 = vld [vmem:[#allocation5 + $0x550] sm:$0xff]
    %v256 = vld [vmem:[#allocation5 + $0x558] sm:$0xff]
    %v257 = vld [vmem:[#allocation5 + $0x560] sm:$0xff]
    %v258 = vld [vmem:[#allocation5 + $0x568] sm:$0xff]
    %v259 = vld [vmem:[#allocation5 + $0x570] sm:$0xff]
    %v260 = vld [vmem:[#allocation5 + $0x578] sm:$0xff]
    %v261 = vld [vmem:[#allocation5 + $0x580] sm:$0xff]
    %v262 = vld [vmem:[#allocation5 + $0x588] sm:$0xff]
    %v263 = vld [vmem:[#allocation5 + $0x590] sm:$0xff]
    %v264 = vld [vmem:[#allocation5 + $0x598] sm:$0xff]
    %v265 = vld [vmem:[#allocation5 + $0x5a0] sm:$0xff]
    %v266 = vld [vmem:[#allocation5 + $0x5a8] sm:$0xff]
    %v267 = vld [vmem:[#allocation5 + $0x5b0] sm:$0xff]
    %v268 = vld [vmem:[#allocation5 + $0x5b8] sm:$0xff]
    %v269 = vld [vmem:[#allocation5 + $0x5c0] sm:$0xff]
    %v270 = vld [vmem:[#allocation5 + $0x5c8] sm:$0xff]
    %v271 = vld [vmem:[#allocation5 + $0x5d0] sm:$0xff]
    %v272 = vld [vmem:[#allocation5 + $0x5d8] sm:$0xff]
    %v273 = vld [vmem:[#allocation5 + $0x5e0] sm:$0xff]
    %v274 = vld [vmem:[#allocation5 + $0x5e8] sm:$0xff]
    %v275 = vld [vmem:[#allocation5 + $0x5f0] sm:$0xff]
    %v276 = vld [vmem:[#allocation5 + $0x5f8] sm:$0xff]
    %v277 = vld [vmem:[#allocation7] sm:$0x3f]
    %v279 = vlaneseq
    %v280 = vshrl.u32 %v279, 7
    %v281 = vsub.s32 0, %v280
    %v282 = vrot.slane %v277, %v281
    %v283 = vlaneseq
    %v284 = vshrl.u32 %v283, 7
    %v285 = vsub.s32 1, %v284
    %v286 = vrot.slane %v277, %v285
    %v287 = vlaneseq
    %v288 = vshrl.u32 %v287, 7
    %v289 = vsub.s32 2, %v288
    %v290 = vrot.slane %v277, %v289
    %v291 = vlaneseq
    %v292 = vshrl.u32 %v291, 7
    %v293 = vsub.s32 3, %v292
    %v294 = vrot.slane %v277, %v293
    %v295 = vlaneseq
    %v296 = vshrl.u32 %v295, 7
    %v297 = vsub.s32 4, %v296
    %v298 = vrot.slane %v277, %v297
    %v299 = vlaneseq
    %v300 = vshrl.u32 %v299, 7
    %v301 = vsub.s32 5, %v300
    %v302 = vrot.slane %v277, %v301
    %v311 = vunpack.c.l.b16 %v83
    %v312 = vunpack.c.h.b16 %v83
    %v313 = vunpack.c.l.b16 %v84
    %v314 = vunpack.c.h.b16 %v84
    %v315 = vpack.c.b16 %v311, %v311
    %v316 = vpack.c.b16 %v312, %v312
    %v317 = vpack.c.b16 %v313, %v313
    %v318 = vpack.c.b16 %v314, %v314
    %v515 = vunpack.c.l.b16 %v85
    %v516 = vunpack.c.h.b16 %v85
    %v517 = vunpack.c.l.b16 %v86
    %v518 = vunpack.c.h.b16 %v86
    %v519 = vunpack.c.l.b16 %v87
    %v520 = vunpack.c.h.b16 %v87
    %v521 = vunpack.c.l.b16 %v88
    %v522 = vunpack.c.h.b16 %v88
    %v523 = vunpack.c.l.b16 %v89
    %v524 = vunpack.c.h.b16 %v89
    %v525 = vunpack.c.l.b16 %v90
    %v526 = vunpack.c.h.b16 %v90
    %v527 = vunpack.c.l.b16 %v91
    %v528 = vunpack.c.h.b16 %v91
    %v529 = vunpack.c.l.b16 %v92
    %v530 = vunpack.c.h.b16 %v92
    %v531 = vunpack.c.l.b16 %v93
    %v532 = vunpack.c.h.b16 %v93
    %v533 = vunpack.c.l.b16 %v94
    %v534 = vunpack.c.h.b16 %v94
    %v535 = vunpack.c.l.b16 %v95
    %v536 = vunpack.c.h.b16 %v95
    %v537 = vunpack.c.l.b16 %v96
    %v538 = vunpack.c.h.b16 %v96
    %v539 = vunpack.c.l.b16 %v97
    %v540 = vunpack.c.h.b16 %v97
    %v541 = vunpack.c.l.b16 %v98
    %v542 = vunpack.c.h.b16 %v98
    %v543 = vunpack.c.l.b16 %v99
    %v544 = vunpack.c.h.b16 %v99
    %v545 = vunpack.c.l.b16 %v100
    %v546 = vunpack.c.h.b16 %v100
    %v547 = vunpack.c.l.b16 %v101
    %v548 = vunpack.c.h.b16 %v101
    %v549 = vunpack.c.l.b16 %v102
    %v550 = vunpack.c.h.b16 %v102
    %v551 = vunpack.c.l.b16 %v103
    %v552 = vunpack.c.h.b16 %v103
    %v553 = vunpack.c.l.b16 %v104
    %v554 = vunpack.c.h.b16 %v104
    %v555 = vunpack.c.l.b16 %v105
    %v556 = vunpack.c.h.b16 %v105
    %v557 = vunpack.c.l.b16 %v106
    %v558 = vunpack.c.h.b16 %v106
    %v559 = vunpack.c.l.b16 %v107
    %v560 = vunpack.c.h.b16 %v107
    %v561 = vunpack.c.l.b16 %v108
    %v562 = vunpack.c.h.b16 %v108
    %v563 = vunpack.c.l.b16 %v109
    %v564 = vunpack.c.h.b16 %v109
    %v565 = vunpack.c.l.b16 %v110
    %v566 = vunpack.c.h.b16 %v110
    %v567 = vunpack.c.l.b16 %v111
    %v568 = vunpack.c.h.b16 %v111
    %v569 = vunpack.c.l.b16 %v112
    %v570 = vunpack.c.h.b16 %v112
    %v571 = vunpack.c.l.b16 %v113
    %v572 = vunpack.c.h.b16 %v113
    %v573 = vunpack.c.l.b16 %v114
    %v574 = vunpack.c.h.b16 %v114
    %v575 = vunpack.c.l.b16 %v115
    %v576 = vunpack.c.h.b16 %v115
    %v577 = vunpack.c.l.b16 %v116
    %v578 = vunpack.c.h.b16 %v116
    %v579 = vunpack.c.l.b16 %v117
    %v580 = vunpack.c.h.b16 %v117
    %v581 = vunpack.c.l.b16 %v118
    %v582 = vunpack.c.h.b16 %v118
    %v583 = vunpack.c.l.b16 %v119
    %v584 = vunpack.c.h.b16 %v119
    %v585 = vunpack.c.l.b16 %v120
    %v586 = vunpack.c.h.b16 %v120
    %v587 = vunpack.c.l.b16 %v121
    %v588 = vunpack.c.h.b16 %v121
    %v589 = vunpack.c.l.b16 %v122
    %v590 = vunpack.c.h.b16 %v122
    %v591 = vunpack.c.l.b16 %v123
    %v592 = vunpack.c.h.b16 %v123
    %v593 = vunpack.c.l.b16 %v124
    %v594 = vunpack.c.h.b16 %v124
    %v595 = vunpack.c.l.b16 %v125
    %v596 = vunpack.c.h.b16 %v125
    %v597 = vunpack.c.l.b16 %v126
    %v598 = vunpack.c.h.b16 %v126
    %v599 = vunpack.c.l.b16 %v127
    %v600 = vunpack.c.h.b16 %v127
    %v601 = vunpack.c.l.b16 %v128
    %v602 = vunpack.c.h.b16 %v128
    %v603 = vunpack.c.l.b16 %v129
    %v604 = vunpack.c.h.b16 %v129
    %v605 = vunpack.c.l.b16 %v130
    %v606 = vunpack.c.h.b16 %v130
    %v607 = vunpack.c.l.b16 %v131
    %v608 = vunpack.c.h.b16 %v131
    %v609 = vunpack.c.l.b16 %v132
    %v610 = vunpack.c.h.b16 %v132
    %v611 = vunpack.c.l.b16 %v133
    %v612 = vunpack.c.h.b16 %v133
    %v613 = vunpack.c.l.b16 %v134
    %v614 = vunpack.c.h.b16 %v134
    %v615 = vunpack.c.l.b16 %v135
    %v616 = vunpack.c.h.b16 %v135
    %v617 = vunpack.c.l.b16 %v136
    %v618 = vunpack.c.h.b16 %v136
    %v619 = vunpack.c.l.b16 %v137
    %v620 = vunpack.c.h.b16 %v137
    %v621 = vunpack.c.l.b16 %v138
    %v622 = vunpack.c.h.b16 %v138
    %v623 = vunpack.c.l.b16 %v139
    %v624 = vunpack.c.h.b16 %v139
    %v625 = vunpack.c.l.b16 %v140
    %v626 = vunpack.c.h.b16 %v140
    %v627 = vunpack.c.l.b16 %v141
    %v628 = vunpack.c.h.b16 %v141
    %v629 = vunpack.c.l.b16 %v142
    %v630 = vunpack.c.h.b16 %v142
    %v631 = vunpack.c.l.b16 %v143
    %v632 = vunpack.c.h.b16 %v143
    %v633 = vunpack.c.l.b16 %v144
    %v634 = vunpack.c.h.b16 %v144
    %v635 = vunpack.c.l.b16 %v145
    %v636 = vunpack.c.h.b16 %v145
    %v637 = vunpack.c.l.b16 %v146
    %v638 = vunpack.c.h.b16 %v146
    %v639 = vunpack.c.l.b16 %v147
    %v640 = vunpack.c.h.b16 %v147
    %v641 = vunpack.c.l.b16 %v148
    %v642 = vunpack.c.h.b16 %v148
    %v643 = vunpack.c.l.b16 %v149
    %v644 = vunpack.c.h.b16 %v149
    %v645 = vunpack.c.l.b16 %v150
    %v646 = vunpack.c.h.b16 %v150
    %v647 = vunpack.c.l.b16 %v151
    %v648 = vunpack.c.h.b16 %v151
    %v649 = vunpack.c.l.b16 %v152
    %v650 = vunpack.c.h.b16 %v152
    %v651 = vunpack.c.l.b16 %v153
    %v652 = vunpack.c.h.b16 %v153
    %v653 = vunpack.c.l.b16 %v154
    %v654 = vunpack.c.h.b16 %v154
    %v655 = vunpack.c.l.b16 %v155
    %v656 = vunpack.c.h.b16 %v155
    %v657 = vunpack.c.l.b16 %v156
    %v658 = vunpack.c.h.b16 %v156
    %v659 = vunpack.c.l.b16 %v157
    %v660 = vunpack.c.h.b16 %v157
    %v661 = vunpack.c.l.b16 %v158
    %v662 = vunpack.c.h.b16 %v158
    %v663 = vunpack.c.l.b16 %v159
    %v664 = vunpack.c.h.b16 %v159
    %v665 = vunpack.c.l.b16 %v160
    %v666 = vunpack.c.h.b16 %v160
    %v667 = vunpack.c.l.b16 %v161
    %v668 = vunpack.c.h.b16 %v161
    %v669 = vunpack.c.l.b16 %v162
    %v670 = vunpack.c.h.b16 %v162
    %v671 = vunpack.c.l.b16 %v163
    %v672 = vunpack.c.h.b16 %v163
    %v673 = vunpack.c.l.b16 %v164
    %v674 = vunpack.c.h.b16 %v164
    %v675 = vunpack.c.l.b16 %v165
    %v676 = vunpack.c.h.b16 %v165
    %v677 = vunpack.c.l.b16 %v166
    %v678 = vunpack.c.h.b16 %v166
    %v679 = vunpack.c.l.b16 %v167
    %v680 = vunpack.c.h.b16 %v167
    %v681 = vunpack.c.l.b16 %v168
    %v682 = vunpack.c.h.b16 %v168
    %v683 = vunpack.c.l.b16 %v169
    %v684 = vunpack.c.h.b16 %v169
    %v685 = vunpack.c.l.b16 %v170
    %v686 = vunpack.c.h.b16 %v170
    %v687 = vunpack.c.l.b16 %v171
    %v688 = vunpack.c.h.b16 %v171
    %v689 = vunpack.c.l.b16 %v172
    %v690 = vunpack.c.h.b16 %v172
    %v691 = vunpack.c.l.b16 %v173
    %v692 = vunpack.c.h.b16 %v173
    %v693 = vunpack.c.l.b16 %v174
    %v694 = vunpack.c.h.b16 %v174
    %v695 = vunpack.c.l.b16 %v175
    %v696 = vunpack.c.h.b16 %v175
    %v697 = vunpack.c.l.b16 %v176
    %v698 = vunpack.c.h.b16 %v176
    %v699 = vunpack.c.l.b16 %v177
    %v700 = vunpack.c.h.b16 %v177
    %v701 = vunpack.c.l.b16 %v178
    %v702 = vunpack.c.h.b16 %v178
    %v703 = vunpack.c.l.b16 %v179
    %v704 = vunpack.c.h.b16 %v179
    %v705 = vunpack.c.l.b16 %v180
    %v706 = vunpack.c.h.b16 %v180
    %v707 = vunpack.c.l.b16 %v181
    %v708 = vunpack.c.h.b16 %v181
    %v709 = vunpack.c.l.b16 %v182
    %v710 = vunpack.c.h.b16 %v182
    %v711 = vunpack.c.l.b16 %v183
    %v712 = vunpack.c.h.b16 %v183
    %v713 = vunpack.c.l.b16 %v184
    %v714 = vunpack.c.h.b16 %v184
    %v715 = vunpack.c.l.b16 %v185
    %v716 = vunpack.c.h.b16 %v185
    %v717 = vunpack.c.l.b16 %v186
    %v718 = vunpack.c.h.b16 %v186
    %v719 = vunpack.c.l.b16 %v187
    %v720 = vunpack.c.h.b16 %v187
    %v721 = vunpack.c.l.b16 %v188
    %v722 = vunpack.c.h.b16 %v188
    %v723 = vunpack.c.l.b16 %v189
    %v724 = vunpack.c.h.b16 %v189
    %v725 = vunpack.c.l.b16 %v190
    %v726 = vunpack.c.h.b16 %v190
    %v727 = vunpack.c.l.b16 %v191
    %v728 = vunpack.c.h.b16 %v191
    %v729 = vunpack.c.l.b16 %v192
    %v730 = vunpack.c.h.b16 %v192
    %v731 = vunpack.c.l.b16 %v193
    %v732 = vunpack.c.h.b16 %v193
    %v733 = vunpack.c.l.b16 %v194
    %v734 = vunpack.c.h.b16 %v194
    %v735 = vunpack.c.l.b16 %v195
    %v736 = vunpack.c.h.b16 %v195
    %v737 = vunpack.c.l.b16 %v196
    %v738 = vunpack.c.h.b16 %v196
    %v739 = vunpack.c.l.b16 %v197
    %v740 = vunpack.c.h.b16 %v197
    %v741 = vunpack.c.l.b16 %v198
    %v742 = vunpack.c.h.b16 %v198
    %v743 = vunpack.c.l.b16 %v199
    %v744 = vunpack.c.h.b16 %v199
    %v745 = vunpack.c.l.b16 %v200
    %v746 = vunpack.c.h.b16 %v200
    %v747 = vunpack.c.l.b16 %v201
    %v748 = vunpack.c.h.b16 %v201
    %v749 = vunpack.c.l.b16 %v202
    %v750 = vunpack.c.h.b16 %v202
    %v751 = vunpack.c.l.b16 %v203
    %v752 = vunpack.c.h.b16 %v203
    %v753 = vunpack.c.l.b16 %v204
    %v754 = vunpack.c.h.b16 %v204
    %v755 = vunpack.c.l.b16 %v205
    %v756 = vunpack.c.h.b16 %v205
    %v757 = vunpack.c.l.b16 %v206
    %v758 = vunpack.c.h.b16 %v206
    %v759 = vunpack.c.l.b16 %v207
    %v760 = vunpack.c.h.b16 %v207
    %v761 = vunpack.c.l.b16 %v208
    %v762 = vunpack.c.h.b16 %v208
    %v763 = vunpack.c.l.b16 %v209
    %v764 = vunpack.c.h.b16 %v209
    %v765 = vunpack.c.l.b16 %v210
    %v766 = vunpack.c.h.b16 %v210
    %v767 = vunpack.c.l.b16 %v211
    %v768 = vunpack.c.h.b16 %v211
    %v769 = vunpack.c.l.b16 %v212
    %v770 = vunpack.c.h.b16 %v212
    %v771 = vunpack.c.l.b16 %v213
    %v772 = vunpack.c.h.b16 %v213
    %v773 = vunpack.c.l.b16 %v214
    %v774 = vunpack.c.h.b16 %v214
    %v775 = vunpack.c.l.b16 %v215
    %v776 = vunpack.c.h.b16 %v215
    %v777 = vunpack.c.l.b16 %v216
    %v778 = vunpack.c.h.b16 %v216
    %v779 = vunpack.c.l.b16 %v217
    %v780 = vunpack.c.h.b16 %v217
    %v781 = vunpack.c.l.b16 %v218
    %v782 = vunpack.c.h.b16 %v218
    %v783 = vunpack.c.l.b16 %v219
    %v784 = vunpack.c.h.b16 %v219
    %v785 = vunpack.c.l.b16 %v220
    %v786 = vunpack.c.h.b16 %v220
    %v787 = vunpack.c.l.b16 %v221
    %v788 = vunpack.c.h.b16 %v221
    %v789 = vunpack.c.l.b16 %v222
    %v790 = vunpack.c.h.b16 %v222
    %v791 = vunpack.c.l.b16 %v223
    %v792 = vunpack.c.h.b16 %v223
    %v793 = vunpack.c.l.b16 %v224
    %v794 = vunpack.c.h.b16 %v224
    %v795 = vunpack.c.l.b16 %v225
    %v796 = vunpack.c.h.b16 %v225
    %v797 = vunpack.c.l.b16 %v226
    %v798 = vunpack.c.h.b16 %v226
    %v799 = vunpack.c.l.b16 %v227
    %v800 = vunpack.c.h.b16 %v227
    %v801 = vunpack.c.l.b16 %v228
    %v802 = vunpack.c.h.b16 %v228
    %v803 = vunpack.c.l.b16 %v229
    %v804 = vunpack.c.h.b16 %v229
    %v805 = vunpack.c.l.b16 %v230
    %v806 = vunpack.c.h.b16 %v230
    %v807 = vunpack.c.l.b16 %v231
    %v808 = vunpack.c.h.b16 %v231
    %v809 = vunpack.c.l.b16 %v232
    %v810 = vunpack.c.h.b16 %v232
    %v811 = vunpack.c.l.b16 %v233
    %v812 = vunpack.c.h.b16 %v233
    %v813 = vunpack.c.l.b16 %v234
    %v814 = vunpack.c.h.b16 %v234
    %v815 = vunpack.c.l.b16 %v235
    %v816 = vunpack.c.h.b16 %v235
    %v817 = vunpack.c.l.b16 %v236
    %v818 = vunpack.c.h.b16 %v236
    %v819 = vunpack.c.l.b16 %v237
    %v820 = vunpack.c.h.b16 %v237
    %v821 = vunpack.c.l.b16 %v238
    %v822 = vunpack.c.h.b16 %v238
    %v823 = vunpack.c.l.b16 %v239
    %v824 = vunpack.c.h.b16 %v239
    %v825 = vunpack.c.l.b16 %v240
    %v826 = vunpack.c.h.b16 %v240
    %v827 = vunpack.c.l.b16 %v241
    %v828 = vunpack.c.h.b16 %v241
    %v829 = vunpack.c.l.b16 %v242
    %v830 = vunpack.c.h.b16 %v242
    %v831 = vunpack.c.l.b16 %v243
    %v832 = vunpack.c.h.b16 %v243
    %v833 = vunpack.c.l.b16 %v244
    %v834 = vunpack.c.h.b16 %v244
    %v835 = vunpack.c.l.b16 %v245
    %v836 = vunpack.c.h.b16 %v245
    %v837 = vunpack.c.l.b16 %v246
    %v838 = vunpack.c.h.b16 %v246
    %v839 = vunpack.c.l.b16 %v247
    %v840 = vunpack.c.h.b16 %v247
    %v841 = vunpack.c.l.b16 %v248
    %v842 = vunpack.c.h.b16 %v248
    %v843 = vunpack.c.l.b16 %v249
    %v844 = vunpack.c.h.b16 %v249
    %v845 = vunpack.c.l.b16 %v250
    %v846 = vunpack.c.h.b16 %v250
    %v847 = vunpack.c.l.b16 %v251
    %v848 = vunpack.c.h.b16 %v251
    %v849 = vunpack.c.l.b16 %v252
    %v850 = vunpack.c.h.b16 %v252
    %v851 = vunpack.c.l.b16 %v253
    %v852 = vunpack.c.h.b16 %v253
    %v853 = vunpack.c.l.b16 %v254
    %v854 = vunpack.c.h.b16 %v254
    %v855 = vunpack.c.l.b16 %v255
    %v856 = vunpack.c.h.b16 %v255
    %v857 = vunpack.c.l.b16 %v256
    %v858 = vunpack.c.h.b16 %v256
    %v859 = vunpack.c.l.b16 %v257
    %v860 = vunpack.c.h.b16 %v257
    %v861 = vunpack.c.l.b16 %v258
    %v862 = vunpack.c.h.b16 %v258
    %v863 = vunpack.c.l.b16 %v259
    %v864 = vunpack.c.h.b16 %v259
    %v865 = vunpack.c.l.b16 %v260
    %v866 = vunpack.c.h.b16 %v260
    %v867 = vunpack.c.l.b16 %v261
    %v868 = vunpack.c.h.b16 %v261
    %v869 = vunpack.c.l.b16 %v262
    %v870 = vunpack.c.h.b16 %v262
    %v871 = vunpack.c.l.b16 %v263
    %v872 = vunpack.c.h.b16 %v263
    %v873 = vunpack.c.l.b16 %v264
    %v874 = vunpack.c.h.b16 %v264
    %v875 = vunpack.c.l.b16 %v265
    %v876 = vunpack.c.h.b16 %v265
    %v877 = vunpack.c.l.b16 %v266
    %v878 = vunpack.c.h.b16 %v266
    %v879 = vunpack.c.l.b16 %v267
    %v880 = vunpack.c.h.b16 %v267
    %v881 = vunpack.c.l.b16 %v268
    %v882 = vunpack.c.h.b16 %v268
    %v883 = vunpack.c.l.b16 %v269
    %v884 = vunpack.c.h.b16 %v269
    %v885 = vunpack.c.l.b16 %v270
    %v886 = vunpack.c.h.b16 %v270
    %v887 = vunpack.c.l.b16 %v271
    %v888 = vunpack.c.h.b16 %v271
    %v889 = vunpack.c.l.b16 %v272
    %v890 = vunpack.c.h.b16 %v272
    %v891 = vunpack.c.l.b16 %v273
    %v892 = vunpack.c.h.b16 %v273
    %v893 = vunpack.c.l.b16 %v274
    %v894 = vunpack.c.h.b16 %v274
    %v895 = vunpack.c.l.b16 %v275
    %v896 = vunpack.c.h.b16 %v275
    %v897 = vunpack.c.l.b16 %v276
    %v898 = vunpack.c.h.b16 %v276
    %v899 = vpack.c.b16 %v521, %v515
    %v900 = vpack.c.b16 %v522, %v516
    %v901 = vpack.c.b16 %v523, %v517
    %v902 = vpack.c.b16 %v524, %v518
    %v903 = vpack.c.b16 %v525, %v519
    %v904 = vpack.c.b16 %v526, %v520
    %v905 = vpack.c.b16 %v533, %v527
    %v906 = vpack.c.b16 %v534, %v528
    %v907 = vpack.c.b16 %v535, %v529
    %v908 = vpack.c.b16 %v536, %v530
    %v909 = vpack.c.b16 %v537, %v531
    %v910 = vpack.c.b16 %v538, %v532
    %v911 = vpack.c.b16 %v545, %v539
    %v912 = vpack.c.b16 %v546, %v540
    %v913 = vpack.c.b16 %v547, %v541
    %v914 = vpack.c.b16 %v548, %v542
    %v915 = vpack.c.b16 %v549, %v543
    %v916 = vpack.c.b16 %v550, %v544
    %v917 = vpack.c.b16 %v557, %v551
    %v918 = vpack.c.b16 %v558, %v552
    %v919 = vpack.c.b16 %v559, %v553
    %v920 = vpack.c.b16 %v560, %v554
    %v921 = vpack.c.b16 %v561, %v555
    %v922 = vpack.c.b16 %v562, %v556
    %v923 = vpack.c.b16 %v569, %v563
    %v924 = vpack.c.b16 %v570, %v564
    %v925 = vpack.c.b16 %v571, %v565
    %v926 = vpack.c.b16 %v572, %v566
    %v927 = vpack.c.b16 %v573, %v567
    %v928 = vpack.c.b16 %v574, %v568
    %v929 = vpack.c.b16 %v581, %v575
    %v930 = vpack.c.b16 %v582, %v576
    %v931 = vpack.c.b16 %v583, %v577
    %v932 = vpack.c.b16 %v584, %v578
    %v933 = vpack.c.b16 %v585, %v579
    %v934 = vpack.c.b16 %v586, %v580
    %v935 = vpack.c.b16 %v593, %v587
    %v936 = vpack.c.b16 %v594, %v588
    %v937 = vpack.c.b16 %v595, %v589
    %v938 = vpack.c.b16 %v596, %v590
    %v939 = vpack.c.b16 %v597, %v591
    %v940 = vpack.c.b16 %v598, %v592
    %v941 = vpack.c.b16 %v605, %v599
    %v942 = vpack.c.b16 %v606, %v600
    %v943 = vpack.c.b16 %v607, %v601
    %v944 = vpack.c.b16 %v608, %v602
    %v945 = vpack.c.b16 %v609, %v603
    %v946 = vpack.c.b16 %v610, %v604
    %v947 = vpack.c.b16 %v617, %v611
    %v948 = vpack.c.b16 %v618, %v612
    %v949 = vpack.c.b16 %v619, %v613
    %v950 = vpack.c.b16 %v620, %v614
    %v951 = vpack.c.b16 %v621, %v615
    %v952 = vpack.c.b16 %v622, %v616
    %v953 = vpack.c.b16 %v629, %v623
    %v954 = vpack.c.b16 %v630, %v624
    %v955 = vpack.c.b16 %v631, %v625
    %v956 = vpack.c.b16 %v632, %v626
    %v957 = vpack.c.b16 %v633, %v627
    %v958 = vpack.c.b16 %v634, %v628
    %v959 = vpack.c.b16 %v641, %v635
    %v960 = vpack.c.b16 %v642, %v636
    %v961 = vpack.c.b16 %v643, %v637
    %v962 = vpack.c.b16 %v644, %v638
    %v963 = vpack.c.b16 %v645, %v639
    %v964 = vpack.c.b16 %v646, %v640
    %v965 = vpack.c.b16 %v653, %v647
    %v966 = vpack.c.b16 %v654, %v648
    %v967 = vpack.c.b16 %v655, %v649
    %v968 = vpack.c.b16 %v656, %v650
    %v969 = vpack.c.b16 %v657, %v651
    %v970 = vpack.c.b16 %v658, %v652
    %v971 = vpack.c.b16 %v665, %v659
    %v972 = vpack.c.b16 %v666, %v660
    %v973 = vpack.c.b16 %v667, %v661
    %v974 = vpack.c.b16 %v668, %v662
    %v975 = vpack.c.b16 %v669, %v663
    %v976 = vpack.c.b16 %v670, %v664
    %v977 = vpack.c.b16 %v677, %v671
    %v978 = vpack.c.b16 %v678, %v672
    %v979 = vpack.c.b16 %v679, %v673
    %v980 = vpack.c.b16 %v680, %v674
    %v981 = vpack.c.b16 %v681, %v675
    %v982 = vpack.c.b16 %v682, %v676
    %v983 = vpack.c.b16 %v689, %v683
    %v984 = vpack.c.b16 %v690, %v684
    %v985 = vpack.c.b16 %v691, %v685
    %v986 = vpack.c.b16 %v692, %v686
    %v987 = vpack.c.b16 %v693, %v687
    %v988 = vpack.c.b16 %v694, %v688
    %v989 = vpack.c.b16 %v701, %v695
    %v990 = vpack.c.b16 %v702, %v696
    %v991 = vpack.c.b16 %v703, %v697
    %v992 = vpack.c.b16 %v704, %v698
    %v993 = vpack.c.b16 %v705, %v699
    %v994 = vpack.c.b16 %v706, %v700
    %v995 = vpack.c.b16 %v713, %v707
    %v996 = vpack.c.b16 %v714, %v708
    %v997 = vpack.c.b16 %v715, %v709
    %v998 = vpack.c.b16 %v716, %v710
    %v999 = vpack.c.b16 %v717, %v711
    %v1000 = vpack.c.b16 %v718, %v712
    %v1001 = vpack.c.b16 %v725, %v719
    %v1002 = vpack.c.b16 %v726, %v720
    %v1003 = vpack.c.b16 %v727, %v721
    %v1004 = vpack.c.b16 %v728, %v722
    %v1005 = vpack.c.b16 %v729, %v723
    %v1006 = vpack.c.b16 %v730, %v724
    %v1007 = vpack.c.b16 %v737, %v731
    %v1008 = vpack.c.b16 %v738, %v732
    %v1009 = vpack.c.b16 %v739, %v733
    %v1010 = vpack.c.b16 %v740, %v734
    %v1011 = vpack.c.b16 %v741, %v735
    %v1012 = vpack.c.b16 %v742, %v736
    %v1013 = vpack.c.b16 %v749, %v743
    %v1014 = vpack.c.b16 %v750, %v744
    %v1015 = vpack.c.b16 %v751, %v745
    %v1016 = vpack.c.b16 %v752, %v746
    %v1017 = vpack.c.b16 %v753, %v747
    %v1018 = vpack.c.b16 %v754, %v748
    %v1019 = vpack.c.b16 %v761, %v755
    %v1020 = vpack.c.b16 %v762, %v756
    %v1021 = vpack.c.b16 %v763, %v757
    %v1022 = vpack.c.b16 %v764, %v758
    %v1023 = vpack.c.b16 %v765, %v759
    %v1024 = vpack.c.b16 %v766, %v760
    %v1025 = vpack.c.b16 %v773, %v767
    %v1026 = vpack.c.b16 %v774, %v768
    %v1027 = vpack.c.b16 %v775, %v769
    %v1028 = vpack.c.b16 %v776, %v770
    %v1029 = vpack.c.b16 %v777, %v771
    %v1030 = vpack.c.b16 %v778, %v772
    %v1031 = vpack.c.b16 %v785, %v779
    %v1032 = vpack.c.b16 %v786, %v780
    %v1033 = vpack.c.b16 %v787, %v781
    %v1034 = vpack.c.b16 %v788, %v782
    %v1035 = vpack.c.b16 %v789, %v783
    %v1036 = vpack.c.b16 %v790, %v784
    %v1037 = vpack.c.b16 %v797, %v791
    %v1038 = vpack.c.b16 %v798, %v792
    %v1039 = vpack.c.b16 %v799, %v793
    %v1040 = vpack.c.b16 %v800, %v794
    %v1041 = vpack.c.b16 %v801, %v795
    %v1042 = vpack.c.b16 %v802, %v796
    %v1043 = vpack.c.b16 %v809, %v803
    %v1044 = vpack.c.b16 %v810, %v804
    %v1045 = vpack.c.b16 %v811, %v805
    %v1046 = vpack.c.b16 %v812, %v806
    %v1047 = vpack.c.b16 %v813, %v807
    %v1048 = vpack.c.b16 %v814, %v808
    %v1049 = vpack.c.b16 %v821, %v815
    %v1050 = vpack.c.b16 %v822, %v816
    %v1051 = vpack.c.b16 %v823, %v817
    %v1052 = vpack.c.b16 %v824, %v818
    %v1053 = vpack.c.b16 %v825, %v819
    %v1054 = vpack.c.b16 %v826, %v820
    %v1055 = vpack.c.b16 %v833, %v827
    %v1056 = vpack.c.b16 %v834, %v828
    %v1057 = vpack.c.b16 %v835, %v829
    %v1058 = vpack.c.b16 %v836, %v830
    %v1059 = vpack.c.b16 %v837, %v831
    %v1060 = vpack.c.b16 %v838, %v832
    %v1061 = vpack.c.b16 %v845, %v839
    %v1062 = vpack.c.b16 %v846, %v840
    %v1063 = vpack.c.b16 %v847, %v841
    %v1064 = vpack.c.b16 %v848, %v842
    %v1065 = vpack.c.b16 %v849, %v843
    %v1066 = vpack.c.b16 %v850, %v844
    %v1067 = vpack.c.b16 %v857, %v851
    %v1068 = vpack.c.b16 %v858, %v852
    %v1069 = vpack.c.b16 %v859, %v853
    %v1070 = vpack.c.b16 %v860, %v854
    %v1071 = vpack.c.b16 %v861, %v855
    %v1072 = vpack.c.b16 %v862, %v856
    %v1073 = vpack.c.b16 %v869, %v863
    %v1074 = vpack.c.b16 %v870, %v864
    %v1075 = vpack.c.b16 %v871, %v865
    %v1076 = vpack.c.b16 %v872, %v866
    %v1077 = vpack.c.b16 %v873, %v867
    %v1078 = vpack.c.b16 %v874, %v868
    %v1079 = vpack.c.b16 %v881, %v875
    %v1080 = vpack.c.b16 %v882, %v876
    %v1081 = vpack.c.b16 %v883, %v877
    %v1082 = vpack.c.b16 %v884, %v878
    %v1083 = vpack.c.b16 %v885, %v879
    %v1084 = vpack.c.b16 %v886, %v880
    %v1085 = vpack.c.b16 %v893, %v887
    %v1086 = vpack.c.b16 %v894, %v888
    %v1087 = vpack.c.b16 %v895, %v889
    %v1088 = vpack.c.b16 %v896, %v890
    %v1089 = vpack.c.b16 %v897, %v891
    %v1090 = vpack.c.b16 %v898, %v892
    %1283 = vmatprep.subr.bf16.mxu0 %v942
    %1284 = vmatpush1.bf16.msra.mxu0 %v941
    %1285 = vmatprep.subr.bf16.mxu0 %v936
    %1286 = vmatpush1.bf16.msra.mxu0 %v935
    %1287 = vmatprep.subr.bf16.mxu0 %v930
    %1288 = vmatpush1.bf16.msra.mxu0 %v929
    %1289 = vmatprep.subr.bf16.mxu0 %v924
    %1290 = vmatpush1.bf16.msra.mxu0 %v923
    %1291 = vmatprep.subr.bf16.mxu0 %v918
    %1292 = vmatpush1.bf16.msra.mxu0 %v917
    %1293 = vmatprep.subr.bf16.mxu0 %v912
    %1294 = vmatpush1.bf16.msra.mxu0 %v911
    %1295 = vmatprep.subr.bf16.mxu0 %v906
    %1296 = vmatpush1.bf16.msra.mxu0 %v905
    %1297 = vmatprep.subr.bf16.mxu0 %v900
    %1298 = vmatpush1.bf16.msra.mxu0 %v899
    %1299 = vmatprep.subr.bf16.mxu0 %v990
    %1300 = vmatpush2.bf16.msra.mxu0 %v989
    %1301 = vmatprep.subr.bf16.mxu0 %v984
    %1302 = vmatpush2.bf16.msra.mxu0 %v983
    %1303 = vmatprep.subr.bf16.mxu0 %v978
    %1304 = vmatpush2.bf16.msra.mxu0 %v977
    %1305 = vmatprep.subr.bf16.mxu0 %v972
    %1306 = vmatpush2.bf16.msra.mxu0 %v971
    %1307 = vmatprep.subr.bf16.mxu0 %v966
    %1308 = vmatpush2.bf16.msra.mxu0 %v965
    %1309 = vmatprep.subr.bf16.mxu0 %v960
    %1310 = vmatpush2.bf16.msra.mxu0 %v959
    %1311 = vmatprep.subr.bf16.mxu0 %v954
    %1312 = vmatpush2.bf16.msra.mxu0 %v953
    %1313 = vmatprep.subr.bf16.mxu0 %v948
    %1314 = vmatpush2.bf16.msra.mxu0 %v947
    %1315 = vmatprep.mubr.bf16.mxu0 %v316
    %1316 = vmatmul.mubr.bf16.gmra.mxu0 %v315
    %v1317 = vpop.f32.mrf.mxu0
    %v1318 = vadd.f32 %v282, %v1317
    %v1319 = vpop.f32.mrf.mxu0
    %v1320 = vadd.f32 %v286, %v1319
    %v1321 = vpop.f32.mrf.mxu0
    %v1322 = vpop.f32.mrf.mxu0
    %1323 = vdwg.mxu0
    %1324 = vmatprep.subr.bf16.mxu0 %v1038
    %1325 = vmatpush1.bf16.msra.mxu0 %v1037
    %1326 = vmatprep.subr.bf16.mxu0 %v1032
    %1327 = vmatpush1.bf16.msra.mxu0 %v1031
    %1328 = vmatprep.subr.bf16.mxu0 %v1026
    %1329 = vmatpush1.bf16.msra.mxu0 %v1025
    %1330 = vmatprep.subr.bf16.mxu0 %v1020
    %1331 = vmatpush1.bf16.msra.mxu0 %v1019
    %1332 = vmatprep.subr.bf16.mxu0 %v1014
    %1333 = vmatpush1.bf16.msra.mxu0 %v1013
    %1334 = vmatprep.subr.bf16.mxu0 %v1008
    %1335 = vmatpush1.bf16.msra.mxu0 %v1007
    %1336 = vmatprep.subr.bf16.mxu0 %v1002
    %1337 = vmatpush1.bf16.msra.mxu0 %v1001
    %1338 = vmatprep.subr.bf16.mxu0 %v996
    %1339 = vmatpush1.bf16.msra.mxu0 %v995
    %1340 = vmatprep.subr.bf16.mxu0 %v1086
    %1341 = vmatpush2.bf16.msra.mxu0 %v1085
    %1342 = vmatprep.subr.bf16.mxu0 %v1080
    %1343 = vmatpush2.bf16.msra.mxu0 %v1079
    %1344 = vmatprep.subr.bf16.mxu0 %v1074
    %1345 = vmatpush2.bf16.msra.mxu0 %v1073
    %1346 = vmatprep.subr.bf16.mxu0 %v1068
    %1347 = vmatpush2.bf16.msra.mxu0 %v1067
    %1348 = vmatprep.subr.bf16.mxu0 %v1062
    %1349 = vmatpush2.bf16.msra.mxu0 %v1061
    %1350 = vmatprep.subr.bf16.mxu0 %v1056
    %1351 = vmatpush2.bf16.msra.mxu0 %v1055
    %1352 = vmatprep.subr.bf16.mxu0 %v1050
    %1353 = vmatpush2.bf16.msra.mxu0 %v1049
    %1354 = vmatprep.subr.bf16.mxu0 %v1044
    %1355 = vmatpush2.bf16.msra.mxu0 %v1043
    %1356 = vmatprep.mubr.bf16.mxu0 %v318
    %1357 = vmatmul.mubr.bf16.gmra.mxu0 %v317
    %v1358 = vpop.f32.mrf.mxu0
    %v1359 = vadd.f32 %v1318, %v1358
    %v1360 = vpop.f32.mrf.mxu0
    %v1361 = vadd.f32 %v1320, %v1360
    %v1362 = vpop.f32.mrf.mxu0
    %v1363 = vpop.f32.mrf.mxu0
    %1364 = vdwg.mxu0
    %1365 = vmatprep.subr.bf16.mxu0 %v944
    %1366 = vmatpush1.bf16.msra.mxu0 %v943
    %1367 = vmatprep.subr.bf16.mxu0 %v938
    %1368 = vmatpush1.bf16.msra.mxu0 %v937
    %1369 = vmatprep.subr.bf16.mxu0 %v932
    %1370 = vmatpush1.bf16.msra.mxu0 %v931
    %1371 = vmatprep.subr.bf16.mxu0 %v926
    %1372 = vmatpush1.bf16.msra.mxu0 %v925
    %1373 = vmatprep.subr.bf16.mxu0 %v920
    %1374 = vmatpush1.bf16.msra.mxu0 %v919
    %1375 = vmatprep.subr.bf16.mxu0 %v914
    %1376 = vmatpush1.bf16.msra.mxu0 %v913
    %1377 = vmatprep.subr.bf16.mxu0 %v908
    %1378 = vmatpush1.bf16.msra.mxu0 %v907
    %1379 = vmatprep.subr.bf16.mxu0 %v902
    %1380 = vmatpush1.bf16.msra.mxu0 %v901
    %1381 = vmatprep.subr.bf16.mxu0 %v992
    %1382 = vmatpush2.bf16.msra.mxu0 %v991
    %1383 = vmatprep.subr.bf16.mxu0 %v986
    %1384 = vmatpush2.bf16.msra.mxu0 %v985
    %1385 = vmatprep.subr.bf16.mxu0 %v980
    %1386 = vmatpush2.bf16.msra.mxu0 %v979
    %1387 = vmatprep.subr.bf16.mxu0 %v974
    %1388 = vmatpush2.bf16.msra.mxu0 %v973
    %1389 = vmatprep.subr.bf16.mxu0 %v968
    %1390 = vmatpush2.bf16.msra.mxu0 %v967
    %1391 = vmatprep.subr.bf16.mxu0 %v962
    %1392 = vmatpush2.bf16.msra.mxu0 %v961
    %1393 = vmatprep.subr.bf16.mxu0 %v956
    %1394 = vmatpush2.bf16.msra.mxu0 %v955
    %1395 = vmatprep.subr.bf16.mxu0 %v950
    %1396 = vmatpush2.bf16.msra.mxu0 %v949
    %1397 = vmatprep.mubr.bf16.mxu0 %v316
    %1398 = vmatmul.mubr.bf16.gmra.mxu0 %v315
    %v1399 = vpop.f32.mrf.mxu0
    %v1400 = vadd.f32 %v290, %v1399
    %v1401 = vpop.f32.mrf.mxu0
    %v1402 = vadd.f32 %v294, %v1401
    %v1403 = vpop.f32.mrf.mxu0
    %v1404 = vpop.f32.mrf.mxu0
    %1405 = vdwg.mxu0
    %1406 = vmatprep.subr.bf16.mxu0 %v1040
    %1407 = vmatpush1.bf16.msra.mxu0 %v1039
    %1408 = vmatprep.subr.bf16.mxu0 %v1034
    %1409 = vmatpush1.bf16.msra.mxu0 %v1033
    %1410 = vmatprep.subr.bf16.mxu0 %v1028
    %1411 = vmatpush1.bf16.msra.mxu0 %v1027
    %1412 = vmatprep.subr.bf16.mxu0 %v1022
    %1413 = vmatpush1.bf16.msra.mxu0 %v1021
    %1414 = vmatprep.subr.bf16.mxu0 %v1016
    %1415 = vmatpush1.bf16.msra.mxu0 %v1015
    %1416 = vmatprep.subr.bf16.mxu0 %v1010
    %1417 = vmatpush1.bf16.msra.mxu0 %v1009
    %1418 = vmatprep.subr.bf16.mxu0 %v1004
    %1419 = vmatpush1.bf16.msra.mxu0 %v1003
    %1420 = vmatprep.subr.bf16.mxu0 %v998
    %1421 = vmatpush1.bf16.msra.mxu0 %v997
    %1422 = vmatprep.subr.bf16.mxu0 %v1088
    %1423 = vmatpush2.bf16.msra.mxu0 %v1087
    %1424 = vmatprep.subr.bf16.mxu0 %v1082
    %1425 = vmatpush2.bf16.msra.mxu0 %v1081
    %1426 = vmatprep.subr.bf16.mxu0 %v1076
    %1427 = vmatpush2.bf16.msra.mxu0 %v1075
    %1428 = vmatprep.subr.bf16.mxu0 %v1070
    %1429 = vmatpush2.bf16.msra.mxu0 %v1069
    %1430 = vmatprep.subr.bf16.mxu0 %v1064
    %1431 = vmatpush2.bf16.msra.mxu0 %v1063
    %1432 = vmatprep.subr.bf16.mxu0 %v1058
    %1433 = vmatpush2.bf16.msra.mxu0 %v1057
    %1434 = vmatprep.subr.bf16.mxu0 %v1052
    %1435 = vmatpush2.bf16.msra.mxu0 %v1051
    %1436 = vmatprep.subr.bf16.mxu0 %v1046
    %1437 = vmatpush2.bf16.msra.mxu0 %v1045
    %1438 = vmatprep.mubr.bf16.mxu0 %v318
    %1439 = vmatmul.mubr.bf16.gmra.mxu0 %v317
    %v1440 = vpop.f32.mrf.mxu0
    %v1441 = vadd.f32 %v1400, %v1440
    %v1442 = vpop.f32.mrf.mxu0
    %v1443 = vadd.f32 %v1402, %v1442
    %v1444 = vpop.f32.mrf.mxu0
    %v1445 = vpop.f32.mrf.mxu0
    %1446 = vdwg.mxu0
    %1447 = vmatprep.subr.bf16.mxu0 %v946
    %1448 = vmatpush1.bf16.msra.mxu0 %v945
    %1449 = vmatprep.subr.bf16.mxu0 %v940
    %1450 = vmatpush1.bf16.msra.mxu0 %v939
    %1451 = vmatprep.subr.bf16.mxu0 %v934
    %1452 = vmatpush1.bf16.msra.mxu0 %v933
    %1453 = vmatprep.subr.bf16.mxu0 %v928
    %1454 = vmatpush1.bf16.msra.mxu0 %v927
    %1455 = vmatprep.subr.bf16.mxu0 %v922
    %1456 = vmatpush1.bf16.msra.mxu0 %v921
    %1457 = vmatprep.subr.bf16.mxu0 %v916
    %1458 = vmatpush1.bf16.msra.mxu0 %v915
    %1459 = vmatprep.subr.bf16.mxu0 %v910
    %1460 = vmatpush1.bf16.msra.mxu0 %v909
    %1461 = vmatprep.subr.bf16.mxu0 %v904
    %1462 = vmatpush1.bf16.msra.mxu0 %v903
    %1463 = vmatprep.subr.bf16.mxu0 %v994
    %1464 = vmatpush2.bf16.msra.mxu0 %v993
    %1465 = vmatprep.subr.bf16.mxu0 %v988
    %1466 = vmatpush2.bf16.msra.mxu0 %v987
    %1467 = vmatprep.subr.bf16.mxu0 %v982
    %1468 = vmatpush2.bf16.msra.mxu0 %v981
    %1469 = vmatprep.subr.bf16.mxu0 %v976
    %1470 = vmatpush2.bf16.msra.mxu0 %v975
    %1471 = vmatprep.subr.bf16.mxu0 %v970
    %1472 = vmatpush2.bf16.msra.mxu0 %v969
    %1473 = vmatprep.subr.bf16.mxu0 %v964
    %1474 = vmatpush2.bf16.msra.mxu0 %v963
    %1475 = vmatprep.subr.bf16.mxu0 %v958
    %1476 = vmatpush2.bf16.msra.mxu0 %v957
    %1477 = vmatprep.subr.bf16.mxu0 %v952
    %1478 = vmatpush2.bf16.msra.mxu0 %v951
    %1479 = vmatprep.mubr.bf16.mxu0 %v316
    %1480 = vmatmul.mubr.bf16.gmra.mxu0 %v315
    %v1481 = vpop.f32.mrf.mxu0
    %v1482 = vadd.f32 %v298, %v1481
    %v1483 = vpop.f32.mrf.mxu0
    %v1484 = vadd.f32 %v302, %v1483
    %v1485 = vpop.f32.mrf.mxu0
    %v1486 = vpop.f32.mrf.mxu0
    %1487 = vdwg.mxu0
    %1488 = vmatprep.subr.bf16.mxu0 %v1042
    %1489 = vmatpush1.bf16.msra.mxu0 %v1041
    %1490 = vmatprep.subr.bf16.mxu0 %v1036
    %1491 = vmatpush1.bf16.msra.mxu0 %v1035
    %1492 = vmatprep.subr.bf16.mxu0 %v1030
    %1493 = vmatpush1.bf16.msra.mxu0 %v1029
    %1494 = vmatprep.subr.bf16.mxu0 %v1024
    %1495 = vmatpush1.bf16.msra.mxu0 %v1023
    %1496 = vmatprep.subr.bf16.mxu0 %v1018
    %1497 = vmatpush1.bf16.msra.mxu0 %v1017
    %1498 = vmatprep.subr.bf16.mxu0 %v1012
    %1499 = vmatpush1.bf16.msra.mxu0 %v1011
    %1500 = vmatprep.subr.bf16.mxu0 %v1006
    %1501 = vmatpush1.bf16.msra.mxu0 %v1005
    %1502 = vmatprep.subr.bf16.mxu0 %v1000
    %1503 = vmatpush1.bf16.msra.mxu0 %v999
    %1504 = vmatprep.subr.bf16.mxu0 %v1090
    %1505 = vmatpush2.bf16.msra.mxu0 %v1089
    %1506 = vmatprep.subr.bf16.mxu0 %v1084
    %1507 = vmatpush2.bf16.msra.mxu0 %v1083
    %1508 = vmatprep.subr.bf16.mxu0 %v1078
    %1509 = vmatpush2.bf16.msra.mxu0 %v1077
    %1510 = vmatprep.subr.bf16.mxu0 %v1072
    %1511 = vmatpush2.bf16.msra.mxu0 %v1071
    %1512 = vmatprep.subr.bf16.mxu0 %v1066
    %1513 = vmatpush2.bf16.msra.mxu0 %v1065
    %1514 = vmatprep.subr.bf16.mxu0 %v1060
    %1515 = vmatpush2.bf16.msra.mxu0 %v1059
    %1516 = vmatprep.subr.bf16.mxu0 %v1054
    %1517 = vmatpush2.bf16.msra.mxu0 %v1053
    %1518 = vmatprep.subr.bf16.mxu0 %v1048
    %1519 = vmatpush2.bf16.msra.mxu0 %v1047
    %1520 = vmatprep.mubr.bf16.mxu0 %v318
    %1521 = vmatmul.mubr.bf16.gmra.mxu0 %v317
    %v1522 = vpop.f32.mrf.mxu0
    %v1523 = vadd.f32 %v1482, %v1522
    %v1524 = vpop.f32.mrf.mxu0
    %v1525 = vadd.f32 %v1484, %v1524
    %v1526 = vpop.f32.mrf.mxu0
    %v1527 = vpop.f32.mrf.mxu0
    %1528 = vdwg.mxu0
    %vm1529 = vcmp.ge.f32.partialorder %v1359, 0.0
    %vm1530 = vcmp.ge.f32.partialorder %v1361, 0.0
    %vm1531 = vcmp.ge.f32.partialorder %v1441, 0.0
    %vm1532 = vcmp.ge.f32.partialorder %v1443, 0.0
    %vm1533 = vcmp.ge.f32.partialorder %v1523, 0.0
    %vm1534 = vcmp.ge.f32.partialorder %v1525, 0.0
    %v1535 = vmul.f32 %v1359, 0.01
    %v1536 = vmul.f32 %v1361, 0.01
    %v1537 = vmul.f32 %v1441, 0.01
    %v1538 = vmul.f32 %v1443, 0.01
    %v1539 = vmul.f32 %v1523, 0.01
    %v1540 = vmul.f32 %v1525, 0.01
    %v1541 = vsel %vm1529, %v1359, %v1535
    %v1542 = vsel %vm1530, %v1361, %v1536
    %v1543 = vsel %vm1531, %v1441, %v1537
    %v1544 = vsel %vm1532, %v1443, %v1538
    %v1545 = vsel %vm1533, %v1523, %v1539
    %v1546 = vsel %vm1534, %v1525, %v1540
    %v1547 = vpack.c.bf16 %v1541, %v1541
    %v1548 = vpack.c.bf16 %v1542, %v1542
    %v1549 = vpack.c.bf16 %v1543, %v1543
    %v1550 = vpack.c.bf16 %v1544, %v1544
    %v1551 = vpack.c.bf16 %v1545, %v1545
    %v1552 = vpack.c.bf16 %v1546, %v1546
    %v1553 = vld [vmem:[#allocation8] sm:$0xff]
    %v1554 = vld [vmem:[#allocation8 + $0x8] sm:$0xff]
    %v1555 = vld [vmem:[#allocation8 + $0x10] sm:$0xff]
    %v1556 = vld [vmem:[#allocation8 + $0x18] sm:$0xff]
    %v1557 = vld [vmem:[#allocation8 + $0x20] sm:$0xff]
    %v1558 = vld [vmem:[#allocation8 + $0x28] sm:$0xff]
    %v1559 = vld [vmem:[#allocation8 + $0x30] sm:$0xff]
    %v1560 = vld [vmem:[#allocation8 + $0x38] sm:$0xff]
    %v1561 = vld [vmem:[#allocation8 + $0x40] sm:$0xff]
    %v1562 = vld [vmem:[#allocation8 + $0x48] sm:$0xff]
    %v1563 = vld [vmem:[#allocation8 + $0x50] sm:$0xff]
    %v1564 = vld [vmem:[#allocation8 + $0x58] sm:$0xff]
    %v1565 = vld [vmem:[#allocation8 + $0x60] sm:$0xff]
    %v1566 = vld [vmem:[#allocation8 + $0x68] sm:$0xff]
    %v1567 = vld [vmem:[#allocation8 + $0x70] sm:$0xff]
    %v1568 = vld [vmem:[#allocation8 + $0x78] sm:$0xff]
    %v1569 = vld [vmem:[#allocation8 + $0x80] sm:$0xff]
    %v1570 = vld [vmem:[#allocation8 + $0x88] sm:$0xff]
    %v1571 = vld [vmem:[#allocation8 + $0x90] sm:$0xff]
    %v1572 = vld [vmem:[#allocation8 + $0x98] sm:$0xff]
    %v1573 = vld [vmem:[#allocation8 + $0xa0] sm:$0xff]
    %v1574 = vld [vmem:[#allocation8 + $0xa8] sm:$0xff]
    %v1575 = vld [vmem:[#allocation8 + $0xb0] sm:$0xff]
    %v1576 = vld [vmem:[#allocation8 + $0xb8] sm:$0xff]
    %v1577 = vld [vmem:[#allocation8 + $0xc0] sm:$0xff]
    %v1578 = vld [vmem:[#allocation8 + $0xc8] sm:$0xff]
    %v1579 = vld [vmem:[#allocation8 + $0xd0] sm:$0xff]
    %v1580 = vld [vmem:[#allocation8 + $0xd8] sm:$0xff]
    %v1581 = vld [vmem:[#allocation8 + $0xe0] sm:$0xff]
    %v1582 = vld [vmem:[#allocation8 + $0xe8] sm:$0xff]
    %v1583 = vld [vmem:[#allocation8 + $0xf0] sm:$0xff]
    %v1584 = vld [vmem:[#allocation8 + $0xf8] sm:$0xff]
    %v1585 = vld [vmem:[#allocation8 + $0x100] sm:$0xff]
    %v1586 = vld [vmem:[#allocation8 + $0x108] sm:$0xff]
    %v1587 = vld [vmem:[#allocation8 + $0x110] sm:$0xff]
    %v1588 = vld [vmem:[#allocation8 + $0x118] sm:$0xff]
    %v1589 = vld [vmem:[#allocation8 + $0x120] sm:$0xff]
    %v1590 = vld [vmem:[#allocation8 + $0x128] sm:$0xff]
    %v1591 = vld [vmem:[#allocation8 + $0x130] sm:$0xff]
    %v1592 = vld [vmem:[#allocation8 + $0x138] sm:$0xff]
    %v1593 = vld [vmem:[#allocation8 + $0x140] sm:$0xff]
    %v1594 = vld [vmem:[#allocation8 + $0x148] sm:$0xff]
    %v1595 = vld [vmem:[#allocation8 + $0x150] sm:$0xff]
    %v1596 = vld [vmem:[#allocation8 + $0x158] sm:$0xff]
    %v1597 = vld [vmem:[#allocation8 + $0x160] sm:$0xff]
    %v1598 = vld [vmem:[#allocation8 + $0x168] sm:$0xff]
    %v1599 = vld [vmem:[#allocation8 + $0x170] sm:$0xff]
    %v1600 = vld [vmem:[#allocation8 + $0x178] sm:$0xff]
    %v1601 = vld [vmem:[#allocation8 + $0x180] sm:$0xff]
    %v1602 = vld [vmem:[#allocation8 + $0x188] sm:$0xff]
    %v1603 = vld [vmem:[#allocation8 + $0x190] sm:$0xff]
    %v1604 = vld [vmem:[#allocation8 + $0x198] sm:$0xff]
    %v1605 = vld [vmem:[#allocation8 + $0x1a0] sm:$0xff]
    %v1606 = vld [vmem:[#allocation8 + $0x1a8] sm:$0xff]
    %v1607 = vld [vmem:[#allocation8 + $0x1b0] sm:$0xff]
    %v1608 = vld [vmem:[#allocation8 + $0x1b8] sm:$0xff]
    %v1609 = vld [vmem:[#allocation8 + $0x1c0] sm:$0xff]
    %v1610 = vld [vmem:[#allocation8 + $0x1c8] sm:$0xff]
    %v1611 = vld [vmem:[#allocation8 + $0x1d0] sm:$0xff]
    %v1612 = vld [vmem:[#allocation8 + $0x1d8] sm:$0xff]
    %v1613 = vld [vmem:[#allocation8 + $0x1e0] sm:$0xff]
    %v1614 = vld [vmem:[#allocation8 + $0x1e8] sm:$0xff]
    %v1615 = vld [vmem:[#allocation8 + $0x1f0] sm:$0xff]
    %v1616 = vld [vmem:[#allocation8 + $0x1f8] sm:$0xff]
    %v1617 = vld [vmem:[#allocation8 + $0x200] sm:$0xff]
    %v1618 = vld [vmem:[#allocation8 + $0x208] sm:$0xff]
    %v1619 = vld [vmem:[#allocation8 + $0x210] sm:$0xff]
    %v1620 = vld [vmem:[#allocation8 + $0x218] sm:$0xff]
    %v1621 = vld [vmem:[#allocation8 + $0x220] sm:$0xff]
    %v1622 = vld [vmem:[#allocation8 + $0x228] sm:$0xff]
    %v1623 = vld [vmem:[#allocation8 + $0x230] sm:$0xff]
    %v1624 = vld [vmem:[#allocation8 + $0x238] sm:$0xff]
    %v1625 = vld [vmem:[#allocation8 + $0x240] sm:$0xff]
    %v1626 = vld [vmem:[#allocation8 + $0x248] sm:$0xff]
    %v1627 = vld [vmem:[#allocation8 + $0x250] sm:$0xff]
    %v1628 = vld [vmem:[#allocation8 + $0x258] sm:$0xff]
    %v1629 = vld [vmem:[#allocation8 + $0x260] sm:$0xff]
    %v1630 = vld [vmem:[#allocation8 + $0x268] sm:$0xff]
    %v1631 = vld [vmem:[#allocation8 + $0x270] sm:$0xff]
    %v1632 = vld [vmem:[#allocation8 + $0x278] sm:$0xff]
    %v1633 = vld [vmem:[#allocation8 + $0x280] sm:$0xff]
    %v1634 = vld [vmem:[#allocation8 + $0x288] sm:$0xff]
    %v1635 = vld [vmem:[#allocation8 + $0x290] sm:$0xff]
    %v1636 = vld [vmem:[#allocation8 + $0x298] sm:$0xff]
    %v1637 = vld [vmem:[#allocation8 + $0x2a0] sm:$0xff]
    %v1638 = vld [vmem:[#allocation8 + $0x2a8] sm:$0xff]
    %v1639 = vld [vmem:[#allocation8 + $0x2b0] sm:$0xff]
    %v1640 = vld [vmem:[#allocation8 + $0x2b8] sm:$0xff]
    %v1641 = vld [vmem:[#allocation8 + $0x2c0] sm:$0xff]
    %v1642 = vld [vmem:[#allocation8 + $0x2c8] sm:$0xff]
    %v1643 = vld [vmem:[#allocation8 + $0x2d0] sm:$0xff]
    %v1644 = vld [vmem:[#allocation8 + $0x2d8] sm:$0xff]
    %v1645 = vld [vmem:[#allocation8 + $0x2e0] sm:$0xff]
    %v1646 = vld [vmem:[#allocation8 + $0x2e8] sm:$0xff]
    %v1647 = vld [vmem:[#allocation8 + $0x2f0] sm:$0xff]
    %v1648 = vld [vmem:[#allocation8 + $0x2f8] sm:$0xff]
    %v1649 = vld [vmem:[#allocation8 + $0x300] sm:$0xff]
    %v1650 = vld [vmem:[#allocation8 + $0x308] sm:$0xff]
    %v1651 = vld [vmem:[#allocation8 + $0x310] sm:$0xff]
    %v1652 = vld [vmem:[#allocation8 + $0x318] sm:$0xff]
    %v1653 = vld [vmem:[#allocation8 + $0x320] sm:$0xff]
    %v1654 = vld [vmem:[#allocation8 + $0x328] sm:$0xff]
    %v1655 = vld [vmem:[#allocation8 + $0x330] sm:$0xff]
    %v1656 = vld [vmem:[#allocation8 + $0x338] sm:$0xff]
    %v1657 = vld [vmem:[#allocation8 + $0x340] sm:$0xff]
    %v1658 = vld [vmem:[#allocation8 + $0x348] sm:$0xff]
    %v1659 = vld [vmem:[#allocation8 + $0x350] sm:$0xff]
    %v1660 = vld [vmem:[#allocation8 + $0x358] sm:$0xff]
    %v1661 = vld [vmem:[#allocation8 + $0x360] sm:$0xff]
    %v1662 = vld [vmem:[#allocation8 + $0x368] sm:$0xff]
    %v1663 = vld [vmem:[#allocation8 + $0x370] sm:$0xff]
    %v1664 = vld [vmem:[#allocation8 + $0x378] sm:$0xff]
    %v1665 = vld [vmem:[#allocation8 + $0x380] sm:$0xff]
    %v1666 = vld [vmem:[#allocation8 + $0x388] sm:$0xff]
    %v1667 = vld [vmem:[#allocation8 + $0x390] sm:$0xff]
    %v1668 = vld [vmem:[#allocation8 + $0x398] sm:$0xff]
    %v1669 = vld [vmem:[#allocation8 + $0x3a0] sm:$0xff]
    %v1670 = vld [vmem:[#allocation8 + $0x3a8] sm:$0xff]
    %v1671 = vld [vmem:[#allocation8 + $0x3b0] sm:$0xff]
    %v1672 = vld [vmem:[#allocation8 + $0x3b8] sm:$0xff]
    %v1673 = vld [vmem:[#allocation8 + $0x3c0] sm:$0xff]
    %v1674 = vld [vmem:[#allocation8 + $0x3c8] sm:$0xff]
    %v1675 = vld [vmem:[#allocation8 + $0x3d0] sm:$0xff]
    %v1676 = vld [vmem:[#allocation8 + $0x3d8] sm:$0xff]
    %v1677 = vld [vmem:[#allocation8 + $0x3e0] sm:$0xff]
    %v1678 = vld [vmem:[#allocation8 + $0x3e8] sm:$0xff]
    %v1679 = vld [vmem:[#allocation8 + $0x3f0] sm:$0xff]
    %v1680 = vld [vmem:[#allocation8 + $0x3f8] sm:$0xff]
    %v1681 = vld [vmem:[#allocation8 + $0x400] sm:$0xff]
    %v1682 = vld [vmem:[#allocation8 + $0x408] sm:$0xff]
    %v1683 = vld [vmem:[#allocation8 + $0x410] sm:$0xff]
    %v1684 = vld [vmem:[#allocation8 + $0x418] sm:$0xff]
    %v1685 = vld [vmem:[#allocation8 + $0x420] sm:$0xff]
    %v1686 = vld [vmem:[#allocation8 + $0x428] sm:$0xff]
    %v1687 = vld [vmem:[#allocation8 + $0x430] sm:$0xff]
    %v1688 = vld [vmem:[#allocation8 + $0x438] sm:$0xff]
    %v1689 = vld [vmem:[#allocation8 + $0x440] sm:$0xff]
    %v1690 = vld [vmem:[#allocation8 + $0x448] sm:$0xff]
    %v1691 = vld [vmem:[#allocation8 + $0x450] sm:$0xff]
    %v1692 = vld [vmem:[#allocation8 + $0x458] sm:$0xff]
    %v1693 = vld [vmem:[#allocation8 + $0x460] sm:$0xff]
    %v1694 = vld [vmem:[#allocation8 + $0x468] sm:$0xff]
    %v1695 = vld [vmem:[#allocation8 + $0x470] sm:$0xff]
    %v1696 = vld [vmem:[#allocation8 + $0x478] sm:$0xff]
    %v1697 = vld [vmem:[#allocation8 + $0x480] sm:$0xff]
    %v1698 = vld [vmem:[#allocation8 + $0x488] sm:$0xff]
    %v1699 = vld [vmem:[#allocation8 + $0x490] sm:$0xff]
    %v1700 = vld [vmem:[#allocation8 + $0x498] sm:$0xff]
    %v1701 = vld [vmem:[#allocation8 + $0x4a0] sm:$0xff]
    %v1702 = vld [vmem:[#allocation8 + $0x4a8] sm:$0xff]
    %v1703 = vld [vmem:[#allocation8 + $0x4b0] sm:$0xff]
    %v1704 = vld [vmem:[#allocation8 + $0x4b8] sm:$0xff]
    %v1705 = vld [vmem:[#allocation8 + $0x4c0] sm:$0xff]
    %v1706 = vld [vmem:[#allocation8 + $0x4c8] sm:$0xff]
    %v1707 = vld [vmem:[#allocation8 + $0x4d0] sm:$0xff]
    %v1708 = vld [vmem:[#allocation8 + $0x4d8] sm:$0xff]
    %v1709 = vld [vmem:[#allocation8 + $0x4e0] sm:$0xff]
    %v1710 = vld [vmem:[#allocation8 + $0x4e8] sm:$0xff]
    %v1711 = vld [vmem:[#allocation8 + $0x4f0] sm:$0xff]
    %v1712 = vld [vmem:[#allocation8 + $0x4f8] sm:$0xff]
    %v1713 = vld [vmem:[#allocation8 + $0x500] sm:$0xff]
    %v1714 = vld [vmem:[#allocation8 + $0x508] sm:$0xff]
    %v1715 = vld [vmem:[#allocation8 + $0x510] sm:$0xff]
    %v1716 = vld [vmem:[#allocation8 + $0x518] sm:$0xff]
    %v1717 = vld [vmem:[#allocation8 + $0x520] sm:$0xff]
    %v1718 = vld [vmem:[#allocation8 + $0x528] sm:$0xff]
    %v1719 = vld [vmem:[#allocation8 + $0x530] sm:$0xff]
    %v1720 = vld [vmem:[#allocation8 + $0x538] sm:$0xff]
    %v1721 = vld [vmem:[#allocation8 + $0x540] sm:$0xff]
    %v1722 = vld [vmem:[#allocation8 + $0x548] sm:$0xff]
    %v1723 = vld [vmem:[#allocation8 + $0x550] sm:$0xff]
    %v1724 = vld [vmem:[#allocation8 + $0x558] sm:$0xff]
    %v1725 = vld [vmem:[#allocation8 + $0x560] sm:$0xff]
    %v1726 = vld [vmem:[#allocation8 + $0x568] sm:$0xff]
    %v1727 = vld [vmem:[#allocation8 + $0x570] sm:$0xff]
    %v1728 = vld [vmem:[#allocation8 + $0x578] sm:$0xff]
    %v1729 = vld [vmem:[#allocation8 + $0x580] sm:$0xff]
    %v1730 = vld [vmem:[#allocation8 + $0x588] sm:$0xff]
    %v1731 = vld [vmem:[#allocation8 + $0x590] sm:$0xff]
    %v1732 = vld [vmem:[#allocation8 + $0x598] sm:$0xff]
    %v1733 = vld [vmem:[#allocation8 + $0x5a0] sm:$0xff]
    %v1734 = vld [vmem:[#allocation8 + $0x5a8] sm:$0xff]
    %v1735 = vld [vmem:[#allocation8 + $0x5b0] sm:$0xff]
    %v1736 = vld [vmem:[#allocation8 + $0x5b8] sm:$0xff]
    %v1737 = vld [vmem:[#allocation8 + $0x5c0] sm:$0xff]
    %v1738 = vld [vmem:[#allocation8 + $0x5c8] sm:$0xff]
    %v1739 = vld [vmem:[#allocation8 + $0x5d0] sm:$0xff]
    %v1740 = vld [vmem:[#allocation8 + $0x5d8] sm:$0xff]
    %v1741 = vld [vmem:[#allocation8 + $0x5e0] sm:$0xff]
    %v1742 = vld [vmem:[#allocation8 + $0x5e8] sm:$0xff]
    %v1743 = vld [vmem:[#allocation8 + $0x5f0] sm:$0xff]
    %v1744 = vld [vmem:[#allocation8 + $0x5f8] sm:$0xff]
    %v1745 = vld [vmem:[#allocation8 + $0x600] sm:$0xff]
    %v1746 = vld [vmem:[#allocation8 + $0x608] sm:$0xff]
    %v1747 = vld [vmem:[#allocation8 + $0x610] sm:$0xff]
    %v1748 = vld [vmem:[#allocation8 + $0x618] sm:$0xff]
    %v1749 = vld [vmem:[#allocation8 + $0x620] sm:$0xff]
    %v1750 = vld [vmem:[#allocation8 + $0x628] sm:$0xff]
    %v1751 = vld [vmem:[#allocation8 + $0x630] sm:$0xff]
    %v1752 = vld [vmem:[#allocation8 + $0x638] sm:$0xff]
    %v1753 = vld [vmem:[#allocation8 + $0x640] sm:$0xff]
    %v1754 = vld [vmem:[#allocation8 + $0x648] sm:$0xff]
    %v1755 = vld [vmem:[#allocation8 + $0x650] sm:$0xff]
    %v1756 = vld [vmem:[#allocation8 + $0x658] sm:$0xff]
    %v1757 = vld [vmem:[#allocation8 + $0x660] sm:$0xff]
    %v1758 = vld [vmem:[#allocation8 + $0x668] sm:$0xff]
    %v1759 = vld [vmem:[#allocation8 + $0x670] sm:$0xff]
    %v1760 = vld [vmem:[#allocation8 + $0x678] sm:$0xff]
    %v1761 = vld [vmem:[#allocation8 + $0x680] sm:$0xff]
    %v1762 = vld [vmem:[#allocation8 + $0x688] sm:$0xff]
    %v1763 = vld [vmem:[#allocation8 + $0x690] sm:$0xff]
    %v1764 = vld [vmem:[#allocation8 + $0x698] sm:$0xff]
    %v1765 = vld [vmem:[#allocation8 + $0x6a0] sm:$0xff]
    %v1766 = vld [vmem:[#allocation8 + $0x6a8] sm:$0xff]
    %v1767 = vld [vmem:[#allocation8 + $0x6b0] sm:$0xff]
    %v1768 = vld [vmem:[#allocation8 + $0x6b8] sm:$0xff]
    %v1769 = vld [vmem:[#allocation8 + $0x6c0] sm:$0xff]
    %v1770 = vld [vmem:[#allocation8 + $0x6c8] sm:$0xff]
    %v1771 = vld [vmem:[#allocation8 + $0x6d0] sm:$0xff]
    %v1772 = vld [vmem:[#allocation8 + $0x6d8] sm:$0xff]
    %v1773 = vld [vmem:[#allocation8 + $0x6e0] sm:$0xff]
    %v1774 = vld [vmem:[#allocation8 + $0x6e8] sm:$0xff]
    %v1775 = vld [vmem:[#allocation8 + $0x6f0] sm:$0xff]
    %v1776 = vld [vmem:[#allocation8 + $0x6f8] sm:$0xff]
    %v1777 = vld [vmem:[#allocation8 + $0x700] sm:$0xff]
    %v1778 = vld [vmem:[#allocation8 + $0x708] sm:$0xff]
    %v1779 = vld [vmem:[#allocation8 + $0x710] sm:$0xff]
    %v1780 = vld [vmem:[#allocation8 + $0x718] sm:$0xff]
    %v1781 = vld [vmem:[#allocation8 + $0x720] sm:$0xff]
    %v1782 = vld [vmem:[#allocation8 + $0x728] sm:$0xff]
    %v1783 = vld [vmem:[#allocation8 + $0x730] sm:$0xff]
    %v1784 = vld [vmem:[#allocation8 + $0x738] sm:$0xff]
    %v1785 = vld [vmem:[#allocation8 + $0x740] sm:$0xff]
    %v1786 = vld [vmem:[#allocation8 + $0x748] sm:$0xff]
    %v1787 = vld [vmem:[#allocation8 + $0x750] sm:$0xff]
    %v1788 = vld [vmem:[#allocation8 + $0x758] sm:$0xff]
    %v1789 = vld [vmem:[#allocation8 + $0x760] sm:$0xff]
    %v1790 = vld [vmem:[#allocation8 + $0x768] sm:$0xff]
    %v1791 = vld [vmem:[#allocation8 + $0x770] sm:$0xff]
    %v1792 = vld [vmem:[#allocation8 + $0x778] sm:$0xff]
    %v1793 = vld [vmem:[#allocation8 + $0x780] sm:$0xff]
    %v1794 = vld [vmem:[#allocation8 + $0x788] sm:$0xff]
    %v1795 = vld [vmem:[#allocation8 + $0x790] sm:$0xff]
    %v1796 = vld [vmem:[#allocation8 + $0x798] sm:$0xff]
    %v1797 = vld [vmem:[#allocation8 + $0x7a0] sm:$0xff]
    %v1798 = vld [vmem:[#allocation8 + $0x7a8] sm:$0xff]
    %v1799 = vld [vmem:[#allocation8 + $0x7b0] sm:$0xff]
    %v1800 = vld [vmem:[#allocation8 + $0x7b8] sm:$0xff]
    %v1801 = vld [vmem:[#allocation8 + $0x7c0] sm:$0xff]
    %v1802 = vld [vmem:[#allocation8 + $0x7c8] sm:$0xff]
    %v1803 = vld [vmem:[#allocation8 + $0x7d0] sm:$0xff]
    %v1804 = vld [vmem:[#allocation8 + $0x7d8] sm:$0xff]
    %v1805 = vld [vmem:[#allocation8 + $0x7e0] sm:$0xff]
    %v1806 = vld [vmem:[#allocation8 + $0x7e8] sm:$0xff]
    %v1807 = vld [vmem:[#allocation8 + $0x7f0] sm:$0xff]
    %v1808 = vld [vmem:[#allocation8 + $0x7f8] sm:$0xff]
    %v1809 = vld [vmem:[#allocation8 + $0x800] sm:$0xff]
    %v1810 = vld [vmem:[#allocation8 + $0x808] sm:$0xff]
    %v1811 = vld [vmem:[#allocation8 + $0x810] sm:$0xff]
    %v1812 = vld [vmem:[#allocation8 + $0x818] sm:$0xff]
    %v1813 = vld [vmem:[#allocation8 + $0x820] sm:$0xff]
    %v1814 = vld [vmem:[#allocation8 + $0x828] sm:$0xff]
    %v1815 = vld [vmem:[#allocation8 + $0x830] sm:$0xff]
    %v1816 = vld [vmem:[#allocation8 + $0x838] sm:$0xff]
    %v1817 = vld [vmem:[#allocation8 + $0x840] sm:$0xff]
    %v1818 = vld [vmem:[#allocation8 + $0x848] sm:$0xff]
    %v1819 = vld [vmem:[#allocation8 + $0x850] sm:$0xff]
    %v1820 = vld [vmem:[#allocation8 + $0x858] sm:$0xff]
    %v1821 = vld [vmem:[#allocation8 + $0x860] sm:$0xff]
    %v1822 = vld [vmem:[#allocation8 + $0x868] sm:$0xff]
    %v1823 = vld [vmem:[#allocation8 + $0x870] sm:$0xff]
    %v1824 = vld [vmem:[#allocation8 + $0x878] sm:$0xff]
    %v1825 = vld [vmem:[#allocation8 + $0x880] sm:$0xff]
    %v1826 = vld [vmem:[#allocation8 + $0x888] sm:$0xff]
    %v1827 = vld [vmem:[#allocation8 + $0x890] sm:$0xff]
    %v1828 = vld [vmem:[#allocation8 + $0x898] sm:$0xff]
    %v1829 = vld [vmem:[#allocation8 + $0x8a0] sm:$0xff]
    %v1830 = vld [vmem:[#allocation8 + $0x8a8] sm:$0xff]
    %v1831 = vld [vmem:[#allocation8 + $0x8b0] sm:$0xff]
    %v1832 = vld [vmem:[#allocation8 + $0x8b8] sm:$0xff]
    %v1833 = vld [vmem:[#allocation8 + $0x8c0] sm:$0xff]
    %v1834 = vld [vmem:[#allocation8 + $0x8c8] sm:$0xff]
    %v1835 = vld [vmem:[#allocation8 + $0x8d0] sm:$0xff]
    %v1836 = vld [vmem:[#allocation8 + $0x8d8] sm:$0xff]
    %v1837 = vld [vmem:[#allocation8 + $0x8e0] sm:$0xff]
    %v1838 = vld [vmem:[#allocation8 + $0x8e8] sm:$0xff]
    %v1839 = vld [vmem:[#allocation8 + $0x8f0] sm:$0xff]
    %v1840 = vld [vmem:[#allocation8 + $0x8f8] sm:$0xff]
    %v1841 = vld [vmem:[#allocation10] sm:$0x3f]
    %v1843 = vlaneseq
    %v1844 = vshrl.u32 %v1843, 7
    %v1845 = vsub.s32 0, %v1844
    %v1846 = vrot.slane %v1841, %v1845
    %v1847 = vlaneseq
    %v1848 = vshrl.u32 %v1847, 7
    %v1849 = vsub.s32 1, %v1848
    %v1850 = vrot.slane %v1841, %v1849
    %v1851 = vlaneseq
    %v1852 = vshrl.u32 %v1851, 7
    %v1853 = vsub.s32 2, %v1852
    %v1854 = vrot.slane %v1841, %v1853
    %v1855 = vlaneseq
    %v1856 = vshrl.u32 %v1855, 7
    %v1857 = vsub.s32 3, %v1856
    %v1858 = vrot.slane %v1841, %v1857
    %v1859 = vlaneseq
    %v1860 = vshrl.u32 %v1859, 7
    %v1861 = vsub.s32 4, %v1860
    %v1862 = vrot.slane %v1841, %v1861
    %v1863 = vlaneseq
    %v1864 = vshrl.u32 %v1863, 7
    %v1865 = vsub.s32 5, %v1864
    %v1866 = vrot.slane %v1841, %v1865
    %v2161 = vunpack.c.l.b16 %v1553
    %v2162 = vunpack.c.h.b16 %v1553
    %v2163 = vunpack.c.l.b16 %v1554
    %v2164 = vunpack.c.h.b16 %v1554
    %v2165 = vunpack.c.l.b16 %v1555
    %v2166 = vunpack.c.h.b16 %v1555
    %v2167 = vunpack.c.l.b16 %v1556
    %v2168 = vunpack.c.h.b16 %v1556
    %v2169 = vunpack.c.l.b16 %v1557
    %v2170 = vunpack.c.h.b16 %v1557
    %v2171 = vunpack.c.l.b16 %v1558
    %v2172 = vunpack.c.h.b16 %v1558
    %v2173 = vunpack.c.l.b16 %v1559
    %v2174 = vunpack.c.h.b16 %v1559
    %v2175 = vunpack.c.l.b16 %v1560
    %v2176 = vunpack.c.h.b16 %v1560
    %v2177 = vunpack.c.l.b16 %v1561
    %v2178 = vunpack.c.h.b16 %v1561
    %v2179 = vunpack.c.l.b16 %v1562
    %v2180 = vunpack.c.h.b16 %v1562
    %v2181 = vunpack.c.l.b16 %v1563
    %v2182 = vunpack.c.h.b16 %v1563
    %v2183 = vunpack.c.l.b16 %v1564
    %v2184 = vunpack.c.h.b16 %v1564
    %v2185 = vunpack.c.l.b16 %v1565
    %v2186 = vunpack.c.h.b16 %v1565
    %v2187 = vunpack.c.l.b16 %v1566
    %v2188 = vunpack.c.h.b16 %v1566
    %v2189 = vunpack.c.l.b16 %v1567
    %v2190 = vunpack.c.h.b16 %v1567
    %v2191 = vunpack.c.l.b16 %v1568
    %v2192 = vunpack.c.h.b16 %v1568
    %v2193 = vunpack.c.l.b16 %v1569
    %v2194 = vunpack.c.h.b16 %v1569
    %v2195 = vunpack.c.l.b16 %v1570
    %v2196 = vunpack.c.h.b16 %v1570
    %v2197 = vunpack.c.l.b16 %v1571
    %v2198 = vunpack.c.h.b16 %v1571
    %v2199 = vunpack.c.l.b16 %v1572
    %v2200 = vunpack.c.h.b16 %v1572
    %v2201 = vunpack.c.l.b16 %v1573
    %v2202 = vunpack.c.h.b16 %v1573
    %v2203 = vunpack.c.l.b16 %v1574
    %v2204 = vunpack.c.h.b16 %v1574
    %v2205 = vunpack.c.l.b16 %v1575
    %v2206 = vunpack.c.h.b16 %v1575
    %v2207 = vunpack.c.l.b16 %v1576
    %v2208 = vunpack.c.h.b16 %v1576
    %v2209 = vunpack.c.l.b16 %v1577
    %v2210 = vunpack.c.h.b16 %v1577
    %v2211 = vunpack.c.l.b16 %v1578
    %v2212 = vunpack.c.h.b16 %v1578
    %v2213 = vunpack.c.l.b16 %v1579
    %v2214 = vunpack.c.h.b16 %v1579
    %v2215 = vunpack.c.l.b16 %v1580
    %v2216 = vunpack.c.h.b16 %v1580
    %v2217 = vunpack.c.l.b16 %v1581
    %v2218 = vunpack.c.h.b16 %v1581
    %v2219 = vunpack.c.l.b16 %v1582
    %v2220 = vunpack.c.h.b16 %v1582
    %v2221 = vunpack.c.l.b16 %v1583
    %v2222 = vunpack.c.h.b16 %v1583
    %v2223 = vunpack.c.l.b16 %v1584
    %v2224 = vunpack.c.h.b16 %v1584
    %v2225 = vunpack.c.l.b16 %v1585
    %v2226 = vunpack.c.h.b16 %v1585
    %v2227 = vunpack.c.l.b16 %v1586
    %v2228 = vunpack.c.h.b16 %v1586
    %v2229 = vunpack.c.l.b16 %v1587
    %v2230 = vunpack.c.h.b16 %v1587
    %v2231 = vunpack.c.l.b16 %v1588
    %v2232 = vunpack.c.h.b16 %v1588
    %v2233 = vunpack.c.l.b16 %v1589
    %v2234 = vunpack.c.h.b16 %v1589
    %v2235 = vunpack.c.l.b16 %v1590
    %v2236 = vunpack.c.h.b16 %v1590
    %v2237 = vunpack.c.l.b16 %v1591
    %v2238 = vunpack.c.h.b16 %v1591
    %v2239 = vunpack.c.l.b16 %v1592
    %v2240 = vunpack.c.h.b16 %v1592
    %v2241 = vunpack.c.l.b16 %v1593
    %v2242 = vunpack.c.h.b16 %v1593
    %v2243 = vunpack.c.l.b16 %v1594
    %v2244 = vunpack.c.h.b16 %v1594
    %v2245 = vunpack.c.l.b16 %v1595
    %v2246 = vunpack.c.h.b16 %v1595
    %v2247 = vunpack.c.l.b16 %v1596
    %v2248 = vunpack.c.h.b16 %v1596
    %v2249 = vunpack.c.l.b16 %v1597
    %v2250 = vunpack.c.h.b16 %v1597
    %v2251 = vunpack.c.l.b16 %v1598
    %v2252 = vunpack.c.h.b16 %v1598
    %v2253 = vunpack.c.l.b16 %v1599
    %v2254 = vunpack.c.h.b16 %v1599
    %v2255 = vunpack.c.l.b16 %v1600
    %v2256 = vunpack.c.h.b16 %v1600
    %v2257 = vunpack.c.l.b16 %v1601
    %v2258 = vunpack.c.h.b16 %v1601
    %v2259 = vunpack.c.l.b16 %v1602
    %v2260 = vunpack.c.h.b16 %v1602
    %v2261 = vunpack.c.l.b16 %v1603
    %v2262 = vunpack.c.h.b16 %v1603
    %v2263 = vunpack.c.l.b16 %v1604
    %v2264 = vunpack.c.h.b16 %v1604
    %v2265 = vunpack.c.l.b16 %v1605
    %v2266 = vunpack.c.h.b16 %v1605
    %v2267 = vunpack.c.l.b16 %v1606
    %v2268 = vunpack.c.h.b16 %v1606
    %v2269 = vunpack.c.l.b16 %v1607
    %v2270 = vunpack.c.h.b16 %v1607
    %v2271 = vunpack.c.l.b16 %v1608
    %v2272 = vunpack.c.h.b16 %v1608
    %v2273 = vunpack.c.l.b16 %v1609
    %v2274 = vunpack.c.h.b16 %v1609
    %v2275 = vunpack.c.l.b16 %v1610
    %v2276 = vunpack.c.h.b16 %v1610
    %v2277 = vunpack.c.l.b16 %v1611
    %v2278 = vunpack.c.h.b16 %v1611
    %v2279 = vunpack.c.l.b16 %v1612
    %v2280 = vunpack.c.h.b16 %v1612
    %v2281 = vunpack.c.l.b16 %v1613
    %v2282 = vunpack.c.h.b16 %v1613
    %v2283 = vunpack.c.l.b16 %v1614
    %v2284 = vunpack.c.h.b16 %v1614
    %v2285 = vunpack.c.l.b16 %v1615
    %v2286 = vunpack.c.h.b16 %v1615
    %v2287 = vunpack.c.l.b16 %v1616
    %v2288 = vunpack.c.h.b16 %v1616
    %v2289 = vunpack.c.l.b16 %v1617
    %v2290 = vunpack.c.h.b16 %v1617
    %v2291 = vunpack.c.l.b16 %v1618
    %v2292 = vunpack.c.h.b16 %v1618
    %v2293 = vunpack.c.l.b16 %v1619
    %v2294 = vunpack.c.h.b16 %v1619
    %v2295 = vunpack.c.l.b16 %v1620
    %v2296 = vunpack.c.h.b16 %v1620
    %v2297 = vunpack.c.l.b16 %v1621
    %v2298 = vunpack.c.h.b16 %v1621
    %v2299 = vunpack.c.l.b16 %v1622
    %v2300 = vunpack.c.h.b16 %v1622
    %v2301 = vunpack.c.l.b16 %v1623
    %v2302 = vunpack.c.h.b16 %v1623
    %v2303 = vunpack.c.l.b16 %v1624
    %v2304 = vunpack.c.h.b16 %v1624
    %v2305 = vunpack.c.l.b16 %v1625
    %v2306 = vunpack.c.h.b16 %v1625
    %v2307 = vunpack.c.l.b16 %v1626
    %v2308 = vunpack.c.h.b16 %v1626
    %v2309 = vunpack.c.l.b16 %v1627
    %v2310 = vunpack.c.h.b16 %v1627
    %v2311 = vunpack.c.l.b16 %v1628
    %v2312 = vunpack.c.h.b16 %v1628
    %v2313 = vunpack.c.l.b16 %v1629
    %v2314 = vunpack.c.h.b16 %v1629
    %v2315 = vunpack.c.l.b16 %v1630
    %v2316 = vunpack.c.h.b16 %v1630
    %v2317 = vunpack.c.l.b16 %v1631
    %v2318 = vunpack.c.h.b16 %v1631
    %v2319 = vunpack.c.l.b16 %v1632
    %v2320 = vunpack.c.h.b16 %v1632
    %v2321 = vunpack.c.l.b16 %v1633
    %v2322 = vunpack.c.h.b16 %v1633
    %v2323 = vunpack.c.l.b16 %v1634
    %v2324 = vunpack.c.h.b16 %v1634
    %v2325 = vunpack.c.l.b16 %v1635
    %v2326 = vunpack.c.h.b16 %v1635
    %v2327 = vunpack.c.l.b16 %v1636
    %v2328 = vunpack.c.h.b16 %v1636
    %v2329 = vunpack.c.l.b16 %v1637
    %v2330 = vunpack.c.h.b16 %v1637
    %v2331 = vunpack.c.l.b16 %v1638
    %v2332 = vunpack.c.h.b16 %v1638
    %v2333 = vunpack.c.l.b16 %v1639
    %v2334 = vunpack.c.h.b16 %v1639
    %v2335 = vunpack.c.l.b16 %v1640
    %v2336 = vunpack.c.h.b16 %v1640
    %v2337 = vunpack.c.l.b16 %v1641
    %v2338 = vunpack.c.h.b16 %v1641
    %v2339 = vunpack.c.l.b16 %v1642
    %v2340 = vunpack.c.h.b16 %v1642
    %v2341 = vunpack.c.l.b16 %v1643
    %v2342 = vunpack.c.h.b16 %v1643
    %v2343 = vunpack.c.l.b16 %v1644
    %v2344 = vunpack.c.h.b16 %v1644
    %v2345 = vunpack.c.l.b16 %v1645
    %v2346 = vunpack.c.h.b16 %v1645
    %v2347 = vunpack.c.l.b16 %v1646
    %v2348 = vunpack.c.h.b16 %v1646
    %v2349 = vunpack.c.l.b16 %v1647
    %v2350 = vunpack.c.h.b16 %v1647
    %v2351 = vunpack.c.l.b16 %v1648
    %v2352 = vunpack.c.h.b16 %v1648
    %v2353 = vunpack.c.l.b16 %v1649
    %v2354 = vunpack.c.h.b16 %v1649
    %v2355 = vunpack.c.l.b16 %v1650
    %v2356 = vunpack.c.h.b16 %v1650
    %v2357 = vunpack.c.l.b16 %v1651
    %v2358 = vunpack.c.h.b16 %v1651
    %v2359 = vunpack.c.l.b16 %v1652
    %v2360 = vunpack.c.h.b16 %v1652
    %v2361 = vunpack.c.l.b16 %v1653
    %v2362 = vunpack.c.h.b16 %v1653
    %v2363 = vunpack.c.l.b16 %v1654
    %v2364 = vunpack.c.h.b16 %v1654
    %v2365 = vunpack.c.l.b16 %v1655
    %v2366 = vunpack.c.h.b16 %v1655
    %v2367 = vunpack.c.l.b16 %v1656
    %v2368 = vunpack.c.h.b16 %v1656
    %v2369 = vunpack.c.l.b16 %v1657
    %v2370 = vunpack.c.h.b16 %v1657
    %v2371 = vunpack.c.l.b16 %v1658
    %v2372 = vunpack.c.h.b16 %v1658
    %v2373 = vunpack.c.l.b16 %v1659
    %v2374 = vunpack.c.h.b16 %v1659
    %v2375 = vunpack.c.l.b16 %v1660
    %v2376 = vunpack.c.h.b16 %v1660
    %v2377 = vunpack.c.l.b16 %v1661
    %v2378 = vunpack.c.h.b16 %v1661
    %v2379 = vunpack.c.l.b16 %v1662
    %v2380 = vunpack.c.h.b16 %v1662
    %v2381 = vunpack.c.l.b16 %v1663
    %v2382 = vunpack.c.h.b16 %v1663
    %v2383 = vunpack.c.l.b16 %v1664
    %v2384 = vunpack.c.h.b16 %v1664
    %v2385 = vunpack.c.l.b16 %v1665
    %v2386 = vunpack.c.h.b16 %v1665
    %v2387 = vunpack.c.l.b16 %v1666
    %v2388 = vunpack.c.h.b16 %v1666
    %v2389 = vunpack.c.l.b16 %v1667
    %v2390 = vunpack.c.h.b16 %v1667
    %v2391 = vunpack.c.l.b16 %v1668
    %v2392 = vunpack.c.h.b16 %v1668
    %v2393 = vunpack.c.l.b16 %v1669
    %v2394 = vunpack.c.h.b16 %v1669
    %v2395 = vunpack.c.l.b16 %v1670
    %v2396 = vunpack.c.h.b16 %v1670
    %v2397 = vunpack.c.l.b16 %v1671
    %v2398 = vunpack.c.h.b16 %v1671
    %v2399 = vunpack.c.l.b16 %v1672
    %v2400 = vunpack.c.h.b16 %v1672
    %v2401 = vunpack.c.l.b16 %v1673
    %v2402 = vunpack.c.h.b16 %v1673
    %v2403 = vunpack.c.l.b16 %v1674
    %v2404 = vunpack.c.h.b16 %v1674
    %v2405 = vunpack.c.l.b16 %v1675
    %v2406 = vunpack.c.h.b16 %v1675
    %v2407 = vunpack.c.l.b16 %v1676
    %v2408 = vunpack.c.h.b16 %v1676
    %v2409 = vunpack.c.l.b16 %v1677
    %v2410 = vunpack.c.h.b16 %v1677
    %v2411 = vunpack.c.l.b16 %v1678
    %v2412 = vunpack.c.h.b16 %v1678
    %v2413 = vunpack.c.l.b16 %v1679
    %v2414 = vunpack.c.h.b16 %v1679
    %v2415 = vunpack.c.l.b16 %v1680
    %v2416 = vunpack.c.h.b16 %v1680
    %v2417 = vunpack.c.l.b16 %v1681
    %v2418 = vunpack.c.h.b16 %v1681
    %v2419 = vunpack.c.l.b16 %v1682
    %v2420 = vunpack.c.h.b16 %v1682
    %v2421 = vunpack.c.l.b16 %v1683
    %v2422 = vunpack.c.h.b16 %v1683
    %v2423 = vunpack.c.l.b16 %v1684
    %v2424 = vunpack.c.h.b16 %v1684
    %v2425 = vunpack.c.l.b16 %v1685
    %v2426 = vunpack.c.h.b16 %v1685
    %v2427 = vunpack.c.l.b16 %v1686
    %v2428 = vunpack.c.h.b16 %v1686
    %v2429 = vunpack.c.l.b16 %v1687
    %v2430 = vunpack.c.h.b16 %v1687
    %v2431 = vunpack.c.l.b16 %v1688
    %v2432 = vunpack.c.h.b16 %v1688
    %v2433 = vunpack.c.l.b16 %v1689
    %v2434 = vunpack.c.h.b16 %v1689
    %v2435 = vunpack.c.l.b16 %v1690
    %v2436 = vunpack.c.h.b16 %v1690
    %v2437 = vunpack.c.l.b16 %v1691
    %v2438 = vunpack.c.h.b16 %v1691
    %v2439 = vunpack.c.l.b16 %v1692
    %v2440 = vunpack.c.h.b16 %v1692
    %v2441 = vunpack.c.l.b16 %v1693
    %v2442 = vunpack.c.h.b16 %v1693
    %v2443 = vunpack.c.l.b16 %v1694
    %v2444 = vunpack.c.h.b16 %v1694
    %v2445 = vunpack.c.l.b16 %v1695
    %v2446 = vunpack.c.h.b16 %v1695
    %v2447 = vunpack.c.l.b16 %v1696
    %v2448 = vunpack.c.h.b16 %v1696
    %v2449 = vunpack.c.l.b16 %v1697
    %v2450 = vunpack.c.h.b16 %v1697
    %v2451 = vunpack.c.l.b16 %v1698
    %v2452 = vunpack.c.h.b16 %v1698
    %v2453 = vunpack.c.l.b16 %v1699
    %v2454 = vunpack.c.h.b16 %v1699
    %v2455 = vunpack.c.l.b16 %v1700
    %v2456 = vunpack.c.h.b16 %v1700
    %v2457 = vunpack.c.l.b16 %v1701
    %v2458 = vunpack.c.h.b16 %v1701
    %v2459 = vunpack.c.l.b16 %v1702
    %v2460 = vunpack.c.h.b16 %v1702
    %v2461 = vunpack.c.l.b16 %v1703
    %v2462 = vunpack.c.h.b16 %v1703
    %v2463 = vunpack.c.l.b16 %v1704
    %v2464 = vunpack.c.h.b16 %v1704
    %v2465 = vunpack.c.l.b16 %v1705
    %v2466 = vunpack.c.h.b16 %v1705
    %v2467 = vunpack.c.l.b16 %v1706
    %v2468 = vunpack.c.h.b16 %v1706
    %v2469 = vunpack.c.l.b16 %v1707
    %v2470 = vunpack.c.h.b16 %v1707
    %v2471 = vunpack.c.l.b16 %v1708
    %v2472 = vunpack.c.h.b16 %v1708
    %v2473 = vunpack.c.l.b16 %v1709
    %v2474 = vunpack.c.h.b16 %v1709
    %v2475 = vunpack.c.l.b16 %v1710
    %v2476 = vunpack.c.h.b16 %v1710
    %v2477 = vunpack.c.l.b16 %v1711
    %v2478 = vunpack.c.h.b16 %v1711
    %v2479 = vunpack.c.l.b16 %v1712
    %v2480 = vunpack.c.h.b16 %v1712
    %v2481 = vunpack.c.l.b16 %v1713
    %v2482 = vunpack.c.h.b16 %v1713
    %v2483 = vunpack.c.l.b16 %v1714
    %v2484 = vunpack.c.h.b16 %v1714
    %v2485 = vunpack.c.l.b16 %v1715
    %v2486 = vunpack.c.h.b16 %v1715
    %v2487 = vunpack.c.l.b16 %v1716
    %v2488 = vunpack.c.h.b16 %v1716
    %v2489 = vunpack.c.l.b16 %v1717
    %v2490 = vunpack.c.h.b16 %v1717
    %v2491 = vunpack.c.l.b16 %v1718
    %v2492 = vunpack.c.h.b16 %v1718
    %v2493 = vunpack.c.l.b16 %v1719
    %v2494 = vunpack.c.h.b16 %v1719
    %v2495 = vunpack.c.l.b16 %v1720
    %v2496 = vunpack.c.h.b16 %v1720
    %v2497 = vunpack.c.l.b16 %v1721
    %v2498 = vunpack.c.h.b16 %v1721
    %v2499 = vunpack.c.l.b16 %v1722
    %v2500 = vunpack.c.h.b16 %v1722
    %v2501 = vunpack.c.l.b16 %v1723
    %v2502 = vunpack.c.h.b16 %v1723
    %v2503 = vunpack.c.l.b16 %v1724
    %v2504 = vunpack.c.h.b16 %v1724
    %v2505 = vunpack.c.l.b16 %v1725
    %v2506 = vunpack.c.h.b16 %v1725
    %v2507 = vunpack.c.l.b16 %v1726
    %v2508 = vunpack.c.h.b16 %v1726
    %v2509 = vunpack.c.l.b16 %v1727
    %v2510 = vunpack.c.h.b16 %v1727
    %v2511 = vunpack.c.l.b16 %v1728
    %v2512 = vunpack.c.h.b16 %v1728
    %v2513 = vunpack.c.l.b16 %v1729
    %v2514 = vunpack.c.h.b16 %v1729
    %v2515 = vunpack.c.l.b16 %v1730
    %v2516 = vunpack.c.h.b16 %v1730
    %v2517 = vunpack.c.l.b16 %v1731
    %v2518 = vunpack.c.h.b16 %v1731
    %v2519 = vunpack.c.l.b16 %v1732
    %v2520 = vunpack.c.h.b16 %v1732
    %v2521 = vunpack.c.l.b16 %v1733
    %v2522 = vunpack.c.h.b16 %v1733
    %v2523 = vunpack.c.l.b16 %v1734
    %v2524 = vunpack.c.h.b16 %v1734
    %v2525 = vunpack.c.l.b16 %v1735
    %v2526 = vunpack.c.h.b16 %v1735
    %v2527 = vunpack.c.l.b16 %v1736
    %v2528 = vunpack.c.h.b16 %v1736
    %v2529 = vunpack.c.l.b16 %v1737
    %v2530 = vunpack.c.h.b16 %v1737
    %v2531 = vunpack.c.l.b16 %v1738
    %v2532 = vunpack.c.h.b16 %v1738
    %v2533 = vunpack.c.l.b16 %v1739
    %v2534 = vunpack.c.h.b16 %v1739
    %v2535 = vunpack.c.l.b16 %v1740
    %v2536 = vunpack.c.h.b16 %v1740
    %v2537 = vunpack.c.l.b16 %v1741
    %v2538 = vunpack.c.h.b16 %v1741
    %v2539 = vunpack.c.l.b16 %v1742
    %v2540 = vunpack.c.h.b16 %v1742
    %v2541 = vunpack.c.l.b16 %v1743
    %v2542 = vunpack.c.h.b16 %v1743
    %v2543 = vunpack.c.l.b16 %v1744
    %v2544 = vunpack.c.h.b16 %v1744
    %v2545 = vunpack.c.l.b16 %v1745
    %v2546 = vunpack.c.h.b16 %v1745
    %v2547 = vunpack.c.l.b16 %v1746
    %v2548 = vunpack.c.h.b16 %v1746
    %v2549 = vunpack.c.l.b16 %v1747
    %v2550 = vunpack.c.h.b16 %v1747
    %v2551 = vunpack.c.l.b16 %v1748
    %v2552 = vunpack.c.h.b16 %v1748
    %v2553 = vunpack.c.l.b16 %v1749
    %v2554 = vunpack.c.h.b16 %v1749
    %v2555 = vunpack.c.l.b16 %v1750
    %v2556 = vunpack.c.h.b16 %v1750
    %v2557 = vunpack.c.l.b16 %v1751
    %v2558 = vunpack.c.h.b16 %v1751
    %v2559 = vunpack.c.l.b16 %v1752
    %v2560 = vunpack.c.h.b16 %v1752
    %v2561 = vunpack.c.l.b16 %v1753
    %v2562 = vunpack.c.h.b16 %v1753
    %v2563 = vunpack.c.l.b16 %v1754
    %v2564 = vunpack.c.h.b16 %v1754
    %v2565 = vunpack.c.l.b16 %v1755
    %v2566 = vunpack.c.h.b16 %v1755
    %v2567 = vunpack.c.l.b16 %v1756
    %v2568 = vunpack.c.h.b16 %v1756
    %v2569 = vunpack.c.l.b16 %v1757
    %v2570 = vunpack.c.h.b16 %v1757
    %v2571 = vunpack.c.l.b16 %v1758
    %v2572 = vunpack.c.h.b16 %v1758
    %v2573 = vunpack.c.l.b16 %v1759
    %v2574 = vunpack.c.h.b16 %v1759
    %v2575 = vunpack.c.l.b16 %v1760
    %v2576 = vunpack.c.h.b16 %v1760
    %v2577 = vunpack.c.l.b16 %v1761
    %v2578 = vunpack.c.h.b16 %v1761
    %v2579 = vunpack.c.l.b16 %v1762
    %v2580 = vunpack.c.h.b16 %v1762
    %v2581 = vunpack.c.l.b16 %v1763
    %v2582 = vunpack.c.h.b16 %v1763
    %v2583 = vunpack.c.l.b16 %v1764
    %v2584 = vunpack.c.h.b16 %v1764
    %v2585 = vunpack.c.l.b16 %v1765
    %v2586 = vunpack.c.h.b16 %v1765
    %v2587 = vunpack.c.l.b16 %v1766
    %v2588 = vunpack.c.h.b16 %v1766
    %v2589 = vunpack.c.l.b16 %v1767
    %v2590 = vunpack.c.h.b16 %v1767
    %v2591 = vunpack.c.l.b16 %v1768
    %v2592 = vunpack.c.h.b16 %v1768
    %v2593 = vunpack.c.l.b16 %v1769
    %v2594 = vunpack.c.h.b16 %v1769
    %v2595 = vunpack.c.l.b16 %v1770
    %v2596 = vunpack.c.h.b16 %v1770
    %v2597 = vunpack.c.l.b16 %v1771
    %v2598 = vunpack.c.h.b16 %v1771
    %v2599 = vunpack.c.l.b16 %v1772
    %v2600 = vunpack.c.h.b16 %v1772
    %v2601 = vunpack.c.l.b16 %v1773
    %v2602 = vunpack.c.h.b16 %v1773
    %v2603 = vunpack.c.l.b16 %v1774
    %v2604 = vunpack.c.h.b16 %v1774
    %v2605 = vunpack.c.l.b16 %v1775
    %v2606 = vunpack.c.h.b16 %v1775
    %v2607 = vunpack.c.l.b16 %v1776
    %v2608 = vunpack.c.h.b16 %v1776
    %v2609 = vunpack.c.l.b16 %v1777
    %v2610 = vunpack.c.h.b16 %v1777
    %v2611 = vunpack.c.l.b16 %v1778
    %v2612 = vunpack.c.h.b16 %v1778
    %v2613 = vunpack.c.l.b16 %v1779
    %v2614 = vunpack.c.h.b16 %v1779
    %v2615 = vunpack.c.l.b16 %v1780
    %v2616 = vunpack.c.h.b16 %v1780
    %v2617 = vunpack.c.l.b16 %v1781
    %v2618 = vunpack.c.h.b16 %v1781
    %v2619 = vunpack.c.l.b16 %v1782
    %v2620 = vunpack.c.h.b16 %v1782
    %v2621 = vunpack.c.l.b16 %v1783
    %v2622 = vunpack.c.h.b16 %v1783
    %v2623 = vunpack.c.l.b16 %v1784
    %v2624 = vunpack.c.h.b16 %v1784
    %v2625 = vunpack.c.l.b16 %v1785
    %v2626 = vunpack.c.h.b16 %v1785
    %v2627 = vunpack.c.l.b16 %v1786
    %v2628 = vunpack.c.h.b16 %v1786
    %v2629 = vunpack.c.l.b16 %v1787
    %v2630 = vunpack.c.h.b16 %v1787
    %v2631 = vunpack.c.l.b16 %v1788
    %v2632 = vunpack.c.h.b16 %v1788
    %v2633 = vunpack.c.l.b16 %v1789
    %v2634 = vunpack.c.h.b16 %v1789
    %v2635 = vunpack.c.l.b16 %v1790
    %v2636 = vunpack.c.h.b16 %v1790
    %v2637 = vunpack.c.l.b16 %v1791
    %v2638 = vunpack.c.h.b16 %v1791
    %v2639 = vunpack.c.l.b16 %v1792
    %v2640 = vunpack.c.h.b16 %v1792
    %v2641 = vunpack.c.l.b16 %v1793
    %v2642 = vunpack.c.h.b16 %v1793
    %v2643 = vunpack.c.l.b16 %v1794
    %v2644 = vunpack.c.h.b16 %v1794
    %v2645 = vunpack.c.l.b16 %v1795
    %v2646 = vunpack.c.h.b16 %v1795
    %v2647 = vunpack.c.l.b16 %v1796
    %v2648 = vunpack.c.h.b16 %v1796
    %v2649 = vunpack.c.l.b16 %v1797
    %v2650 = vunpack.c.h.b16 %v1797
    %v2651 = vunpack.c.l.b16 %v1798
    %v2652 = vunpack.c.h.b16 %v1798
    %v2653 = vunpack.c.l.b16 %v1799
    %v2654 = vunpack.c.h.b16 %v1799
    %v2655 = vunpack.c.l.b16 %v1800
    %v2656 = vunpack.c.h.b16 %v1800
    %v2657 = vunpack.c.l.b16 %v1801
    %v2658 = vunpack.c.h.b16 %v1801
    %v2659 = vunpack.c.l.b16 %v1802
    %v2660 = vunpack.c.h.b16 %v1802
    %v2661 = vunpack.c.l.b16 %v1803
    %v2662 = vunpack.c.h.b16 %v1803
    %v2663 = vunpack.c.l.b16 %v1804
    %v2664 = vunpack.c.h.b16 %v1804
    %v2665 = vunpack.c.l.b16 %v1805
    %v2666 = vunpack.c.h.b16 %v1805
    %v2667 = vunpack.c.l.b16 %v1806
    %v2668 = vunpack.c.h.b16 %v1806
    %v2669 = vunpack.c.l.b16 %v1807
    %v2670 = vunpack.c.h.b16 %v1807
    %v2671 = vunpack.c.l.b16 %v1808
    %v2672 = vunpack.c.h.b16 %v1808
    %v2673 = vunpack.c.l.b16 %v1809
    %v2674 = vunpack.c.h.b16 %v1809
    %v2675 = vunpack.c.l.b16 %v1810
    %v2676 = vunpack.c.h.b16 %v1810
    %v2677 = vunpack.c.l.b16 %v1811
    %v2678 = vunpack.c.h.b16 %v1811
    %v2679 = vunpack.c.l.b16 %v1812
    %v2680 = vunpack.c.h.b16 %v1812
    %v2681 = vunpack.c.l.b16 %v1813
    %v2682 = vunpack.c.h.b16 %v1813
    %v2683 = vunpack.c.l.b16 %v1814
    %v2684 = vunpack.c.h.b16 %v1814
    %v2685 = vunpack.c.l.b16 %v1815
    %v2686 = vunpack.c.h.b16 %v1815
    %v2687 = vunpack.c.l.b16 %v1816
    %v2688 = vunpack.c.h.b16 %v1816
    %v2689 = vunpack.c.l.b16 %v1817
    %v2690 = vunpack.c.h.b16 %v1817
    %v2691 = vunpack.c.l.b16 %v1818
    %v2692 = vunpack.c.h.b16 %v1818
    %v2693 = vunpack.c.l.b16 %v1819
    %v2694 = vunpack.c.h.b16 %v1819
    %v2695 = vunpack.c.l.b16 %v1820
    %v2696 = vunpack.c.h.b16 %v1820
    %v2697 = vunpack.c.l.b16 %v1821
    %v2698 = vunpack.c.h.b16 %v1821
    %v2699 = vunpack.c.l.b16 %v1822
    %v2700 = vunpack.c.h.b16 %v1822
    %v2701 = vunpack.c.l.b16 %v1823
    %v2702 = vunpack.c.h.b16 %v1823
    %v2703 = vunpack.c.l.b16 %v1824
    %v2704 = vunpack.c.h.b16 %v1824
    %v2705 = vunpack.c.l.b16 %v1825
    %v2706 = vunpack.c.h.b16 %v1825
    %v2707 = vunpack.c.l.b16 %v1826
    %v2708 = vunpack.c.h.b16 %v1826
    %v2709 = vunpack.c.l.b16 %v1827
    %v2710 = vunpack.c.h.b16 %v1827
    %v2711 = vunpack.c.l.b16 %v1828
    %v2712 = vunpack.c.h.b16 %v1828
    %v2713 = vunpack.c.l.b16 %v1829
    %v2714 = vunpack.c.h.b16 %v1829
    %v2715 = vunpack.c.l.b16 %v1830
    %v2716 = vunpack.c.h.b16 %v1830
    %v2717 = vunpack.c.l.b16 %v1831
    %v2718 = vunpack.c.h.b16 %v1831
    %v2719 = vunpack.c.l.b16 %v1832
    %v2720 = vunpack.c.h.b16 %v1832
    %v2721 = vunpack.c.l.b16 %v1833
    %v2722 = vunpack.c.h.b16 %v1833
    %v2723 = vunpack.c.l.b16 %v1834
    %v2724 = vunpack.c.h.b16 %v1834
    %v2725 = vunpack.c.l.b16 %v1835
    %v2726 = vunpack.c.h.b16 %v1835
    %v2727 = vunpack.c.l.b16 %v1836
    %v2728 = vunpack.c.h.b16 %v1836
    %v2729 = vunpack.c.l.b16 %v1837
    %v2730 = vunpack.c.h.b16 %v1837
    %v2731 = vunpack.c.l.b16 %v1838
    %v2732 = vunpack.c.h.b16 %v1838
    %v2733 = vunpack.c.l.b16 %v1839
    %v2734 = vunpack.c.h.b16 %v1839
    %v2735 = vunpack.c.l.b16 %v1840
    %v2736 = vunpack.c.h.b16 %v1840
    %v2737 = vpack.c.b16 %v2167, %v2161
    %v2738 = vpack.c.b16 %v2168, %v2162
    %v2739 = vpack.c.b16 %v2169, %v2163
    %v2740 = vpack.c.b16 %v2170, %v2164
    %v2741 = vpack.c.b16 %v2171, %v2165
    %v2742 = vpack.c.b16 %v2172, %v2166
    %v2743 = vpack.c.b16 %v2179, %v2173
    %v2744 = vpack.c.b16 %v2180, %v2174
    %v2745 = vpack.c.b16 %v2181, %v2175
    %v2746 = vpack.c.b16 %v2182, %v2176
    %v2747 = vpack.c.b16 %v2183, %v2177
    %v2748 = vpack.c.b16 %v2184, %v2178
    %v2749 = vpack.c.b16 %v2191, %v2185
    %v2750 = vpack.c.b16 %v2192, %v2186
    %v2751 = vpack.c.b16 %v2193, %v2187
    %v2752 = vpack.c.b16 %v2194, %v2188
    %v2753 = vpack.c.b16 %v2195, %v2189
    %v2754 = vpack.c.b16 %v2196, %v2190
    %v2755 = vpack.c.b16 %v2203, %v2197
    %v2756 = vpack.c.b16 %v2204, %v2198
    %v2757 = vpack.c.b16 %v2205, %v2199
    %v2758 = vpack.c.b16 %v2206, %v2200
    %v2759 = vpack.c.b16 %v2207, %v2201
    %v2760 = vpack.c.b16 %v2208, %v2202
    %v2761 = vpack.c.b16 %v2215, %v2209
    %v2762 = vpack.c.b16 %v2216, %v2210
    %v2763 = vpack.c.b16 %v2217, %v2211
    %v2764 = vpack.c.b16 %v2218, %v2212
    %v2765 = vpack.c.b16 %v2219, %v2213
    %v2766 = vpack.c.b16 %v2220, %v2214
    %v2767 = vpack.c.b16 %v2227, %v2221
    %v2768 = vpack.c.b16 %v2228, %v2222
    %v2769 = vpack.c.b16 %v2229, %v2223
    %v2770 = vpack.c.b16 %v2230, %v2224
    %v2771 = vpack.c.b16 %v2231, %v2225
    %v2772 = vpack.c.b16 %v2232, %v2226
    %v2773 = vpack.c.b16 %v2239, %v2233
    %v2774 = vpack.c.b16 %v2240, %v2234
    %v2775 = vpack.c.b16 %v2241, %v2235
    %v2776 = vpack.c.b16 %v2242, %v2236
    %v2777 = vpack.c.b16 %v2243, %v2237
    %v2778 = vpack.c.b16 %v2244, %v2238
    %v2779 = vpack.c.b16 %v2251, %v2245
    %v2780 = vpack.c.b16 %v2252, %v2246
    %v2781 = vpack.c.b16 %v2253, %v2247
    %v2782 = vpack.c.b16 %v2254, %v2248
    %v2783 = vpack.c.b16 %v2255, %v2249
    %v2784 = vpack.c.b16 %v2256, %v2250
    %v2785 = vpack.c.b16 %v2263, %v2257
    %v2786 = vpack.c.b16 %v2264, %v2258
    %v2787 = vpack.c.b16 %v2265, %v2259
    %v2788 = vpack.c.b16 %v2266, %v2260
    %v2789 = vpack.c.b16 %v2267, %v2261
    %v2790 = vpack.c.b16 %v2268, %v2262
    %v2791 = vpack.c.b16 %v2275, %v2269
    %v2792 = vpack.c.b16 %v2276, %v2270
    %v2793 = vpack.c.b16 %v2277, %v2271
    %v2794 = vpack.c.b16 %v2278, %v2272
    %v2795 = vpack.c.b16 %v2279, %v2273
    %v2796 = vpack.c.b16 %v2280, %v2274
    %v2797 = vpack.c.b16 %v2287, %v2281
    %v2798 = vpack.c.b16 %v2288, %v2282
    %v2799 = vpack.c.b16 %v2289, %v2283
    %v2800 = vpack.c.b16 %v2290, %v2284
    %v2801 = vpack.c.b16 %v2291, %v2285
    %v2802 = vpack.c.b16 %v2292, %v2286
    %v2803 = vpack.c.b16 %v2299, %v2293
    %v2804 = vpack.c.b16 %v2300, %v2294
    %v2805 = vpack.c.b16 %v2301, %v2295
    %v2806 = vpack.c.b16 %v2302, %v2296
    %v2807 = vpack.c.b16 %v2303, %v2297
    %v2808 = vpack.c.b16 %v2304, %v2298
    %v2809 = vpack.c.b16 %v2311, %v2305
    %v2810 = vpack.c.b16 %v2312, %v2306
    %v2811 = vpack.c.b16 %v2313, %v2307
    %v2812 = vpack.c.b16 %v2314, %v2308
    %v2813 = vpack.c.b16 %v2315, %v2309
    %v2814 = vpack.c.b16 %v2316, %v2310
    %v2815 = vpack.c.b16 %v2323, %v2317
    %v2816 = vpack.c.b16 %v2324, %v2318
    %v2817 = vpack.c.b16 %v2325, %v2319
    %v2818 = vpack.c.b16 %v2326, %v2320
    %v2819 = vpack.c.b16 %v2327, %v2321
    %v2820 = vpack.c.b16 %v2328, %v2322
    %v2821 = vpack.c.b16 %v2335, %v2329
    %v2822 = vpack.c.b16 %v2336, %v2330
    %v2823 = vpack.c.b16 %v2337, %v2331
    %v2824 = vpack.c.b16 %v2338, %v2332
    %v2825 = vpack.c.b16 %v2339, %v2333
    %v2826 = vpack.c.b16 %v2340, %v2334
    %v2827 = vpack.c.b16 %v2347, %v2341
    %v2828 = vpack.c.b16 %v2348, %v2342
    %v2829 = vpack.c.b16 %v2349, %v2343
    %v2830 = vpack.c.b16 %v2350, %v2344
    %v2831 = vpack.c.b16 %v2351, %v2345
    %v2832 = vpack.c.b16 %v2352, %v2346
    %v2833 = vpack.c.b16 %v2359, %v2353
    %v2834 = vpack.c.b16 %v2360, %v2354
    %v2835 = vpack.c.b16 %v2361, %v2355
    %v2836 = vpack.c.b16 %v2362, %v2356
    %v2837 = vpack.c.b16 %v2363, %v2357
    %v2838 = vpack.c.b16 %v2364, %v2358
    %v2839 = vpack.c.b16 %v2371, %v2365
    %v2840 = vpack.c.b16 %v2372, %v2366
    %v2841 = vpack.c.b16 %v2373, %v2367
    %v2842 = vpack.c.b16 %v2374, %v2368
    %v2843 = vpack.c.b16 %v2375, %v2369
    %v2844 = vpack.c.b16 %v2376, %v2370
    %v2845 = vpack.c.b16 %v2383, %v2377
    %v2846 = vpack.c.b16 %v2384, %v2378
    %v2847 = vpack.c.b16 %v2385, %v2379
    %v2848 = vpack.c.b16 %v2386, %v2380
    %v2849 = vpack.c.b16 %v2387, %v2381
    %v2850 = vpack.c.b16 %v2388, %v2382
    %v2851 = vpack.c.b16 %v2395, %v2389
    %v2852 = vpack.c.b16 %v2396, %v2390
    %v2853 = vpack.c.b16 %v2397, %v2391
    %v2854 = vpack.c.b16 %v2398, %v2392
    %v2855 = vpack.c.b16 %v2399, %v2393
    %v2856 = vpack.c.b16 %v2400, %v2394
    %v2857 = vpack.c.b16 %v2407, %v2401
    %v2858 = vpack.c.b16 %v2408, %v2402
    %v2859 = vpack.c.b16 %v2409, %v2403
    %v2860 = vpack.c.b16 %v2410, %v2404
    %v2861 = vpack.c.b16 %v2411, %v2405
    %v2862 = vpack.c.b16 %v2412, %v2406
    %v2863 = vpack.c.b16 %v2419, %v2413
    %v2864 = vpack.c.b16 %v2420, %v2414
    %v2865 = vpack.c.b16 %v2421, %v2415
    %v2866 = vpack.c.b16 %v2422, %v2416
    %v2867 = vpack.c.b16 %v2423, %v2417
    %v2868 = vpack.c.b16 %v2424, %v2418
    %v2869 = vpack.c.b16 %v2431, %v2425
    %v2870 = vpack.c.b16 %v2432, %v2426
    %v2871 = vpack.c.b16 %v2433, %v2427
    %v2872 = vpack.c.b16 %v2434, %v2428
    %v2873 = vpack.c.b16 %v2435, %v2429
    %v2874 = vpack.c.b16 %v2436, %v2430
    %v2875 = vpack.c.b16 %v2443, %v2437
    %v2876 = vpack.c.b16 %v2444, %v2438
    %v2877 = vpack.c.b16 %v2445, %v2439
    %v2878 = vpack.c.b16 %v2446, %v2440
    %v2879 = vpack.c.b16 %v2447, %v2441
    %v2880 = vpack.c.b16 %v2448, %v2442
    %v2881 = vpack.c.b16 %v2455, %v2449
    %v2882 = vpack.c.b16 %v2456, %v2450
    %v2883 = vpack.c.b16 %v2457, %v2451
    %v2884 = vpack.c.b16 %v2458, %v2452
    %v2885 = vpack.c.b16 %v2459, %v2453
    %v2886 = vpack.c.b16 %v2460, %v2454
    %v2887 = vpack.c.b16 %v2467, %v2461
    %v2888 = vpack.c.b16 %v2468, %v2462
    %v2889 = vpack.c.b16 %v2469, %v2463
    %v2890 = vpack.c.b16 %v2470, %v2464
    %v2891 = vpack.c.b16 %v2471, %v2465
    %v2892 = vpack.c.b16 %v2472, %v2466
    %v2893 = vpack.c.b16 %v2479, %v2473
    %v2894 = vpack.c.b16 %v2480, %v2474
    %v2895 = vpack.c.b16 %v2481, %v2475
    %v2896 = vpack.c.b16 %v2482, %v2476
    %v2897 = vpack.c.b16 %v2483, %v2477
    %v2898 = vpack.c.b16 %v2484, %v2478
    %v2899 = vpack.c.b16 %v2491, %v2485
    %v2900 = vpack.c.b16 %v2492, %v2486
    %v2901 = vpack.c.b16 %v2493, %v2487
    %v2902 = vpack.c.b16 %v2494, %v2488
    %v2903 = vpack.c.b16 %v2495, %v2489
    %v2904 = vpack.c.b16 %v2496, %v2490
    %v2905 = vpack.c.b16 %v2503, %v2497
    %v2906 = vpack.c.b16 %v2504, %v2498
    %v2907 = vpack.c.b16 %v2505, %v2499
    %v2908 = vpack.c.b16 %v2506, %v2500
    %v2909 = vpack.c.b16 %v2507, %v2501
    %v2910 = vpack.c.b16 %v2508, %v2502
    %v2911 = vpack.c.b16 %v2515, %v2509
    %v2912 = vpack.c.b16 %v2516, %v2510
    %v2913 = vpack.c.b16 %v2517, %v2511
    %v2914 = vpack.c.b16 %v2518, %v2512
    %v2915 = vpack.c.b16 %v2519, %v2513
    %v2916 = vpack.c.b16 %v2520, %v2514
    %v2917 = vpack.c.b16 %v2527, %v2521
    %v2918 = vpack.c.b16 %v2528, %v2522
    %v2919 = vpack.c.b16 %v2529, %v2523
    %v2920 = vpack.c.b16 %v2530, %v2524
    %v2921 = vpack.c.b16 %v2531, %v2525
    %v2922 = vpack.c.b16 %v2532, %v2526
    %v2923 = vpack.c.b16 %v2539, %v2533
    %v2924 = vpack.c.b16 %v2540, %v2534
    %v2925 = vpack.c.b16 %v2541, %v2535
    %v2926 = vpack.c.b16 %v2542, %v2536
    %v2927 = vpack.c.b16 %v2543, %v2537
    %v2928 = vpack.c.b16 %v2544, %v2538
    %v2929 = vpack.c.b16 %v2551, %v2545
    %v2930 = vpack.c.b16 %v2552, %v2546
    %v2931 = vpack.c.b16 %v2553, %v2547
    %v2932 = vpack.c.b16 %v2554, %v2548
    %v2933 = vpack.c.b16 %v2555, %v2549
    %v2934 = vpack.c.b16 %v2556, %v2550
    %v2935 = vpack.c.b16 %v2563, %v2557
    %v2936 = vpack.c.b16 %v2564, %v2558
    %v2937 = vpack.c.b16 %v2565, %v2559
    %v2938 = vpack.c.b16 %v2566, %v2560
    %v2939 = vpack.c.b16 %v2567, %v2561
    %v2940 = vpack.c.b16 %v2568, %v2562
    %v2941 = vpack.c.b16 %v2575, %v2569
    %v2942 = vpack.c.b16 %v2576, %v2570
    %v2943 = vpack.c.b16 %v2577, %v2571
    %v2944 = vpack.c.b16 %v2578, %v2572
    %v2945 = vpack.c.b16 %v2579, %v2573
    %v2946 = vpack.c.b16 %v2580, %v2574
    %v2947 = vpack.c.b16 %v2587, %v2581
    %v2948 = vpack.c.b16 %v2588, %v2582
    %v2949 = vpack.c.b16 %v2589, %v2583
    %v2950 = vpack.c.b16 %v2590, %v2584
    %v2951 = vpack.c.b16 %v2591, %v2585
    %v2952 = vpack.c.b16 %v2592, %v2586
    %v2953 = vpack.c.b16 %v2599, %v2593
    %v2954 = vpack.c.b16 %v2600, %v2594
    %v2955 = vpack.c.b16 %v2601, %v2595
    %v2956 = vpack.c.b16 %v2602, %v2596
    %v2957 = vpack.c.b16 %v2603, %v2597
    %v2958 = vpack.c.b16 %v2604, %v2598
    %v2959 = vpack.c.b16 %v2611, %v2605
    %v2960 = vpack.c.b16 %v2612, %v2606
    %v2961 = vpack.c.b16 %v2613, %v2607
    %v2962 = vpack.c.b16 %v2614, %v2608
    %v2963 = vpack.c.b16 %v2615, %v2609
    %v2964 = vpack.c.b16 %v2616, %v2610
    %v2965 = vpack.c.b16 %v2623, %v2617
    %v2966 = vpack.c.b16 %v2624, %v2618
    %v2967 = vpack.c.b16 %v2625, %v2619
    %v2968 = vpack.c.b16 %v2626, %v2620
    %v2969 = vpack.c.b16 %v2627, %v2621
    %v2970 = vpack.c.b16 %v2628, %v2622
    %v2971 = vpack.c.b16 %v2635, %v2629
    %v2972 = vpack.c.b16 %v2636, %v2630
    %v2973 = vpack.c.b16 %v2637, %v2631
    %v2974 = vpack.c.b16 %v2638, %v2632
    %v2975 = vpack.c.b16 %v2639, %v2633
    %v2976 = vpack.c.b16 %v2640, %v2634
    %v2977 = vpack.c.b16 %v2647, %v2641
    %v2978 = vpack.c.b16 %v2648, %v2642
    %v2979 = vpack.c.b16 %v2649, %v2643
    %v2980 = vpack.c.b16 %v2650, %v2644
    %v2981 = vpack.c.b16 %v2651, %v2645
    %v2982 = vpack.c.b16 %v2652, %v2646
    %v2983 = vpack.c.b16 %v2659, %v2653
    %v2984 = vpack.c.b16 %v2660, %v2654
    %v2985 = vpack.c.b16 %v2661, %v2655
    %v2986 = vpack.c.b16 %v2662, %v2656
    %v2987 = vpack.c.b16 %v2663, %v2657
    %v2988 = vpack.c.b16 %v2664, %v2658
    %v2989 = vpack.c.b16 %v2671, %v2665
    %v2990 = vpack.c.b16 %v2672, %v2666
    %v2991 = vpack.c.b16 %v2673, %v2667
    %v2992 = vpack.c.b16 %v2674, %v2668
    %v2993 = vpack.c.b16 %v2675, %v2669
    %v2994 = vpack.c.b16 %v2676, %v2670
    %v2995 = vpack.c.b16 %v2683, %v2677
    %v2996 = vpack.c.b16 %v2684, %v2678
    %v2997 = vpack.c.b16 %v2685, %v2679
    %v2998 = vpack.c.b16 %v2686, %v2680
    %v2999 = vpack.c.b16 %v2687, %v2681
    %v3000 = vpack.c.b16 %v2688, %v2682
    %v3001 = vpack.c.b16 %v2695, %v2689
    %v3002 = vpack.c.b16 %v2696, %v2690
    %v3003 = vpack.c.b16 %v2697, %v2691
    %v3004 = vpack.c.b16 %v2698, %v2692
    %v3005 = vpack.c.b16 %v2699, %v2693
    %v3006 = vpack.c.b16 %v2700, %v2694
    %v3007 = vpack.c.b16 %v2707, %v2701
    %v3008 = vpack.c.b16 %v2708, %v2702
    %v3009 = vpack.c.b16 %v2709, %v2703
    %v3010 = vpack.c.b16 %v2710, %v2704
    %v3011 = vpack.c.b16 %v2711, %v2705
    %v3012 = vpack.c.b16 %v2712, %v2706
    %v3013 = vpack.c.b16 %v2719, %v2713
    %v3014 = vpack.c.b16 %v2720, %v2714
    %v3015 = vpack.c.b16 %v2721, %v2715
    %v3016 = vpack.c.b16 %v2722, %v2716
    %v3017 = vpack.c.b16 %v2723, %v2717
    %v3018 = vpack.c.b16 %v2724, %v2718
    %v3019 = vpack.c.b16 %v2731, %v2725
    %v3020 = vpack.c.b16 %v2732, %v2726
    %v3021 = vpack.c.b16 %v2733, %v2727
    %v3022 = vpack.c.b16 %v2734, %v2728
    %v3023 = vpack.c.b16 %v2735, %v2729
    %v3024 = vpack.c.b16 %v2736, %v2730
    %3313 = vmatprep.subr.bf16.mxu0 %v2780
    %3314 = vmatpush1.bf16.msra.mxu0 %v2779
    %3315 = vmatprep.subr.bf16.mxu0 %v2774
    %3316 = vmatpush1.bf16.msra.mxu0 %v2773
    %3317 = vmatprep.subr.bf16.mxu0 %v2768
    %3318 = vmatpush1.bf16.msra.mxu0 %v2767
    %3319 = vmatprep.subr.bf16.mxu0 %v2762
    %3320 = vmatpush1.bf16.msra.mxu0 %v2761
    %3321 = vmatprep.subr.bf16.mxu0 %v2756
    %3322 = vmatpush1.bf16.msra.mxu0 %v2755
    %3323 = vmatprep.subr.bf16.mxu0 %v2750
    %3324 = vmatpush1.bf16.msra.mxu0 %v2749
    %3325 = vmatprep.subr.bf16.mxu0 %v2744
    %3326 = vmatpush1.bf16.msra.mxu0 %v2743
    %3327 = vmatprep.subr.bf16.mxu0 %v2738
    %3328 = vmatpush1.bf16.msra.mxu0 %v2737
    %3329 = vmatprep.subr.bf16.mxu0 %v2828
    %3330 = vmatpush2.bf16.msra.mxu0 %v2827
    %3331 = vmatprep.subr.bf16.mxu0 %v2822
    %3332 = vmatpush2.bf16.msra.mxu0 %v2821
    %3333 = vmatprep.subr.bf16.mxu0 %v2816
    %3334 = vmatpush2.bf16.msra.mxu0 %v2815
    %3335 = vmatprep.subr.bf16.mxu0 %v2810
    %3336 = vmatpush2.bf16.msra.mxu0 %v2809
    %3337 = vmatprep.subr.bf16.mxu0 %v2804
    %3338 = vmatpush2.bf16.msra.mxu0 %v2803
    %3339 = vmatprep.subr.bf16.mxu0 %v2798
    %3340 = vmatpush2.bf16.msra.mxu0 %v2797
    %3341 = vmatprep.subr.bf16.mxu0 %v2792
    %3342 = vmatpush2.bf16.msra.mxu0 %v2791
    %3343 = vmatprep.subr.bf16.mxu0 %v2786
    %3344 = vmatpush2.bf16.msra.mxu0 %v2785
    %3345 = vmatprep.mubr.bf16.mxu0 %v1548
    %3346 = vmatmul.mubr.bf16.gmra.mxu0 %v1547
    %v3347 = vpop.f32.mrf.mxu0
    %v3348 = vadd.f32 %v1846, %v3347
    %v3349 = vpop.f32.mrf.mxu0
    %v3350 = vadd.f32 %v1850, %v3349
    %v3351 = vpop.f32.mrf.mxu0
    %v3352 = vpop.f32.mrf.mxu0
    %3353 = vdwg.mxu0
    %3354 = vmatprep.subr.bf16.mxu0 %v2876
    %3355 = vmatpush1.bf16.msra.mxu0 %v2875
    %3356 = vmatprep.subr.bf16.mxu0 %v2870
    %3357 = vmatpush1.bf16.msra.mxu0 %v2869
    %3358 = vmatprep.subr.bf16.mxu0 %v2864
    %3359 = vmatpush1.bf16.msra.mxu0 %v2863
    %3360 = vmatprep.subr.bf16.mxu0 %v2858
    %3361 = vmatpush1.bf16.msra.mxu0 %v2857
    %3362 = vmatprep.subr.bf16.mxu0 %v2852
    %3363 = vmatpush1.bf16.msra.mxu0 %v2851
    %3364 = vmatprep.subr.bf16.mxu0 %v2846
    %3365 = vmatpush1.bf16.msra.mxu0 %v2845
    %3366 = vmatprep.subr.bf16.mxu0 %v2840
    %3367 = vmatpush1.bf16.msra.mxu0 %v2839
    %3368 = vmatprep.subr.bf16.mxu0 %v2834
    %3369 = vmatpush1.bf16.msra.mxu0 %v2833
    %3370 = vmatprep.subr.bf16.mxu0 %v2924
    %3371 = vmatpush2.bf16.msra.mxu0 %v2923
    %3372 = vmatprep.subr.bf16.mxu0 %v2918
    %3373 = vmatpush2.bf16.msra.mxu0 %v2917
    %3374 = vmatprep.subr.bf16.mxu0 %v2912
    %3375 = vmatpush2.bf16.msra.mxu0 %v2911
    %3376 = vmatprep.subr.bf16.mxu0 %v2906
    %3377 = vmatpush2.bf16.msra.mxu0 %v2905
    %3378 = vmatprep.subr.bf16.mxu0 %v2900
    %3379 = vmatpush2.bf16.msra.mxu0 %v2899
    %3380 = vmatprep.subr.bf16.mxu0 %v2894
    %3381 = vmatpush2.bf16.msra.mxu0 %v2893
    %3382 = vmatprep.subr.bf16.mxu0 %v2888
    %3383 = vmatpush2.bf16.msra.mxu0 %v2887
    %3384 = vmatprep.subr.bf16.mxu0 %v2882
    %3385 = vmatpush2.bf16.msra.mxu0 %v2881
    %3386 = vmatprep.mubr.bf16.mxu0 %v1550
    %3387 = vmatmul.mubr.bf16.gmra.mxu0 %v1549
    %v3388 = vpop.f32.mrf.mxu0
    %v3389 = vadd.f32 %v3348, %v3388
    %v3390 = vpop.f32.mrf.mxu0
    %v3391 = vadd.f32 %v3350, %v3390
    %v3392 = vpop.f32.mrf.mxu0
    %v3393 = vpop.f32.mrf.mxu0
    %3394 = vdwg.mxu0
    %3395 = vmatprep.subr.bf16.mxu0 %v2972
    %3396 = vmatpush1.bf16.msra.mxu0 %v2971
    %3397 = vmatprep.subr.bf16.mxu0 %v2966
    %3398 = vmatpush1.bf16.msra.mxu0 %v2965
    %3399 = vmatprep.subr.bf16.mxu0 %v2960
    %3400 = vmatpush1.bf16.msra.mxu0 %v2959
    %3401 = vmatprep.subr.bf16.mxu0 %v2954
    %3402 = vmatpush1.bf16.msra.mxu0 %v2953
    %3403 = vmatprep.subr.bf16.mxu0 %v2948
    %3404 = vmatpush1.bf16.msra.mxu0 %v2947
    %3405 = vmatprep.subr.bf16.mxu0 %v2942
    %3406 = vmatpush1.bf16.msra.mxu0 %v2941
    %3407 = vmatprep.subr.bf16.mxu0 %v2936
    %3408 = vmatpush1.bf16.msra.mxu0 %v2935
    %3409 = vmatprep.subr.bf16.mxu0 %v2930
    %3410 = vmatpush1.bf16.msra.mxu0 %v2929
    %3411 = vmatprep.subr.bf16.mxu0 %v3020
    %3412 = vmatpush2.bf16.msra.mxu0 %v3019
    %3413 = vmatprep.subr.bf16.mxu0 %v3014
    %3414 = vmatpush2.bf16.msra.mxu0 %v3013
    %3415 = vmatprep.subr.bf16.mxu0 %v3008
    %3416 = vmatpush2.bf16.msra.mxu0 %v3007
    %3417 = vmatprep.subr.bf16.mxu0 %v3002
    %3418 = vmatpush2.bf16.msra.mxu0 %v3001
    %3419 = vmatprep.subr.bf16.mxu0 %v2996
    %3420 = vmatpush2.bf16.msra.mxu0 %v2995
    %3421 = vmatprep.subr.bf16.mxu0 %v2990
    %3422 = vmatpush2.bf16.msra.mxu0 %v2989
    %3423 = vmatprep.subr.bf16.mxu0 %v2984
    %3424 = vmatpush2.bf16.msra.mxu0 %v2983
    %3425 = vmatprep.subr.bf16.mxu0 %v2978
    %3426 = vmatpush2.bf16.msra.mxu0 %v2977
    %3427 = vmatprep.mubr.bf16.mxu0 %v1552
    %3428 = vmatmul.mubr.bf16.gmra.mxu0 %v1551
    %v3429 = vpop.f32.mrf.mxu0
    %v3430 = vadd.f32 %v3389, %v3429
    %v3431 = vpop.f32.mrf.mxu0
    %v3432 = vadd.f32 %v3391, %v3431
    %v3433 = vpop.f32.mrf.mxu0
    %v3434 = vpop.f32.mrf.mxu0
    %3435 = vdwg.mxu0
    %3436 = vmatprep.subr.bf16.mxu0 %v2782
    %3437 = vmatpush1.bf16.msra.mxu0 %v2781
    %3438 = vmatprep.subr.bf16.mxu0 %v2776
    %3439 = vmatpush1.bf16.msra.mxu0 %v2775
    %3440 = vmatprep.subr.bf16.mxu0 %v2770
    %3441 = vmatpush1.bf16.msra.mxu0 %v2769
    %3442 = vmatprep.subr.bf16.mxu0 %v2764
    %3443 = vmatpush1.bf16.msra.mxu0 %v2763
    %3444 = vmatprep.subr.bf16.mxu0 %v2758
    %3445 = vmatpush1.bf16.msra.mxu0 %v2757
    %3446 = vmatprep.subr.bf16.mxu0 %v2752
    %3447 = vmatpush1.bf16.msra.mxu0 %v2751
    %3448 = vmatprep.subr.bf16.mxu0 %v2746
    %3449 = vmatpush1.bf16.msra.mxu0 %v2745
    %3450 = vmatprep.subr.bf16.mxu0 %v2740
    %3451 = vmatpush1.bf16.msra.mxu0 %v2739
    %3452 = vmatprep.subr.bf16.mxu0 %v2830
    %3453 = vmatpush2.bf16.msra.mxu0 %v2829
    %3454 = vmatprep.subr.bf16.mxu0 %v2824
    %3455 = vmatpush2.bf16.msra.mxu0 %v2823
    %3456 = vmatprep.subr.bf16.mxu0 %v2818
    %3457 = vmatpush2.bf16.msra.mxu0 %v2817
    %3458 = vmatprep.subr.bf16.mxu0 %v2812
    %3459 = vmatpush2.bf16.msra.mxu0 %v2811
    %3460 = vmatprep.subr.bf16.mxu0 %v2806
    %3461 = vmatpush2.bf16.msra.mxu0 %v2805
    %3462 = vmatprep.subr.bf16.mxu0 %v2800
    %3463 = vmatpush2.bf16.msra.mxu0 %v2799
    %3464 = vmatprep.subr.bf16.mxu0 %v2794
    %3465 = vmatpush2.bf16.msra.mxu0 %v2793
    %3466 = vmatprep.subr.bf16.mxu0 %v2788
    %3467 = vmatpush2.bf16.msra.mxu0 %v2787
    %3468 = vmatprep.mubr.bf16.mxu0 %v1548
    %3469 = vmatmul.mubr.bf16.gmra.mxu0 %v1547
    %v3470 = vpop.f32.mrf.mxu0
    %v3471 = vadd.f32 %v1854, %v3470
    %v3472 = vpop.f32.mrf.mxu0
    %v3473 = vadd.f32 %v1858, %v3472
    %v3474 = vpop.f32.mrf.mxu0
    %v3475 = vpop.f32.mrf.mxu0
    %3476 = vdwg.mxu0
    %3477 = vmatprep.subr.bf16.mxu0 %v2878
    %3478 = vmatpush1.bf16.msra.mxu0 %v2877
    %3479 = vmatprep.subr.bf16.mxu0 %v2872
    %3480 = vmatpush1.bf16.msra.mxu0 %v2871
    %3481 = vmatprep.subr.bf16.mxu0 %v2866
    %3482 = vmatpush1.bf16.msra.mxu0 %v2865
    %3483 = vmatprep.subr.bf16.mxu0 %v2860
    %3484 = vmatpush1.bf16.msra.mxu0 %v2859
    %3485 = vmatprep.subr.bf16.mxu0 %v2854
    %3486 = vmatpush1.bf16.msra.mxu0 %v2853
    %3487 = vmatprep.subr.bf16.mxu0 %v2848
    %3488 = vmatpush1.bf16.msra.mxu0 %v2847
    %3489 = vmatprep.subr.bf16.mxu0 %v2842
    %3490 = vmatpush1.bf16.msra.mxu0 %v2841
    %3491 = vmatprep.subr.bf16.mxu0 %v2836
    %3492 = vmatpush1.bf16.msra.mxu0 %v2835
    %3493 = vmatprep.subr.bf16.mxu0 %v2926
    %3494 = vmatpush2.bf16.msra.mxu0 %v2925
    %3495 = vmatprep.subr.bf16.mxu0 %v2920
    %3496 = vmatpush2.bf16.msra.mxu0 %v2919
    %3497 = vmatprep.subr.bf16.mxu0 %v2914
    %3498 = vmatpush2.bf16.msra.mxu0 %v2913
    %3499 = vmatprep.subr.bf16.mxu0 %v2908
    %3500 = vmatpush2.bf16.msra.mxu0 %v2907
    %3501 = vmatprep.subr.bf16.mxu0 %v2902
    %3502 = vmatpush2.bf16.msra.mxu0 %v2901
    %3503 = vmatprep.subr.bf16.mxu0 %v2896
    %3504 = vmatpush2.bf16.msra.mxu0 %v2895
    %3505 = vmatprep.subr.bf16.mxu0 %v2890
    %3506 = vmatpush2.bf16.msra.mxu0 %v2889
    %3507 = vmatprep.subr.bf16.mxu0 %v2884
    %3508 = vmatpush2.bf16.msra.mxu0 %v2883
    %3509 = vmatprep.mubr.bf16.mxu0 %v1550
    %3510 = vmatmul.mubr.bf16.gmra.mxu0 %v1549
    %v3511 = vpop.f32.mrf.mxu0
    %v3512 = vadd.f32 %v3471, %v3511
    %v3513 = vpop.f32.mrf.mxu0
    %v3514 = vadd.f32 %v3473, %v3513
    %v3515 = vpop.f32.mrf.mxu0
    %v3516 = vpop.f32.mrf.mxu0
    %3517 = vdwg.mxu0
    %3518 = vmatprep.subr.bf16.mxu0 %v2974
    %3519 = vmatpush1.bf16.msra.mxu0 %v2973
    %3520 = vmatprep.subr.bf16.mxu0 %v2968
    %3521 = vmatpush1.bf16.msra.mxu0 %v2967
    %3522 = vmatprep.subr.bf16.mxu0 %v2962
    %3523 = vmatpush1.bf16.msra.mxu0 %v2961
    %3524 = vmatprep.subr.bf16.mxu0 %v2956
    %3525 = vmatpush1.bf16.msra.mxu0 %v2955
    %3526 = vmatprep.subr.bf16.mxu0 %v2950
    %3527 = vmatpush1.bf16.msra.mxu0 %v2949
    %3528 = vmatprep.subr.bf16.mxu0 %v2944
    %3529 = vmatpush1.bf16.msra.mxu0 %v2943
    %3530 = vmatprep.subr.bf16.mxu0 %v2938
    %3531 = vmatpush1.bf16.msra.mxu0 %v2937
    %3532 = vmatprep.subr.bf16.mxu0 %v2932
    %3533 = vmatpush1.bf16.msra.mxu0 %v2931
    %3534 = vmatprep.subr.bf16.mxu0 %v3022
    %3535 = vmatpush2.bf16.msra.mxu0 %v3021
    %3536 = vmatprep.subr.bf16.mxu0 %v3016
    %3537 = vmatpush2.bf16.msra.mxu0 %v3015
    %3538 = vmatprep.subr.bf16.mxu0 %v3010
    %3539 = vmatpush2.bf16.msra.mxu0 %v3009
    %3540 = vmatprep.subr.bf16.mxu0 %v3004
    %3541 = vmatpush2.bf16.msra.mxu0 %v3003
    %3542 = vmatprep.subr.bf16.mxu0 %v2998
    %3543 = vmatpush2.bf16.msra.mxu0 %v2997
    %3544 = vmatprep.subr.bf16.mxu0 %v2992
    %3545 = vmatpush2.bf16.msra.mxu0 %v2991
    %3546 = vmatprep.subr.bf16.mxu0 %v2986
    %3547 = vmatpush2.bf16.msra.mxu0 %v2985
    %3548 = vmatprep.subr.bf16.mxu0 %v2980
    %3549 = vmatpush2.bf16.msra.mxu0 %v2979
    %3550 = vmatprep.mubr.bf16.mxu0 %v1552
    %3551 = vmatmul.mubr.bf16.gmra.mxu0 %v1551
    %v3552 = vpop.f32.mrf.mxu0
    %v3553 = vadd.f32 %v3512, %v3552
    %v3554 = vpop.f32.mrf.mxu0
    %v3555 = vadd.f32 %v3514, %v3554
    %v3556 = vpop.f32.mrf.mxu0
    %v3557 = vpop.f32.mrf.mxu0
    %3558 = vdwg.mxu0
    %3559 = vmatprep.subr.bf16.mxu0 %v2784
    %3560 = vmatpush1.bf16.msra.mxu0 %v2783
    %3561 = vmatprep.subr.bf16.mxu0 %v2778
    %3562 = vmatpush1.bf16.msra.mxu0 %v2777
    %3563 = vmatprep.subr.bf16.mxu0 %v2772
    %3564 = vmatpush1.bf16.msra.mxu0 %v2771
    %3565 = vmatprep.subr.bf16.mxu0 %v2766
    %3566 = vmatpush1.bf16.msra.mxu0 %v2765
    %3567 = vmatprep.subr.bf16.mxu0 %v2760
    %3568 = vmatpush1.bf16.msra.mxu0 %v2759
    %3569 = vmatprep.subr.bf16.mxu0 %v2754
    %3570 = vmatpush1.bf16.msra.mxu0 %v2753
    %3571 = vmatprep.subr.bf16.mxu0 %v2748
    %3572 = vmatpush1.bf16.msra.mxu0 %v2747
    %3573 = vmatprep.subr.bf16.mxu0 %v2742
    %3574 = vmatpush1.bf16.msra.mxu0 %v2741
    %3575 = vmatprep.subr.bf16.mxu0 %v2832
    %3576 = vmatpush2.bf16.msra.mxu0 %v2831
    %3577 = vmatprep.subr.bf16.mxu0 %v2826
    %3578 = vmatpush2.bf16.msra.mxu0 %v2825
    %3579 = vmatprep.subr.bf16.mxu0 %v2820
    %3580 = vmatpush2.bf16.msra.mxu0 %v2819
    %3581 = vmatprep.subr.bf16.mxu0 %v2814
    %3582 = vmatpush2.bf16.msra.mxu0 %v2813
    %3583 = vmatprep.subr.bf16.mxu0 %v2808
    %3584 = vmatpush2.bf16.msra.mxu0 %v2807
    %3585 = vmatprep.subr.bf16.mxu0 %v2802
    %3586 = vmatpush2.bf16.msra.mxu0 %v2801
    %3587 = vmatprep.subr.bf16.mxu0 %v2796
    %3588 = vmatpush2.bf16.msra.mxu0 %v2795
    %3589 = vmatprep.subr.bf16.mxu0 %v2790
    %3590 = vmatpush2.bf16.msra.mxu0 %v2789
    %3591 = vmatprep.mubr.bf16.mxu0 %v1548
    %3592 = vmatmul.mubr.bf16.gmra.mxu0 %v1547
    %v3593 = vpop.f32.mrf.mxu0
    %v3594 = vadd.f32 %v1862, %v3593
    %v3595 = vpop.f32.mrf.mxu0
    %v3596 = vadd.f32 %v1866, %v3595
    %v3597 = vpop.f32.mrf.mxu0
    %v3598 = vpop.f32.mrf.mxu0
    %3599 = vdwg.mxu0
    %3600 = vmatprep.subr.bf16.mxu0 %v2880
    %3601 = vmatpush1.bf16.msra.mxu0 %v2879
    %3602 = vmatprep.subr.bf16.mxu0 %v2874
    %3603 = vmatpush1.bf16.msra.mxu0 %v2873
    %3604 = vmatprep.subr.bf16.mxu0 %v2868
    %3605 = vmatpush1.bf16.msra.mxu0 %v2867
    %3606 = vmatprep.subr.bf16.mxu0 %v2862
    %3607 = vmatpush1.bf16.msra.mxu0 %v2861
    %3608 = vmatprep.subr.bf16.mxu0 %v2856
    %3609 = vmatpush1.bf16.msra.mxu0 %v2855
    %3610 = vmatprep.subr.bf16.mxu0 %v2850
    %3611 = vmatpush1.bf16.msra.mxu0 %v2849
    %3612 = vmatprep.subr.bf16.mxu0 %v2844
    %3613 = vmatpush1.bf16.msra.mxu0 %v2843
    %3614 = vmatprep.subr.bf16.mxu0 %v2838
    %3615 = vmatpush1.bf16.msra.mxu0 %v2837
    %3616 = vmatprep.subr.bf16.mxu0 %v2928
    %3617 = vmatpush2.bf16.msra.mxu0 %v2927
    %3618 = vmatprep.subr.bf16.mxu0 %v2922
    %3619 = vmatpush2.bf16.msra.mxu0 %v2921
    %3620 = vmatprep.subr.bf16.mxu0 %v2916
    %3621 = vmatpush2.bf16.msra.mxu0 %v2915
    %3622 = vmatprep.subr.bf16.mxu0 %v2910
    %3623 = vmatpush2.bf16.msra.mxu0 %v2909
    %3624 = vmatprep.subr.bf16.mxu0 %v2904
    %3625 = vmatpush2.bf16.msra.mxu0 %v2903
    %3626 = vmatprep.subr.bf16.mxu0 %v2898
    %3627 = vmatpush2.bf16.msra.mxu0 %v2897
    %3628 = vmatprep.subr.bf16.mxu0 %v2892
    %3629 = vmatpush2.bf16.msra.mxu0 %v2891
    %3630 = vmatprep.subr.bf16.mxu0 %v2886
    %3631 = vmatpush2.bf16.msra.mxu0 %v2885
    %3632 = vmatprep.mubr.bf16.mxu0 %v1550
    %3633 = vmatmul.mubr.bf16.gmra.mxu0 %v1549
    %v3634 = vpop.f32.mrf.mxu0
    %v3635 = vadd.f32 %v3594, %v3634
    %v3636 = vpop.f32.mrf.mxu0
    %v3637 = vadd.f32 %v3596, %v3636
    %v3638 = vpop.f32.mrf.mxu0
    %v3639 = vpop.f32.mrf.mxu0
    %3640 = vdwg.mxu0
    %3641 = vmatprep.subr.bf16.mxu0 %v2976
    %3642 = vmatpush1.bf16.msra.mxu0 %v2975
    %3643 = vmatprep.subr.bf16.mxu0 %v2970
    %3644 = vmatpush1.bf16.msra.mxu0 %v2969
    %3645 = vmatprep.subr.bf16.mxu0 %v2964
    %3646 = vmatpush1.bf16.msra.mxu0 %v2963
    %3647 = vmatprep.subr.bf16.mxu0 %v2958
    %3648 = vmatpush1.bf16.msra.mxu0 %v2957
    %3649 = vmatprep.subr.bf16.mxu0 %v2952
    %3650 = vmatpush1.bf16.msra.mxu0 %v2951
    %3651 = vmatprep.subr.bf16.mxu0 %v2946
    %3652 = vmatpush1.bf16.msra.mxu0 %v2945
    %3653 = vmatprep.subr.bf16.mxu0 %v2940
    %3654 = vmatpush1.bf16.msra.mxu0 %v2939
    %3655 = vmatprep.subr.bf16.mxu0 %v2934
    %3656 = vmatpush1.bf16.msra.mxu0 %v2933
    %3657 = vmatprep.subr.bf16.mxu0 %v3024
    %3658 = vmatpush2.bf16.msra.mxu0 %v3023
    %3659 = vmatprep.subr.bf16.mxu0 %v3018
    %3660 = vmatpush2.bf16.msra.mxu0 %v3017
    %3661 = vmatprep.subr.bf16.mxu0 %v3012
    %3662 = vmatpush2.bf16.msra.mxu0 %v3011
    %3663 = vmatprep.subr.bf16.mxu0 %v3006
    %3664 = vmatpush2.bf16.msra.mxu0 %v3005
    %3665 = vmatprep.subr.bf16.mxu0 %v3000
    %3666 = vmatpush2.bf16.msra.mxu0 %v2999
    %3667 = vmatprep.subr.bf16.mxu0 %v2994
    %3668 = vmatpush2.bf16.msra.mxu0 %v2993
    %3669 = vmatprep.subr.bf16.mxu0 %v2988
    %3670 = vmatpush2.bf16.msra.mxu0 %v2987
    %3671 = vmatprep.subr.bf16.mxu0 %v2982
    %3672 = vmatpush2.bf16.msra.mxu0 %v2981
    %3673 = vmatprep.mubr.bf16.mxu0 %v1552
    %3674 = vmatmul.mubr.bf16.gmra.mxu0 %v1551
    %v3675 = vpop.f32.mrf.mxu0
    %v3676 = vadd.f32 %v3635, %v3675
    %v3677 = vpop.f32.mrf.mxu0
    %v3678 = vadd.f32 %v3637, %v3677
    %v3679 = vpop.f32.mrf.mxu0
    %v3680 = vpop.f32.mrf.mxu0
    %3681 = vdwg.mxu0
    %vm3682 = vcmp.ge.f32.partialorder %v3430, 0.0
    %vm3683 = vcmp.ge.f32.partialorder %v3432, 0.0
    %vm3684 = vcmp.ge.f32.partialorder %v3553, 0.0
    %vm3685 = vcmp.ge.f32.partialorder %v3555, 0.0
    %vm3686 = vcmp.ge.f32.partialorder %v3676, 0.0
    %vm3687 = vcmp.ge.f32.partialorder %v3678, 0.0
    %v3688 = vmul.f32 %v3430, 0.01
    %v3689 = vmul.f32 %v3432, 0.01
    %v3690 = vmul.f32 %v3553, 0.01
    %v3691 = vmul.f32 %v3555, 0.01
    %v3692 = vmul.f32 %v3676, 0.01
    %v3693 = vmul.f32 %v3678, 0.01
    %v3694 = vsel %vm3682, %v3430, %v3688
    %v3695 = vsel %vm3683, %v3432, %v3689
    %v3696 = vsel %vm3684, %v3553, %v3690
    %v3697 = vsel %vm3685, %v3555, %v3691
    %v3698 = vsel %vm3686, %v3676, %v3692
    %v3699 = vsel %vm3687, %v3678, %v3693
    %3700 = vst [vmem:[#allocation11] sm:$0xff] %v3694
    %3701 = vst [vmem:[#allocation11 + $0x8] sm:$0xff] %v3695
    %3702 = vst [vmem:[#allocation11 + $0x10] sm:$0xff] %v3696
    %3703 = vst [vmem:[#allocation11 + $0x18] sm:$0xff] %v3697
    %3704 = vst [vmem:[#allocation11 + $0x20] sm:$0xff] %v3698
    %3705 = vst [vmem:[#allocation11 + $0x28] sm:$0xff] %v3699
    // Predicated region
    $region42: #{tpu_custom_call.1} parent=1 // pred_check
      _
    $region43: #{tpu_custom_call.1} parent=1 // pred_check_branch
      %3707 = sbr.rel (0) target = $region45
    $region44: #{tpu_custom_call.1} parent=1 // pred_region
      %s3709 = ssub.s32 768, 768
      %3710 = vsyncadd [#allocation4], %s3709
      %s3712 = sshll.u32 [#allocation11], 4
      %s3713 = int_to_ptr.vmem [resolvable:$true] %s3712
      %3715 = dma.vmem_to_hbm [thread:$0]  %s3713, 768, %s5, [#allocation4]
    $region45: #{tpu_custom_call.1} parent=1 // pred_fallthru
      _
    // Predicated region
    $region46: #{tpu_custom_call.1} parent=1 // pred_check
      _
    $region47: #{tpu_custom_call.1} parent=1 // pred_check_branch
      %3717 = sbr.rel (0) target = $region49
    $region48: #{tpu_custom_call.1} parent=1 // pred_region
      %3718 = dma.done [#allocation4], 768
    $region49: #{tpu_custom_call.1} parent=1 // pred_fallthru
      _
    %3719 = vsyncpa [#allocation3], 1
    %3720 = vsyncpa [#allocation6], 1
    %3721 = vsyncpa [#allocation9], 1
    %3722 = vsyncpa [#allocation4], 1

</llo_original>
